<compile_context>
chip_gen: v5e
topology: v5e:2x2
jax: 0.10.0
libtpu: 0.0.40
codegen_flags: <defaults>
</compile_context>

<pallas_src>
import functools

import jax
import jax.numpy as jnp
from jax import lax
from jax.experimental import pallas as pl
from jax.experimental.pallas import tpu as pltpu

# Keep wrapper/reference XLA matmuls in true f32 so the check against the
# pure-JAX reference is tight.
jax.config.update("jax_default_matmul_precision", "highest")

# Matmul-input dtype inside the kernels.  Flip to jnp.bfloat16 (f32 accumulate
# is kept via preferred_element_type) to cut MXU passes ~3x on the serial
# critical path if a looser output tolerance is acceptable.
MATMUL_DTYPE = jnp.float32


def _time_chunk(seq, max_chunk=128):
    """Largest divisor of `seq` that is <= max_chunk (bounds VMEM per chunk)."""
    if seq <= max_chunk:
        return seq
    for t in range(max_chunk, 0, -1):
        if seq % t == 0:
            return t
    return seq  # unreachable (t=1 always divides)


def _gate_activation(gates, g_mask):
    """Apply [i,f,g,o] gate activations with ONE transcendental pass.

    sigmoid(x) == 0.5*tanh(0.5*x) + 0.5, so a single tanh over the whole gate
    vector (plain tanh on the g block, rescaled elsewhere) halves the EUP work
    per cell update (review item 2).
    """
    x = jnp.where(g_mask, gates, 0.5 * gates)
    t = jnp.tanh(x)
    return jnp.where(g_mask, t, 0.5 * t + 0.5)


# ----------------------------------------------------------------------------
# Kernel 1 (only needed for num_layer > 2): single LSTM layer over the whole
# sequence, fused with the NEXT layer's input projection.  Pre-gates
# (x @ W_ih^T + biases) are computed outside; the kernel runs the serial
# h @ W_hh^T recurrence and emits the next layer's pre-gates as lane-dense
# (B, 4H) = 128-lane blocks (review item 6).  Time is chunked into the grid
# with h/c carried in VMEM scratch (review item 5).
# ----------------------------------------------------------------------------
def _lstm_proj_seq_kernel(pg_ref, whh_ref, wnext_ref, bnext_ref, out_ref,
                          h_ref, c_ref):
    t_chunk, batch, four_h = pg_ref.shape     # (T, B, 4H)
    hid = four_h // 4

    @pl.when(pl.program_id(0) == 0)
    def _init():
        h_ref[...] = jnp.zeros_like(h_ref)
        c_ref[...] = jnp.zeros_like(c_ref)

    whh = whh_ref[...].astype(MATMUL_DTYPE)       # (H, 4H)
    wnext = wnext_ref[...].astype(MATMUL_DTYPE)   # (H, 4H)
    # Hoist the bias broadcast out of the loop (JAX does not CSE it).
    bnext = jnp.broadcast_to(bnext_ref[...], (batch, four_h))
    lane = lax.broadcasted_iota(jnp.int32, (batch, four_h), 1)
    g_mask = jnp.logical_and(lane >= 2 * hid, lane < 3 * hid)

    def step(t, carry):
        h, c = carry
        gates = pg_ref[t] + jnp.dot(h.astype(MATMUL_DTYPE), whh,
                                    preferred_element_type=jnp.float32)
        act = _gate_activation(gates, g_mask)
        i_g = act[:, 0 * hid:1 * hid]
        f_g = act[:, 1 * hid:2 * hid]
        g_g = act[:, 2 * hid:3 * hid]
        o_g = act[:, 3 * hid:4 * hid]
        c_n = f_g * c + i_g * g_g
        h_n = o_g * jnp.tanh(c_n)
        # Next layer's pre-gates for this timestep: lane-dense (B, 4H) store.
        # (Not on the recurrence critical path -> overlaps with step t+1.)
        out_ref[t] = (jnp.dot(h_n.astype(MATMUL_DTYPE), wnext,
                              preferred_element_type=jnp.float32) + bnext)
        return (h_n, c_n)

    h, c = lax.fori_loop(0, t_chunk, step, (h_ref[...], c_ref[...]), unroll=8)
    h_ref[...] = h
    c_ref[...] = c
    # TODO(synk): the projection of h(t) could be merged into step t+1's
    # recurrence matmul (same LHS), but the deferred store crosses time-chunk
    # boundaries; left unmerged since it is off the critical path anyway.


def lstm_layer_next_pregates(pg, w_hh, w_ih_next, b_next_sum):
    """pg: (seq, B, 4H) f32 pre-gates of this layer.
    Returns next layer's pre-gates (seq, B, 4H) = h_t @ W_ih_next^T + b_next."""
    seq, batch, four_h = pg.shape
    hid = four_h // 4
    t_chunk = _time_chunk(seq)
    whh_t = w_hh.astype(jnp.float32).T           # (H, 4H), transposed once
    wnext_t = w_ih_next.astype(jnp.float32).T    # (H, 4H)
    bnext = b_next_sum.astype(jnp.float32).reshape(1, four_h)
    return pl.pallas_call(
        _lstm_proj_seq_kernel,
        out_shape=jax.ShapeDtypeStruct((seq, batch, four_h), jnp.float32),
        grid_spec=pltpu.PrefetchScalarGridSpec(
            num_scalar_prefetch=0,
            grid=(seq // t_chunk,),
            in_specs=[
                pl.BlockSpec((t_chunk, batch, four_h), lambda k: (k, 0, 0)),
                pl.BlockSpec((hid, four_h), lambda k: (0, 0)),
                pl.BlockSpec((hid, four_h), lambda k: (0, 0)),
                pl.BlockSpec((1, four_h), lambda k: (0, 0)),
            ],
            out_specs=pl.BlockSpec((t_chunk, batch, four_h),
                                   lambda k: (k, 0, 0)),
            scratch_shapes=[pltpu.VMEM((batch, hid), jnp.float32),
                            pltpu.VMEM((batch, hid), jnp.float32)],
        ),
        compiler_params=pltpu.CompilerParams(
            dimension_semantics=("arbitrary",)),
    )(pg, whh_t, wnext_t, bnext)


# ----------------------------------------------------------------------------
# Kernel 2: fused last-two LSTM layers (wavefront-skewed) + RLSTM output
# combine.  Per loop iteration t:
#   layer A advances to time t     (uses h1(t-1))
#   layer B advances to time t-1   (uses h1(t-1), h2(t-2))
# Both layers' recurrence matmuls are merged into one (B,2H)@(2H,8H) matmul
# and both cells share one activation pass.  After seq iterations the carry is
# exactly [h1(seq-1) | h2(seq-2)] — all the epilogue needs.
# ----------------------------------------------------------------------------
def _fused_two_layer_kernel(pgb_ref, wbig_ref, wepi_ref, bo_ref, out_ref,
                            h12_ref, c12_ref):
    t_chunk, batch, eight_h = pgb_ref.shape   # (T, B, 8H) interleaved pre-gates
    hid = eight_h // 8
    two_h = 2 * hid

    @pl.when(pl.program_id(0) == 0)
    def _init():
        h12_ref[...] = jnp.zeros_like(h12_ref)
        c12_ref[...] = jnp.zeros_like(c12_ref)

    w_big = wbig_ref[...].astype(MATMUL_DTYPE)          # (2H, 8H)
    lane = lax.broadcasted_iota(jnp.int32, (batch, eight_h), 1)
    # g blocks of BOTH layers live in lanes [4H, 6H) of the interleaved layout
    # [iA iB fA fB gA gB oA oB].
    g_mask = jnp.logical_and(lane >= 4 * hid, lane < 6 * hid)

    def step(t, carry):
        h12, c12 = carry                                 # [h1 | h2], [c1 | c2]
        # Single merged matmul: K=2H, N=8H (fills the MXU; review items 1+3).
        gates = pgb_ref[t] + jnp.dot(h12.astype(MATMUL_DTYPE), w_big,
                                     preferred_element_type=jnp.float32)
        act = _gate_activation(gates, g_mask)            # one tanh pass
        i12 = act[:, 0 * two_h:1 * two_h]
        f12 = act[:, 1 * two_h:2 * two_h]
        g12 = act[:, 2 * two_h:3 * two_h]
        o12 = act[:, 3 * two_h:4 * two_h]
        c12n = f12 * c12 + i12 * g12
        h12n = o12 * jnp.tanh(c12n)
        return (h12n, c12n)

    h12, c12 = lax.fori_loop(0, t_chunk, step, (h12_ref[...], c12_ref[...]),
                             unroll=8)
    h12_ref[...] = h12
    c12_ref[...] = c12

    @pl.when(pl.program_id(0) == pl.num_programs(0) - 1)
    def _epilogue():
        h1 = h12[:, :hid]        # layer A (second-to-last) hidden at t = seq-1
        h2 = h12[:, hid:]        # layer B (last) hidden at t = seq-2
        # o_1 = h2 @ Whh_o^T + h1 @ Wih_o^T + b_o  (single merged matmul).
        o1 = (jnp.dot(h12.astype(MATMUL_DTYPE),
                      wepi_ref[...].astype(MATMUL_DTYPE),
                      preferred_element_type=jnp.float32) + bo_ref[...])
        out_ref[...] = h2 + o1 * h1


def rlstm_fused_last_two(pg_a, w_hh_a, w_ih_b, w_hh_b, b_ih_b, b_hh_b):
    """pg_a: (seq, B, 4H) pre-gates of the second-to-last layer (layer A)."""
    seq, batch, four_h = pg_a.shape
    hid = four_h // 4
    t_chunk = _time_chunk(seq)

    whh_a_t = w_hh_a.astype(jnp.float32).T.reshape(hid, 4, hid)
    wih_b_t = w_ih_b.astype(jnp.float32).T.reshape(hid, 4, hid)
    whh_b_t = w_hh_b.astype(jnp.float32).T.reshape(hid, 4, hid)
    b_b = (b_ih_b + b_hh_b).astype(jnp.float32).reshape(4, hid)

    # Merged recurrence weight (2H, 8H), columns [iA iB fA fB gA gB oA oB],
    # rows [h1-rows ; h2-rows]:
    #   [h1|h2] @ W_big = [ h1@Whh_A^T (A gates) , h1@Wih_B^T + h2@Whh_B^T (B) ]
    top = jnp.stack([whh_a_t, wih_b_t], axis=2).reshape(hid, 8 * hid)
    bot = jnp.stack([jnp.zeros_like(whh_b_t), whh_b_t],
                    axis=2).reshape(hid, 8 * hid)
    w_big = jnp.concatenate([top, bot], axis=0)          # (2H, 8H)

    # Interleaved per-step additive terms: layer-A pre-gates and layer-B bias.
    pga4 = pg_a.reshape(seq, batch, 4, hid)
    bb4 = jnp.broadcast_to(b_b, (seq, batch, 4, hid))
    # Timestep 0: drive layer B's (skewed) gates to -1e9 so sigmoid->0 and its
    # step is an exact no-op (h2/c2 stay at their zero initial state) -> no
    # peeled iteration, uniform loop body across time chunks.
    bb4 = bb4.at[0].set(jnp.full((batch, 4, hid), -1e9, jnp.float32))
    pgb = jnp.stack([pga4, bb4], axis=3).reshape(seq, batch, 8 * hid)

    # Epilogue weights: o_1 = h12 @ W_epi + b_o with W_epi = [Wih_o^T ; Whh_o^T].
    w_epi = jnp.concatenate([wih_b_t[:, 3], whh_b_t[:, 3]], axis=0)  # (2H, H)
    b_o = b_b[3].reshape(1, hid)

    return pl.pallas_call(
        _fused_two_layer_kernel,
        out_shape=jax.ShapeDtypeStruct((batch, hid), jnp.float32),
        grid_spec=pltpu.PrefetchScalarGridSpec(
            num_scalar_prefetch=0,
            grid=(seq // t_chunk,),
            in_specs=[
                pl.BlockSpec((t_chunk, batch, 8 * hid), lambda k: (k, 0, 0)),
                pl.BlockSpec((2 * hid, 8 * hid), lambda k: (0, 0)),
                pl.BlockSpec((2 * hid, hid), lambda k: (0, 0)),
                pl.BlockSpec((1, hid), lambda k: (0, 0)),
            ],
            out_specs=pl.BlockSpec((batch, hid), lambda k: (0, 0)),
            scratch_shapes=[pltpu.VMEM((batch, 2 * hid), jnp.float32),
                            pltpu.VMEM((batch, 2 * hid), jnp.float32)],
        ),
        compiler_params=pltpu.CompilerParams(
            dimension_semantics=("arbitrary",)),
    )(pgb, w_big, w_epi, b_o)
    # TODO(synk): for very large batch, add a leading "parallel" batch grid
    # axis (helps v7x's 2 TensorCores); batch=2 here fits one sublane tile.


# ----------------------------------------------------------------------------
# RLSTM module (deterministic synthetic parameters) + forward.
# ----------------------------------------------------------------------------
def init_rlstm_params(key, input_size, hidden_size, num_layer):
    params = []
    in_dim = input_size
    scale = 1.0 / jnp.sqrt(jnp.float32(hidden_size))
    for _ in range(num_layer):
        key, k1, k2, k3, k4 = jax.random.split(key, 5)
        params.append({
            "w_ih": jax.random.uniform(k1, (4 * hidden_size, in_dim),
                                       jnp.float32, -scale, scale),
            "w_hh": jax.random.uniform(k2, (4 * hidden_size, hidden_size),
                                       jnp.float32, -scale, scale),
            "b_ih": jax.random.uniform(k3, (4 * hidden_size,),
                                       jnp.float32, -scale, scale),
            "b_hh": jax.random.uniform(k4, (4 * hidden_size,),
                                       jnp.float32, -scale, scale),
        })
        in_dim = hidden_size
    return params


@functools.partial(jax.jit, static_argnums=(2, 3))
def rlstm_forward(inputs_bti, params, hidden_size, num_layer):
    """inputs_bti: (batch, seq, input_size). Returns (batch, hidden, 1)."""
    assert num_layer >= 2, "RLSTM forward requires num_layer >= 2"
    batch, seq, _ = inputs_bti.shape
    assert seq >= 2, "RLSTM forward requires seq >= 2 (uses lstm[-2])"
    x = inputs_bti.astype(jnp.float32)

    # Layer-0 input projection in one batched matmul; output written directly
    # time-major (folds the torch transpose into the matmul).
    p0 = params[0]
    pg = (jnp.einsum("bti,gi->tbg", x, p0["w_ih"].astype(jnp.float32))
          + (p0["b_ih"] + p0["b_hh"]).astype(jnp.float32))      # (seq, B, 4H)

    # Prefix layers 0 .. num_layer-3 (only when num_layer > 2): each kernel
    # call consumes this layer's pre-gates and emits the next layer's
    # pre-gates (lane-dense), so no (seq,B,H) slab ever round-trips HBM.
    for li in range(num_layer - 2):
        p_next = params[li + 1]
        pg = lstm_layer_next_pregates(pg, params[li]["w_hh"], p_next["w_ih"],
                                      p_next["b_ih"] + p_next["b_hh"])

    # Fused last two layers + epilogue (weights of the LAST layer).
    pa = params[num_layer - 2]
    pb = params[num_layer - 1]
    out = rlstm_fused_last_two(pg, pa["w_hh"], pb["w_ih"], pb["w_hh"],
                               pb["b_ih"], pb["b_hh"])          # (B, H)
    return out[:, :, None]                                      # (B, H, 1)


# ----------------------------------------------------------------------------
# Pure-JAX reference (correctness check).
# ----------------------------------------------------------------------------
def _lstm_layer_ref(x_tbi, w_ih, w_hh, b_ih, b_hh):
    H = w_hh.shape[1]
    B = x_tbi.shape[1]

    def step(carry, x_t):
        h, c = carry
        gates = x_t @ w_ih.T + h @ w_hh.T + b_ih + b_hh
        i_g = jax.nn.sigmoid(gates[:, 0 * H:1 * H])
        f_g = jax.nn.sigmoid(gates[:, 1 * H:2 * H])
        g_g = jnp.tanh(gates[:, 2 * H:3 * H])
        o_g = jax.nn.sigmoid(gates[:, 3 * H:4 * H])
        c = f_g * c + i_g * g_g
        h = o_g * jnp.tanh(c)
        return (h, c), h

    init = (jnp.zeros((B, H), jnp.float32), jnp.zeros((B, H), jnp.float32))
    _, h_all = lax.scan(step, init, x_tbi)
    return h_all


def rlstm_forward_ref(inputs_bti, params, hidden_size, num_layer):
    x = jnp.transpose(inputs_bti, (1, 0, 2)).astype(jnp.float32)
    lstm = _lstm_layer_ref(x, params[0]["w_ih"], params[0]["w_hh"],
                           params[0]["b_ih"], params[0]["b_hh"])
    lstm_backup = lstm
    last = None
    for i in range(num_layer - 1):
        lstm_backup = lstm
        p = params[i + 1]
        lstm = _lstm_layer_ref(lstm, p["w_ih"], p["w_hh"], p["b_ih"], p["b_hh"])
        last = p
    H = hidden_size
    w_ih_o = last["w_ih"][3 * H:]
    w_hh_o = last["w_hh"][3 * H:]
    b_o = last["b_ih"][3 * H:] + last["b_hh"][3 * H:]
    h2 = lstm[-2]
    h1 = lstm_backup[-1]
    o1 = h2 @ w_hh_o.T + h1 @ w_ih_o.T + b_o
    return (h2 + o1 * h1)[:, :, None]


if __name__ == "__main__":
    batch, seq = 2, 8
    input_size, hidden_size = 32, 32

    key = jax.random.PRNGKey(0)
    key, k_in, k_p2, k_p3 = jax.random.split(key, 4)
    inputs = jax.random.normal(k_in, (batch, seq, input_size), jnp.float32)

    # num_layer == 2: fully fused path (the standard RLSTM configuration).
    params2 = init_rlstm_params(k_p2, input_size, hidden_size, 2)
    out2 = jax.block_until_ready(rlstm_forward(inputs, params2, hidden_size, 2))
    ref2 = jax.block_until_ready(
        rlstm_forward_ref(inputs, params2, hidden_size, 2))
    assert out2.shape == (batch, hidden_size, 1)
    assert jnp.allclose(out2, ref2, atol=2e-3, rtol=2e-3), (
        float(jnp.max(jnp.abs(out2 - ref2))))

    # num_layer == 3: exercises the fused prefix-projection kernel as well.
    params3 = init_rlstm_params(k_p3, input_size, hidden_size, 3)
    out3 = jax.block_until_ready(rlstm_forward(inputs, params3, hidden_size, 3))
    ref3 = jax.block_until_ready(
        rlstm_forward_ref(inputs, params3, hidden_size, 3))
    assert out3.shape == (batch, hidden_size, 1)
    assert jnp.allclose(out3, ref3, atol=2e-3, rtol=2e-3), (
        float(jnp.max(jnp.abs(out3 - ref3))))

    print("KERNEL_OK")
</pallas_src>

<mosaic_0001>
module attributes {stable_mosaic.version = 11 : i64} {
  func.func @_fused_two_layer_kernel(%arg0: i32, %arg1: memref<8x2x256xf32, #tpu.memory_space<vmem>>, %arg2: memref<64x256xf32, #tpu.memory_space<vmem>>, %arg3: memref<64x32xf32, #tpu.memory_space<vmem>>, %arg4: memref<1x32xf32, #tpu.memory_space<vmem>>, %arg5: memref<2x32xf32, #tpu.memory_space<vmem>>, %arg6: memref<2x64xf32, #tpu.memory_space<vmem>>, %arg7: memref<2x64xf32, #tpu.memory_space<vmem>>) attributes {dimension_semantics = [#tpu.dimension_semantics<arbitrary>], iteration_bounds = array<i64: 1>, scalar_prefetch = 0 : i64, scratch_operands = 2 : i64, tpu.core_type = #tpu.core_type<tc>, window_params = [{transform_indices = @transform_0, window_bounds = array<i64: 8, 2, 256>}, {pipeline_mode = #tpu.pipeline_mode<synchronous>, transform_indices = @transform_1, window_bounds = array<i64: 64, 256>}, {pipeline_mode = #tpu.pipeline_mode<synchronous>, transform_indices = @transform_2, window_bounds = array<i64: 64, 32>}, {pipeline_mode = #tpu.pipeline_mode<synchronous>, transform_indices = @transform_3, window_bounds = array<i64: 1, 32>}, {pipeline_mode = #tpu.pipeline_mode<synchronous>, transform_indices = @transform_4, window_bounds = array<i64: 2, 32>}]} {
    %c0_i32 = arith.constant 0 : i32
    %0 = arith.cmpi eq, %arg0, %c0_i32 : i32
    %1 = arith.extui %0 : i1 to i32
    %c0_i32_0 = arith.constant 0 : i32
    %2 = arith.cmpi ne, %1, %c0_i32_0 : i32
    scf.if %2 {
      %cst_60 = arith.constant 0.000000e+00 : f32
      %201 = vector.broadcast %cst_60 : f32 to vector<2x64xf32>
      %c0_61 = arith.constant 0 : index
      %c0_62 = arith.constant 0 : index
      %202 = vector.load %arg6[%c0_61, %c0_62] : memref<2x64xf32, #tpu.memory_space<vmem>>, vector<2x64xf32>
      tpu.vector_store %arg6[%c0_61, %c0_62], %201 {strides = array<i32>} : memref<2x64xf32, #tpu.memory_space<vmem>>, vector<2x64xf32>,
      %cst_63 = arith.constant 0.000000e+00 : f32
      %203 = vector.broadcast %cst_63 : f32 to vector<2x64xf32>
      %c0_64 = arith.constant 0 : index
      %c0_65 = arith.constant 0 : index
      %204 = vector.load %arg7[%c0_64, %c0_65] : memref<2x64xf32, #tpu.memory_space<vmem>>, vector<2x64xf32>
      tpu.vector_store %arg7[%c0_64, %c0_65], %203 {strides = array<i32>} : memref<2x64xf32, #tpu.memory_space<vmem>>, vector<2x64xf32>,
    } else {
    }
    %c0 = arith.constant 0 : index
    %c0_1 = arith.constant 0 : index
    %3 = vector.load %arg2[%c0, %c0_1] : memref<64x256xf32, #tpu.memory_space<vmem>>, vector<64x256xf32>
    %4 = tpu.iota {dimensions = array<i32: 1>} : vector<2x256xi32>
    %c128_i32 = arith.constant 128 : i32
    %5 = vector.broadcast %c128_i32 : i32 to vector<2x256xi32>
    %6 = arith.cmpi sge, %4, %5 : vector<2x256xi32>
    %c192_i32 = arith.constant 192 : i32
    %7 = vector.broadcast %c192_i32 : i32 to vector<2x256xi32>
    %8 = arith.cmpi slt, %4, %7 : vector<2x256xi32>
    %9 = arith.andi %6, %8 : vector<2x256xi1>
    %c0_2 = arith.constant 0 : index
    %c0_3 = arith.constant 0 : index
    %10 = vector.load %arg6[%c0_2, %c0_3] : memref<2x64xf32, #tpu.memory_space<vmem>>, vector<2x64xf32>
    %c0_4 = arith.constant 0 : index
    %c0_5 = arith.constant 0 : index
    %11 = vector.load %arg7[%c0_4, %c0_5] : memref<2x64xf32, #tpu.memory_space<vmem>>, vector<2x64xf32>
    %c0_i32_6 = arith.constant 0 : i32
    %12 = arith.index_cast %c0_i32_6 : i32 to index
    %c0_7 = arith.constant 0 : index
    %c0_8 = arith.constant 0 : index
    %13 = vector.load %arg1[%12, %c0_7, %c0_8] : memref<8x2x256xf32, #tpu.memory_space<vmem>>, vector<1x2x256xf32>
    %14 = vector.shape_cast %13 : vector<1x2x256xf32> to vector<2x256xf32>
    %cst = arith.constant dense<0.000000e+00> : vector<2x256xf32>
    %15 = tpu.matmul %10, %3, %cst {dimension_numbers = #tpu.dot_dimension_numbers<[1], [0], [0], [1], [0, 0, 1, 1], [], []>, precision = #tpu.contract_precision<fp32>} : vector<2x64xf32>, vector<64x256xf32>, vector<2x256xf32> -> vector<2x256xf32>
    %16 = arith.addf %14, %15 : vector<2x256xf32>
    %cst_9 = arith.constant 5.000000e-01 : f32
    %17 = vector.broadcast %cst_9 : f32 to vector<2x256xf32>
    %18 = arith.mulf %17, %16 : vector<2x256xf32>
    %19 = arith.select %9, %16, %18 : vector<2x256xi1>, vector<2x256xf32>
    %20 = math.tanh %19 : vector<2x256xf32>
    %cst_10 = arith.constant 5.000000e-01 : f32
    %21 = vector.broadcast %cst_10 : f32 to vector<2x256xf32>
    %22 = arith.mulf %21, %20 : vector<2x256xf32>
    %cst_11 = arith.constant 5.000000e-01 : f32
    %23 = vector.broadcast %cst_11 : f32 to vector<2x256xf32>
    %24 = arith.addf %22, %23 : vector<2x256xf32>
    %25 = arith.select %9, %20, %24 : vector<2x256xi1>, vector<2x256xf32>
    %26 = vector.extract_strided_slice %25 {offsets = [0, 0], sizes = [2, 64], strides = [1, 1]} : vector<2x256xf32> to vector<2x64xf32>
    %27 = vector.extract_strided_slice %25 {offsets = [0, 64], sizes = [2, 64], strides = [1, 1]} : vector<2x256xf32> to vector<2x64xf32>
    %28 = vector.extract_strided_slice %25 {offsets = [0, 128], sizes = [2, 64], strides = [1, 1]} : vector<2x256xf32> to vector<2x64xf32>
    %29 = vector.extract_strided_slice %25 {offsets = [0, 192], sizes = [2, 64], strides = [1, 1]} : vector<2x256xf32> to vector<2x64xf32>
    %30 = arith.mulf %27, %11 : vector<2x64xf32>
    %31 = arith.mulf %26, %28 : vector<2x64xf32>
    %32 = arith.addf %30, %31 : vector<2x64xf32>
    %33 = math.tanh %32 : vector<2x64xf32>
    %34 = arith.mulf %29, %33 : vector<2x64xf32>
    %c1_i32 = arith.constant 1 : i32
    %35 = arith.index_cast %c1_i32 : i32 to index
    %c0_12 = arith.constant 0 : index
    %c0_13 = arith.constant 0 : index
    %36 = vector.load %arg1[%35, %c0_12, %c0_13] : memref<8x2x256xf32, #tpu.memory_space<vmem>>, vector<1x2x256xf32>
    %37 = vector.shape_cast %36 : vector<1x2x256xf32> to vector<2x256xf32>
    %cst_14 = arith.constant dense<0.000000e+00> : vector<2x256xf32>
    %38 = tpu.matmul %34, %3, %cst_14 {dimension_numbers = #tpu.dot_dimension_numbers<[1], [0], [0], [1], [0, 0, 1, 1], [], []>, precision = #tpu.contract_precision<fp32>} : vector<2x64xf32>, vector<64x256xf32>, vector<2x256xf32> -> vector<2x256xf32>
    %39 = arith.addf %37, %38 : vector<2x256xf32>
    %cst_15 = arith.constant 5.000000e-01 : f32
    %40 = vector.broadcast %cst_15 : f32 to vector<2x256xf32>
    %41 = arith.mulf %40, %39 : vector<2x256xf32>
    %42 = arith.select %9, %39, %41 : vector<2x256xi1>, vector<2x256xf32>
    %43 = math.tanh %42 : vector<2x256xf32>
    %cst_16 = arith.constant 5.000000e-01 : f32
    %44 = vector.broadcast %cst_16 : f32 to vector<2x256xf32>
    %45 = arith.mulf %44, %43 : vector<2x256xf32>
    %cst_17 = arith.constant 5.000000e-01 : f32
    %46 = vector.broadcast %cst_17 : f32 to vector<2x256xf32>
    %47 = arith.addf %45, %46 : vector<2x256xf32>
    %48 = arith.select %9, %43, %47 : vector<2x256xi1>, vector<2x256xf32>
    %49 = vector.extract_strided_slice %48 {offsets = [0, 0], sizes = [2, 64], strides = [1, 1]} : vector<2x256xf32> to vector<2x64xf32>
    %50 = vector.extract_strided_slice %48 {offsets = [0, 64], sizes = [2, 64], strides = [1, 1]} : vector<2x256xf32> to vector<2x64xf32>
    %51 = vector.extract_strided_slice %48 {offsets = [0, 128], sizes = [2, 64], strides = [1, 1]} : vector<2x256xf32> to vector<2x64xf32>
    %52 = vector.extract_strided_slice %48 {offsets = [0, 192], sizes = [2, 64], strides = [1, 1]} : vector<2x256xf32> to vector<2x64xf32>
    %53 = arith.mulf %50, %32 : vector<2x64xf32>
    %54 = arith.mulf %49, %51 : vector<2x64xf32>
    %55 = arith.addf %53, %54 : vector<2x64xf32>
    %56 = math.tanh %55 : vector<2x64xf32>
    %57 = arith.mulf %52, %56 : vector<2x64xf32>
    %c2_i32 = arith.constant 2 : i32
    %58 = arith.index_cast %c2_i32 : i32 to index
    %c0_18 = arith.constant 0 : index
    %c0_19 = arith.constant 0 : index
    %59 = vector.load %arg1[%58, %c0_18, %c0_19] : memref<8x2x256xf32, #tpu.memory_space<vmem>>, vector<1x2x256xf32>
    %60 = vector.shape_cast %59 : vector<1x2x256xf32> to vector<2x256xf32>
    %cst_20 = arith.constant dense<0.000000e+00> : vector<2x256xf32>
    %61 = tpu.matmul %57, %3, %cst_20 {dimension_numbers = #tpu.dot_dimension_numbers<[1], [0], [0], [1], [0, 0, 1, 1], [], []>, precision = #tpu.contract_precision<fp32>} : vector<2x64xf32>, vector<64x256xf32>, vector<2x256xf32> -> vector<2x256xf32>
    %62 = arith.addf %60, %61 : vector<2x256xf32>
    %cst_21 = arith.constant 5.000000e-01 : f32
    %63 = vector.broadcast %cst_21 : f32 to vector<2x256xf32>
    %64 = arith.mulf %63, %62 : vector<2x256xf32>
    %65 = arith.select %9, %62, %64 : vector<2x256xi1>, vector<2x256xf32>
    %66 = math.tanh %65 : vector<2x256xf32>
    %cst_22 = arith.constant 5.000000e-01 : f32
    %67 = vector.broadcast %cst_22 : f32 to vector<2x256xf32>
    %68 = arith.mulf %67, %66 : vector<2x256xf32>
    %cst_23 = arith.constant 5.000000e-01 : f32
    %69 = vector.broadcast %cst_23 : f32 to vector<2x256xf32>
    %70 = arith.addf %68, %69 : vector<2x256xf32>
    %71 = arith.select %9, %66, %70 : vector<2x256xi1>, vector<2x256xf32>
    %72 = vector.extract_strided_slice %71 {offsets = [0, 0], sizes = [2, 64], strides = [1, 1]} : vector<2x256xf32> to vector<2x64xf32>
    %73 = vector.extract_strided_slice %71 {offsets = [0, 64], sizes = [2, 64], strides = [1, 1]} : vector<2x256xf32> to vector<2x64xf32>
    %74 = vector.extract_strided_slice %71 {offsets = [0, 128], sizes = [2, 64], strides = [1, 1]} : vector<2x256xf32> to vector<2x64xf32>
    %75 = vector.extract_strided_slice %71 {offsets = [0, 192], sizes = [2, 64], strides = [1, 1]} : vector<2x256xf32> to vector<2x64xf32>
    %76 = arith.mulf %73, %55 : vector<2x64xf32>
    %77 = arith.mulf %72, %74 : vector<2x64xf32>
    %78 = arith.addf %76, %77 : vector<2x64xf32>
    %79 = math.tanh %78 : vector<2x64xf32>
    %80 = arith.mulf %75, %79 : vector<2x64xf32>
    %c3_i32 = arith.constant 3 : i32
    %81 = arith.index_cast %c3_i32 : i32 to index
    %c0_24 = arith.constant 0 : index
    %c0_25 = arith.constant 0 : index
    %82 = vector.load %arg1[%81, %c0_24, %c0_25] : memref<8x2x256xf32, #tpu.memory_space<vmem>>, vector<1x2x256xf32>
    %83 = vector.shape_cast %82 : vector<1x2x256xf32> to vector<2x256xf32>
    %cst_26 = arith.constant dense<0.000000e+00> : vector<2x256xf32>
    %84 = tpu.matmul %80, %3, %cst_26 {dimension_numbers = #tpu.dot_dimension_numbers<[1], [0], [0], [1], [0, 0, 1, 1], [], []>, precision = #tpu.contract_precision<fp32>} : vector<2x64xf32>, vector<64x256xf32>, vector<2x256xf32> -> vector<2x256xf32>
    %85 = arith.addf %83, %84 : vector<2x256xf32>
    %cst_27 = arith.constant 5.000000e-01 : f32
    %86 = vector.broadcast %cst_27 : f32 to vector<2x256xf32>
    %87 = arith.mulf %86, %85 : vector<2x256xf32>
    %88 = arith.select %9, %85, %87 : vector<2x256xi1>, vector<2x256xf32>
    %89 = math.tanh %88 : vector<2x256xf32>
    %cst_28 = arith.constant 5.000000e-01 : f32
    %90 = vector.broadcast %cst_28 : f32 to vector<2x256xf32>
    %91 = arith.mulf %90, %89 : vector<2x256xf32>
    %cst_29 = arith.constant 5.000000e-01 : f32
    %92 = vector.broadcast %cst_29 : f32 to vector<2x256xf32>
    %93 = arith.addf %91, %92 : vector<2x256xf32>
    %94 = arith.select %9, %89, %93 : vector<2x256xi1>, vector<2x256xf32>
    %95 = vector.extract_strided_slice %94 {offsets = [0, 0], sizes = [2, 64], strides = [1, 1]} : vector<2x256xf32> to vector<2x64xf32>
    %96 = vector.extract_strided_slice %94 {offsets = [0, 64], sizes = [2, 64], strides = [1, 1]} : vector<2x256xf32> to vector<2x64xf32>
    %97 = vector.extract_strided_slice %94 {offsets = [0, 128], sizes = [2, 64], strides = [1, 1]} : vector<2x256xf32> to vector<2x64xf32>
    %98 = vector.extract_strided_slice %94 {offsets = [0, 192], sizes = [2, 64], strides = [1, 1]} : vector<2x256xf32> to vector<2x64xf32>
    %99 = arith.mulf %96, %78 : vector<2x64xf32>
    %100 = arith.mulf %95, %97 : vector<2x64xf32>
    %101 = arith.addf %99, %100 : vector<2x64xf32>
    %102 = math.tanh %101 : vector<2x64xf32>
    %103 = arith.mulf %98, %102 : vector<2x64xf32>
    %c4_i32 = arith.constant 4 : i32
    %104 = arith.index_cast %c4_i32 : i32 to index
    %c0_30 = arith.constant 0 : index
    %c0_31 = arith.constant 0 : index
    %105 = vector.load %arg1[%104, %c0_30, %c0_31] : memref<8x2x256xf32, #tpu.memory_space<vmem>>, vector<1x2x256xf32>
    %106 = vector.shape_cast %105 : vector<1x2x256xf32> to vector<2x256xf32>
    %cst_32 = arith.constant dense<0.000000e+00> : vector<2x256xf32>
    %107 = tpu.matmul %103, %3, %cst_32 {dimension_numbers = #tpu.dot_dimension_numbers<[1], [0], [0], [1], [0, 0, 1, 1], [], []>, precision = #tpu.contract_precision<fp32>} : vector<2x64xf32>, vector<64x256xf32>, vector<2x256xf32> -> vector<2x256xf32>
    %108 = arith.addf %106, %107 : vector<2x256xf32>
    %cst_33 = arith.constant 5.000000e-01 : f32
    %109 = vector.broadcast %cst_33 : f32 to vector<2x256xf32>
    %110 = arith.mulf %109, %108 : vector<2x256xf32>
    %111 = arith.select %9, %108, %110 : vector<2x256xi1>, vector<2x256xf32>
    %112 = math.tanh %111 : vector<2x256xf32>
    %cst_34 = arith.constant 5.000000e-01 : f32
    %113 = vector.broadcast %cst_34 : f32 to vector<2x256xf32>
    %114 = arith.mulf %113, %112 : vector<2x256xf32>
    %cst_35 = arith.constant 5.000000e-01 : f32
    %115 = vector.broadcast %cst_35 : f32 to vector<2x256xf32>
    %116 = arith.addf %114, %115 : vector<2x256xf32>
    %117 = arith.select %9, %112, %116 : vector<2x256xi1>, vector<2x256xf32>
    %118 = vector.extract_strided_slice %117 {offsets = [0, 0], sizes = [2, 64], strides = [1, 1]} : vector<2x256xf32> to vector<2x64xf32>
    %119 = vector.extract_strided_slice %117 {offsets = [0, 64], sizes = [2, 64], strides = [1, 1]} : vector<2x256xf32> to vector<2x64xf32>
    %120 = vector.extract_strided_slice %117 {offsets = [0, 128], sizes = [2, 64], strides = [1, 1]} : vector<2x256xf32> to vector<2x64xf32>
    %121 = vector.extract_strided_slice %117 {offsets = [0, 192], sizes = [2, 64], strides = [1, 1]} : vector<2x256xf32> to vector<2x64xf32>
    %122 = arith.mulf %119, %101 : vector<2x64xf32>
    %123 = arith.mulf %118, %120 : vector<2x64xf32>
    %124 = arith.addf %122, %123 : vector<2x64xf32>
    %125 = math.tanh %124 : vector<2x64xf32>
    %126 = arith.mulf %121, %125 : vector<2x64xf32>
    %c5_i32 = arith.constant 5 : i32
    %127 = arith.index_cast %c5_i32 : i32 to index
    %c0_36 = arith.constant 0 : index
    %c0_37 = arith.constant 0 : index
    %128 = vector.load %arg1[%127, %c0_36, %c0_37] : memref<8x2x256xf32, #tpu.memory_space<vmem>>, vector<1x2x256xf32>
    %129 = vector.shape_cast %128 : vector<1x2x256xf32> to vector<2x256xf32>
    %cst_38 = arith.constant dense<0.000000e+00> : vector<2x256xf32>
    %130 = tpu.matmul %126, %3, %cst_38 {dimension_numbers = #tpu.dot_dimension_numbers<[1], [0], [0], [1], [0, 0, 1, 1], [], []>, precision = #tpu.contract_precision<fp32>} : vector<2x64xf32>, vector<64x256xf32>, vector<2x256xf32> -> vector<2x256xf32>
    %131 = arith.addf %129, %130 : vector<2x256xf32>
    %cst_39 = arith.constant 5.000000e-01 : f32
    %132 = vector.broadcast %cst_39 : f32 to vector<2x256xf32>
    %133 = arith.mulf %132, %131 : vector<2x256xf32>
    %134 = arith.select %9, %131, %133 : vector<2x256xi1>, vector<2x256xf32>
    %135 = math.tanh %134 : vector<2x256xf32>
    %cst_40 = arith.constant 5.000000e-01 : f32
    %136 = vector.broadcast %cst_40 : f32 to vector<2x256xf32>
    %137 = arith.mulf %136, %135 : vector<2x256xf32>
    %cst_41 = arith.constant 5.000000e-01 : f32
    %138 = vector.broadcast %cst_41 : f32 to vector<2x256xf32>
    %139 = arith.addf %137, %138 : vector<2x256xf32>
    %140 = arith.select %9, %135, %139 : vector<2x256xi1>, vector<2x256xf32>
    %141 = vector.extract_strided_slice %140 {offsets = [0, 0], sizes = [2, 64], strides = [1, 1]} : vector<2x256xf32> to vector<2x64xf32>
    %142 = vector.extract_strided_slice %140 {offsets = [0, 64], sizes = [2, 64], strides = [1, 1]} : vector<2x256xf32> to vector<2x64xf32>
    %143 = vector.extract_strided_slice %140 {offsets = [0, 128], sizes = [2, 64], strides = [1, 1]} : vector<2x256xf32> to vector<2x64xf32>
    %144 = vector.extract_strided_slice %140 {offsets = [0, 192], sizes = [2, 64], strides = [1, 1]} : vector<2x256xf32> to vector<2x64xf32>
    %145 = arith.mulf %142, %124 : vector<2x64xf32>
    %146 = arith.mulf %141, %143 : vector<2x64xf32>
    %147 = arith.addf %145, %146 : vector<2x64xf32>
    %148 = math.tanh %147 : vector<2x64xf32>
    %149 = arith.mulf %144, %148 : vector<2x64xf32>
    %c6_i32 = arith.constant 6 : i32
    %150 = arith.index_cast %c6_i32 : i32 to index
    %c0_42 = arith.constant 0 : index
    %c0_43 = arith.constant 0 : index
    %151 = vector.load %arg1[%150, %c0_42, %c0_43] : memref<8x2x256xf32, #tpu.memory_space<vmem>>, vector<1x2x256xf32>
    %152 = vector.shape_cast %151 : vector<1x2x256xf32> to vector<2x256xf32>
    %cst_44 = arith.constant dense<0.000000e+00> : vector<2x256xf32>
    %153 = tpu.matmul %149, %3, %cst_44 {dimension_numbers = #tpu.dot_dimension_numbers<[1], [0], [0], [1], [0, 0, 1, 1], [], []>, precision = #tpu.contract_precision<fp32>} : vector<2x64xf32>, vector<64x256xf32>, vector<2x256xf32> -> vector<2x256xf32>
    %154 = arith.addf %152, %153 : vector<2x256xf32>
    %cst_45 = arith.constant 5.000000e-01 : f32
    %155 = vector.broadcast %cst_45 : f32 to vector<2x256xf32>
    %156 = arith.mulf %155, %154 : vector<2x256xf32>
    %157 = arith.select %9, %154, %156 : vector<2x256xi1>, vector<2x256xf32>
    %158 = math.tanh %157 : vector<2x256xf32>
    %cst_46 = arith.constant 5.000000e-01 : f32
    %159 = vector.broadcast %cst_46 : f32 to vector<2x256xf32>
    %160 = arith.mulf %159, %158 : vector<2x256xf32>
    %cst_47 = arith.constant 5.000000e-01 : f32
    %161 = vector.broadcast %cst_47 : f32 to vector<2x256xf32>
    %162 = arith.addf %160, %161 : vector<2x256xf32>
    %163 = arith.select %9, %158, %162 : vector<2x256xi1>, vector<2x256xf32>
    %164 = vector.extract_strided_slice %163 {offsets = [0, 0], sizes = [2, 64], strides = [1, 1]} : vector<2x256xf32> to vector<2x64xf32>
    %165 = vector.extract_strided_slice %163 {offsets = [0, 64], sizes = [2, 64], strides = [1, 1]} : vector<2x256xf32> to vector<2x64xf32>
    %166 = vector.extract_strided_slice %163 {offsets = [0, 128], sizes = [2, 64], strides = [1, 1]} : vector<2x256xf32> to vector<2x64xf32>
    %167 = vector.extract_strided_slice %163 {offsets = [0, 192], sizes = [2, 64], strides = [1, 1]} : vector<2x256xf32> to vector<2x64xf32>
    %168 = arith.mulf %165, %147 : vector<2x64xf32>
    %169 = arith.mulf %164, %166 : vector<2x64xf32>
    %170 = arith.addf %168, %169 : vector<2x64xf32>
    %171 = math.tanh %170 : vector<2x64xf32>
    %172 = arith.mulf %167, %171 : vector<2x64xf32>
    %c7_i32 = arith.constant 7 : i32
    %173 = arith.index_cast %c7_i32 : i32 to index
    %c0_48 = arith.constant 0 : index
    %c0_49 = arith.constant 0 : index
    %174 = vector.load %arg1[%173, %c0_48, %c0_49] : memref<8x2x256xf32, #tpu.memory_space<vmem>>, vector<1x2x256xf32>
    %175 = vector.shape_cast %174 : vector<1x2x256xf32> to vector<2x256xf32>
    %cst_50 = arith.constant dense<0.000000e+00> : vector<2x256xf32>
    %176 = tpu.matmul %172, %3, %cst_50 {dimension_numbers = #tpu.dot_dimension_numbers<[1], [0], [0], [1], [0, 0, 1, 1], [], []>, precision = #tpu.contract_precision<fp32>} : vector<2x64xf32>, vector<64x256xf32>, vector<2x256xf32> -> vector<2x256xf32>
    %177 = arith.addf %175, %176 : vector<2x256xf32>
    %cst_51 = arith.constant 5.000000e-01 : f32
    %178 = vector.broadcast %cst_51 : f32 to vector<2x256xf32>
    %179 = arith.mulf %178, %177 : vector<2x256xf32>
    %180 = arith.select %9, %177, %179 : vector<2x256xi1>, vector<2x256xf32>
    %181 = math.tanh %180 : vector<2x256xf32>
    %cst_52 = arith.constant 5.000000e-01 : f32
    %182 = vector.broadcast %cst_52 : f32 to vector<2x256xf32>
    %183 = arith.mulf %182, %181 : vector<2x256xf32>
    %cst_53 = arith.constant 5.000000e-01 : f32
    %184 = vector.broadcast %cst_53 : f32 to vector<2x256xf32>
    %185 = arith.addf %183, %184 : vector<2x256xf32>
    %186 = arith.select %9, %181, %185 : vector<2x256xi1>, vector<2x256xf32>
    %187 = vector.extract_strided_slice %186 {offsets = [0, 0], sizes = [2, 64], strides = [1, 1]} : vector<2x256xf32> to vector<2x64xf32>
    %188 = vector.extract_strided_slice %186 {offsets = [0, 64], sizes = [2, 64], strides = [1, 1]} : vector<2x256xf32> to vector<2x64xf32>
    %189 = vector.extract_strided_slice %186 {offsets = [0, 128], sizes = [2, 64], strides = [1, 1]} : vector<2x256xf32> to vector<2x64xf32>
    %190 = vector.extract_strided_slice %186 {offsets = [0, 192], sizes = [2, 64], strides = [1, 1]} : vector<2x256xf32> to vector<2x64xf32>
    %191 = arith.mulf %188, %170 : vector<2x64xf32>
    %192 = arith.mulf %187, %189 : vector<2x64xf32>
    %193 = arith.addf %191, %192 : vector<2x64xf32>
    %194 = math.tanh %193 : vector<2x64xf32>
    %195 = arith.mulf %190, %194 : vector<2x64xf32>
    %c8_i32 = arith.constant 8 : i32
    %c0_54 = arith.constant 0 : index
    %c0_55 = arith.constant 0 : index
    %196 = vector.load %arg6[%c0_54, %c0_55] : memref<2x64xf32, #tpu.memory_space<vmem>>, vector<2x64xf32>
    tpu.vector_store %arg6[%c0_54, %c0_55], %195 {strides = array<i32>} : memref<2x64xf32, #tpu.memory_space<vmem>>, vector<2x64xf32>,
    %c0_56 = arith.constant 0 : index
    %c0_57 = arith.constant 0 : index
    %197 = vector.load %arg7[%c0_56, %c0_57] : memref<2x64xf32, #tpu.memory_space<vmem>>, vector<2x64xf32>
    tpu.vector_store %arg7[%c0_56, %c0_57], %193 {strides = array<i32>} : memref<2x64xf32, #tpu.memory_space<vmem>>, vector<2x64xf32>,
    %c0_i32_58 = arith.constant 0 : i32
    %198 = arith.cmpi eq, %arg0, %c0_i32_58 : i32
    %199 = arith.extui %198 : i1 to i32
    %c0_i32_59 = arith.constant 0 : i32
    %200 = arith.cmpi ne, %199, %c0_i32_59 : i32
    scf.if %200 {
      %201 = vector.extract_strided_slice %195 {offsets = [0, 0], sizes = [2, 32], strides = [1, 1]} : vector<2x64xf32> to vector<2x32xf32>
      %202 = vector.extract_strided_slice %195 {offsets = [0, 32], sizes = [2, 32], strides = [1, 1]} : vector<2x64xf32> to vector<2x32xf32>
      %c0_60 = arith.constant 0 : index
      %c0_61 = arith.constant 0 : index
      %203 = vector.load %arg3[%c0_60, %c0_61] : memref<64x32xf32, #tpu.memory_space<vmem>>, vector<64x32xf32>
      %cst_62 = arith.constant dense<0.000000e+00> : vector<2x32xf32>
      %204 = tpu.matmul %195, %203, %cst_62 {dimension_numbers = #tpu.dot_dimension_numbers<[1], [0], [0], [1], [0, 0, 1, 1], [], []>, precision = #tpu.contract_precision<fp32>} : vector<2x64xf32>, vector<64x32xf32>, vector<2x32xf32> -> vector<2x32xf32>
      %c0_63 = arith.constant 0 : index
      %c0_64 = arith.constant 0 : index
      %205 = vector.load %arg4[%c0_63, %c0_64] : memref<1x32xf32, #tpu.memory_space<vmem>>, vector<1x32xf32>
      %206 = vector.broadcast %205 : vector<1x32xf32> to vector<2x32xf32>
      %207 = arith.addf %204, %206 : vector<2x32xf32>
      %208 = arith.mulf %207, %201 : vector<2x32xf32>
      %209 = arith.addf %202, %208 : vector<2x32xf32>
      %c0_65 = arith.constant 0 : index
      %c0_66 = arith.constant 0 : index
      %210 = vector.load %arg5[%c0_65, %c0_66] : memref<2x32xf32, #tpu.memory_space<vmem>>, vector<2x32xf32>
      tpu.vector_store %arg5[%c0_65, %c0_66], %209 {strides = array<i32>} : memref<2x32xf32, #tpu.memory_space<vmem>>, vector<2x32xf32>,
    } else {
    }
    return
  }
  func.func @transform_0(%arg0: i32) -> (i32, i32, i32) {
    %c0_i32 = arith.constant 0 : i32
    %c0_i32_0 = arith.constant 0 : i32
    %c0_i32_1 = arith.constant 0 : i32
    return %arg0, %c0_i32, %c0_i32_0 : i32, i32, i32
  }
  func.func @transform_1(%arg0: i32) -> (i32, i32) {
    %c0_i32 = arith.constant 0 : i32
    %c0_i32_0 = arith.constant 0 : i32
    %c0_i32_1 = arith.constant 0 : i32
    return %c0_i32, %c0_i32_0 : i32, i32
  }
  func.func @transform_2(%arg0: i32) -> (i32, i32) {
    %c0_i32 = arith.constant 0 : i32
    %c0_i32_0 = arith.constant 0 : i32
    %c0_i32_1 = arith.constant 0 : i32
    return %c0_i32, %c0_i32_0 : i32, i32
  }
  func.func @transform_3(%arg0: i32) -> (i32, i32) {
    %c0_i32 = arith.constant 0 : i32
    %c0_i32_0 = arith.constant 0 : i32
    %c0_i32_1 = arith.constant 0 : i32
    return %c0_i32, %c0_i32_0 : i32, i32
  }
  func.func @transform_4(%arg0: i32) -> (i32, i32) {
    %c0_i32 = arith.constant 0 : i32
    %c0_i32_0 = arith.constant 0 : i32
    %c0_i32_1 = arith.constant 0 : i32
    return %c0_i32, %c0_i32_0 : i32, i32
  }
}

</mosaic_0001>

<llo_original>
// kernel: rlstm_forward.1
$region0: #{rlstm_forward.1}
  #allocation0 [shape = 'u32[]', space=smem, size = 0x4, offset = 0x4, fixed_abs, tag = 'smem constant byte address 0x4 - core index']
  #allocation1 [shape = 'u32[72,128]{1,0:T(1,128)}', space=vmem, size = 0x9000, scoped, tag = 'internal scratch']
  #allocation2 [shape = 'f32[2,64]{1,0:T(2,128)}', space=vmem, size = 0x400, scoped, tag = 'scratch operand']
  #allocation3 [shape = 'f32[2,64]{1,0:T(2,128)}', space=vmem, size = 0x400, scoped, tag = 'scratch operand']
  %s0 = inlined_call_operand.vmem [shape: f32[8,2,256], index: 0, kind: input, shape index: {}]
  %s1 = inlined_call_operand.vmem [shape: f32[64,256], index: 1, kind: input, shape index: {}]
  %s2 = inlined_call_operand.vmem [shape: f32[64,32], index: 2, kind: input, shape index: {}]
  %s3 = inlined_call_operand.vmem [shape: f32[1,32], index: 3, kind: input, shape index: {}]
  %s4 = inlined_call_operand.hbm [shape: f32[2,32], index: 4, kind: output, shape index: {}]
  %s5 = sld [smem:[#allocation0]]
  $region34: #{rlstm_forward.1} parent=0
    _
  %s7 = ssub.s32 1, %s5
  %s8 = scalar_select 0, %s7, %s5
  $region1: #{rlstm_forward.1} parent=0
    #allocation4 [shape = 'u8[1024]{0}', space=vmem, size = 0x400, scoped, tag = 'output window, operand 0, single buffered']
    #allocation5 [shape = 's32[1]{0}', space=sflag, size = 0x4, scoped, tag = 'scoped memory for rlstm_forward.1']
    %9 = vsyncpa [#allocation5], 0
    // Predicated region
    $region2: #{rlstm_forward.1} parent=1 // pred_check
      _
    $region3: #{rlstm_forward.1} parent=1 // pred_check_branch
      %11 = sbr.rel (0) target = $region5
    $region4: #{rlstm_forward.1} parent=1 // pred_region
      _
    $region5: #{rlstm_forward.1} parent=1 // pred_fallthru
      _
    // Predicated region
    $region6: #{rlstm_forward.1} parent=1 // pred_check
      _
    $region7: #{rlstm_forward.1} parent=1 // pred_check_branch
      %13 = sbr.rel (0) target = $region9
    $region8: #{rlstm_forward.1} parent=1 // pred_region
      _
    $region9: #{rlstm_forward.1} parent=1 // pred_fallthru
      _
    // Predicated region
    $region10: #{rlstm_forward.1} parent=1 // pred_check
      _
    $region11: #{rlstm_forward.1} parent=1 // pred_check_branch
      %15 = sbr.rel (0) target = $region13
    $region12: #{rlstm_forward.1} parent=1 // pred_region
      _
    $region13: #{rlstm_forward.1} parent=1 // pred_fallthru
      _
    // Predicated region
    $region14: #{rlstm_forward.1} parent=1 // pred_check
      _
    $region15: #{rlstm_forward.1} parent=1 // pred_check_branch
      %17 = sbr.rel (0) target = $region17
    $region16: #{rlstm_forward.1} parent=1 // pred_region
      _
    $region17: #{rlstm_forward.1} parent=1 // pred_fallthru
      _
    %p18 = scmp.eq.s32.totalorder 0, 0
    // Predicated region
    $region18: #{rlstm_forward.1} parent=1 // pred_check
      %p19 = pneg %p18
    $region19: #{rlstm_forward.1} parent=1 // pred_check_branch
      %21 = sbr.rel (%p19) target = $region21
    $region20: #{rlstm_forward.1} parent=1 // pred_region
      %vm22 = vcmask 517120
      %23 = vst.msk [vmem:[#allocation2] sm:$0x3] %vm22, 0.0
      %24 = vst.msk [vmem:[#allocation3] sm:$0x3] %vm22, 0.0
    $region21: #{rlstm_forward.1} parent=1 // pred_fallthru
      _
    %v25 = vld [vmem:[%s1] sm:$0xff]
    %v26 = vld [vmem:[%s1 + $0x8] sm:$0xff]
    %v27 = vld [vmem:[%s1 + $0x10] sm:$0xff]
    %v28 = vld [vmem:[%s1 + $0x18] sm:$0xff]
    %v29 = vld [vmem:[%s1 + $0x20] sm:$0xff]
    %v30 = vld [vmem:[%s1 + $0x28] sm:$0xff]
    %v31 = vld [vmem:[%s1 + $0x30] sm:$0xff]
    %v32 = vld [vmem:[%s1 + $0x38] sm:$0xff]
    %v33 = vld [vmem:[%s1 + $0x40] sm:$0xff]
    %v34 = vld [vmem:[%s1 + $0x48] sm:$0xff]
    %v35 = vld [vmem:[%s1 + $0x50] sm:$0xff]
    %v36 = vld [vmem:[%s1 + $0x58] sm:$0xff]
    %v37 = vld [vmem:[%s1 + $0x60] sm:$0xff]
    %v38 = vld [vmem:[%s1 + $0x68] sm:$0xff]
    %v39 = vld [vmem:[%s1 + $0x70] sm:$0xff]
    %v40 = vld [vmem:[%s1 + $0x78] sm:$0xff]
    %v41 = vlaneseq
    %v42 = vand.u32 %v41, 127
    %v43 = vadd.s32 %v42, 128
    %vm44 = vcmp.ge.s32.totalorder %v42, 128
    %vm45 = vcmp.ge.s32.totalorder %v43, 128
    %vm46 = vcmp.lt.s32.totalorder %v42, 192
    %vm47 = vcmp.lt.s32.totalorder %v43, 192
    %vm48 = vmand %vm44, %vm46
    %vm49 = vmand %vm45, %vm47
    %v50 = vld [vmem:[#allocation2] sm:$0x3]
    %v51 = vld [vmem:[#allocation3] sm:$0x3]
    %v52 = vld [vmem:[%s0] sm:$0xf]
    %vm53 = vcmask 523264
    %v55 = vsel %vm53, %v50, 0
    %57 = vmatpush.msra.mxu0 0.0
    %58 = vmatpush.msra.mxu0 0.0
    %59 = vmatpush.msra.mxu0 0.0
    %60 = vmatpush.msra.mxu0 0.0
    %61 = vmatpush.msra.mxu0 0.0
    %62 = vmatpush.msra.mxu0 0.0
    %63 = vmatpush.msra.mxu0 0.0
    %64 = vmatpush.msra.mxu0 0.0
    %v65 = vand.u32 %v39, 4294901760
    %66 = vmatpush.msra.mxu0 %v65
    %v67 = vand.u32 %v37, 4294901760
    %68 = vmatpush.msra.mxu0 %v67
    %v69 = vand.u32 %v35, 4294901760
    %70 = vmatpush.msra.mxu0 %v69
    %v71 = vand.u32 %v33, 4294901760
    %72 = vmatpush.msra.mxu0 %v71
    %v73 = vand.u32 %v31, 4294901760
    %74 = vmatpush.msra.mxu0 %v73
    %v75 = vand.u32 %v29, 4294901760
    %76 = vmatpush.msra.mxu0 %v75
    %v77 = vand.u32 %v27, 4294901760
    %78 = vmatpush.msra.mxu0 %v77
    %v79 = vand.u32 %v25, 4294901760
    %80 = vmatpush.msra.mxu0 %v79
    %v81 = vand.u32 %v55, 4294901760
    %v82 = vsub.f32 %v55, %v81
    %v83 = vand.u32 %v82, 4294901760
    %v84 = vsub.f32 %v82, %v83
    %v85 = vand.u32 %v84, 4294901760
    %86 = vmatmul.f32.gmra.mxu0 %v85
    %v87 = vpop.f32.mrf.mxu0
    %v88 = vadd.f32 0.0, %v87
    %89 = vdwg.mxu0
    %90 = vmatpush.msra.mxu0 0.0
    %91 = vmatpush.msra.mxu0 0.0
    %92 = vmatpush.msra.mxu0 0.0
    %93 = vmatpush.msra.mxu0 0.0
    %94 = vmatpush.msra.mxu0 0.0
    %95 = vmatpush.msra.mxu0 0.0
    %96 = vmatpush.msra.mxu0 0.0
    %97 = vmatpush.msra.mxu0 0.0
    %v98 = vand.u32 %v39, 4294901760
    %v99 = vsub.f32 %v39, %v98
    %v100 = vand.u32 %v99, 4294901760
    %v101 = vsub.f32 %v99, %v100
    %v102 = vand.u32 %v101, 4294901760
    %103 = vmatpush.msra.mxu0 %v102
    %v104 = vand.u32 %v37, 4294901760
    %v105 = vsub.f32 %v37, %v104
    %v106 = vand.u32 %v105, 4294901760
    %v107 = vsub.f32 %v105, %v106
    %v108 = vand.u32 %v107, 4294901760
    %109 = vmatpush.msra.mxu0 %v108
    %v110 = vand.u32 %v35, 4294901760
    %v111 = vsub.f32 %v35, %v110
    %v112 = vand.u32 %v111, 4294901760
    %v113 = vsub.f32 %v111, %v112
    %v114 = vand.u32 %v113, 4294901760
    %115 = vmatpush.msra.mxu0 %v114
    %v116 = vand.u32 %v33, 4294901760
    %v117 = vsub.f32 %v33, %v116
    %v118 = vand.u32 %v117, 4294901760
    %v119 = vsub.f32 %v117, %v118
    %v120 = vand.u32 %v119, 4294901760
    %121 = vmatpush.msra.mxu0 %v120
    %v122 = vand.u32 %v31, 4294901760
    %v123 = vsub.f32 %v31, %v122
    %v124 = vand.u32 %v123, 4294901760
    %v125 = vsub.f32 %v123, %v124
    %v126 = vand.u32 %v125, 4294901760
    %127 = vmatpush.msra.mxu0 %v126
    %v128 = vand.u32 %v29, 4294901760
    %v129 = vsub.f32 %v29, %v128
    %v130 = vand.u32 %v129, 4294901760
    %v131 = vsub.f32 %v129, %v130
    %v132 = vand.u32 %v131, 4294901760
    %133 = vmatpush.msra.mxu0 %v132
    %v134 = vand.u32 %v27, 4294901760
    %v135 = vsub.f32 %v27, %v134
    %v136 = vand.u32 %v135, 4294901760
    %v137 = vsub.f32 %v135, %v136
    %v138 = vand.u32 %v137, 4294901760
    %139 = vmatpush.msra.mxu0 %v138
    %v140 = vand.u32 %v25, 4294901760
    %v141 = vsub.f32 %v25, %v140
    %v142 = vand.u32 %v141, 4294901760
    %v143 = vsub.f32 %v141, %v142
    %v144 = vand.u32 %v143, 4294901760
    %145 = vmatpush.msra.mxu0 %v144
    %v146 = vand.u32 %v55, 4294901760
    %147 = vmatmul.f32.gmra.mxu0 %v146
    %v148 = vpop.f32.mrf.mxu0
    %v149 = vadd.f32 %v88, %v148
    %150 = vdwg.mxu0
    %151 = vmatpush.msra.mxu0 0.0
    %152 = vmatpush.msra.mxu0 0.0
    %153 = vmatpush.msra.mxu0 0.0
    %154 = vmatpush.msra.mxu0 0.0
    %155 = vmatpush.msra.mxu0 0.0
    %156 = vmatpush.msra.mxu0 0.0
    %157 = vmatpush.msra.mxu0 0.0
    %158 = vmatpush.msra.mxu0 0.0
    %v159 = vand.u32 %v39, 4294901760
    %v160 = vsub.f32 %v39, %v159
    %161 = vmatpush.msra.mxu0 %v160
    %v162 = vand.u32 %v37, 4294901760
    %v163 = vsub.f32 %v37, %v162
    %164 = vmatpush.msra.mxu0 %v163
    %v165 = vand.u32 %v35, 4294901760
    %v166 = vsub.f32 %v35, %v165
    %167 = vmatpush.msra.mxu0 %v166
    %v168 = vand.u32 %v33, 4294901760
    %v169 = vsub.f32 %v33, %v168
    %170 = vmatpush.msra.mxu0 %v169
    %v171 = vand.u32 %v31, 4294901760
    %v172 = vsub.f32 %v31, %v171
    %173 = vmatpush.msra.mxu0 %v172
    %v174 = vand.u32 %v29, 4294901760
    %v175 = vsub.f32 %v29, %v174
    %176 = vmatpush.msra.mxu0 %v175
    %v177 = vand.u32 %v27, 4294901760
    %v178 = vsub.f32 %v27, %v177
    %179 = vmatpush.msra.mxu0 %v178
    %v180 = vand.u32 %v25, 4294901760
    %v181 = vsub.f32 %v25, %v180
    %182 = vmatpush.msra.mxu0 %v181
    %v183 = vand.u32 %v55, 4294901760
    %v184 = vsub.f32 %v55, %v183
    %185 = vmatmul.f32.gmra.mxu0 %v184
    %v186 = vpop.f32.mrf.mxu0
    %v187 = vadd.f32 %v149, %v186
    %188 = vdwg.mxu0
    %189 = vmatpush.msra.mxu0 0.0
    %190 = vmatpush.msra.mxu0 0.0
    %191 = vmatpush.msra.mxu0 0.0
    %192 = vmatpush.msra.mxu0 0.0
    %193 = vmatpush.msra.mxu0 0.0
    %194 = vmatpush.msra.mxu0 0.0
    %195 = vmatpush.msra.mxu0 0.0
    %196 = vmatpush.msra.mxu0 0.0
    %v197 = vand.u32 %v39, 4294901760
    %198 = vmatpush.msra.mxu0 %v197
    %v199 = vand.u32 %v37, 4294901760
    %200 = vmatpush.msra.mxu0 %v199
    %v201 = vand.u32 %v35, 4294901760
    %202 = vmatpush.msra.mxu0 %v201
    %v203 = vand.u32 %v33, 4294901760
    %204 = vmatpush.msra.mxu0 %v203
    %v205 = vand.u32 %v31, 4294901760
    %206 = vmatpush.msra.mxu0 %v205
    %v207 = vand.u32 %v29, 4294901760
    %208 = vmatpush.msra.mxu0 %v207
    %v209 = vand.u32 %v27, 4294901760
    %210 = vmatpush.msra.mxu0 %v209
    %v211 = vand.u32 %v25, 4294901760
    %212 = vmatpush.msra.mxu0 %v211
    %v213 = vand.u32 %v55, 4294901760
    %v214 = vsub.f32 %v55, %v213
    %v215 = vand.u32 %v214, 4294901760
    %216 = vmatmul.f32.gmra.mxu0 %v215
    %v217 = vpop.f32.mrf.mxu0
    %v218 = vadd.f32 %v187, %v217
    %219 = vdwg.mxu0
    %220 = vmatpush.msra.mxu0 0.0
    %221 = vmatpush.msra.mxu0 0.0
    %222 = vmatpush.msra.mxu0 0.0
    %223 = vmatpush.msra.mxu0 0.0
    %224 = vmatpush.msra.mxu0 0.0
    %225 = vmatpush.msra.mxu0 0.0
    %226 = vmatpush.msra.mxu0 0.0
    %227 = vmatpush.msra.mxu0 0.0
    %v228 = vand.u32 %v39, 4294901760
    %v229 = vsub.f32 %v39, %v228
    %v230 = vand.u32 %v229, 4294901760
    %231 = vmatpush.msra.mxu0 %v230
    %v232 = vand.u32 %v37, 4294901760
    %v233 = vsub.f32 %v37, %v232
    %v234 = vand.u32 %v233, 4294901760
    %235 = vmatpush.msra.mxu0 %v234
    %v236 = vand.u32 %v35, 4294901760
    %v237 = vsub.f32 %v35, %v236
    %v238 = vand.u32 %v237, 4294901760
    %239 = vmatpush.msra.mxu0 %v238
    %v240 = vand.u32 %v33, 4294901760
    %v241 = vsub.f32 %v33, %v240
    %v242 = vand.u32 %v241, 4294901760
    %243 = vmatpush.msra.mxu0 %v242
    %v244 = vand.u32 %v31, 4294901760
    %v245 = vsub.f32 %v31, %v244
    %v246 = vand.u32 %v245, 4294901760
    %247 = vmatpush.msra.mxu0 %v246
    %v248 = vand.u32 %v29, 4294901760
    %v249 = vsub.f32 %v29, %v248
    %v250 = vand.u32 %v249, 4294901760
    %251 = vmatpush.msra.mxu0 %v250
    %v252 = vand.u32 %v27, 4294901760
    %v253 = vsub.f32 %v27, %v252
    %v254 = vand.u32 %v253, 4294901760
    %255 = vmatpush.msra.mxu0 %v254
    %v256 = vand.u32 %v25, 4294901760
    %v257 = vsub.f32 %v25, %v256
    %v258 = vand.u32 %v257, 4294901760
    %259 = vmatpush.msra.mxu0 %v258
    %v260 = vand.u32 %v55, 4294901760
    %261 = vmatmul.f32.gmra.mxu0 %v260
    %v262 = vpop.f32.mrf.mxu0
    %v263 = vadd.f32 %v218, %v262
    %264 = vdwg.mxu0
    %265 = vmatpush.msra.mxu0 0.0
    %266 = vmatpush.msra.mxu0 0.0
    %267 = vmatpush.msra.mxu0 0.0
    %268 = vmatpush.msra.mxu0 0.0
    %269 = vmatpush.msra.mxu0 0.0
    %270 = vmatpush.msra.mxu0 0.0
    %271 = vmatpush.msra.mxu0 0.0
    %272 = vmatpush.msra.mxu0 0.0
    %v273 = vand.u32 %v39, 4294901760
    %274 = vmatpush.msra.mxu0 %v273
    %v275 = vand.u32 %v37, 4294901760
    %276 = vmatpush.msra.mxu0 %v275
    %v277 = vand.u32 %v35, 4294901760
    %278 = vmatpush.msra.mxu0 %v277
    %v279 = vand.u32 %v33, 4294901760
    %280 = vmatpush.msra.mxu0 %v279
    %v281 = vand.u32 %v31, 4294901760
    %282 = vmatpush.msra.mxu0 %v281
    %v283 = vand.u32 %v29, 4294901760
    %284 = vmatpush.msra.mxu0 %v283
    %v285 = vand.u32 %v27, 4294901760
    %286 = vmatpush.msra.mxu0 %v285
    %v287 = vand.u32 %v25, 4294901760
    %288 = vmatpush.msra.mxu0 %v287
    %v289 = vand.u32 %v55, 4294901760
    %290 = vmatmul.f32.gmra.mxu0 %v289
    %v291 = vpop.f32.mrf.mxu0
    %v292 = vadd.f32 %v263, %v291
    %293 = vdwg.mxu0
    %294 = vmatpush.msra.mxu0 0.0
    %295 = vmatpush.msra.mxu0 0.0
    %296 = vmatpush.msra.mxu0 0.0
    %297 = vmatpush.msra.mxu0 0.0
    %298 = vmatpush.msra.mxu0 0.0
    %299 = vmatpush.msra.mxu0 0.0
    %300 = vmatpush.msra.mxu0 0.0
    %301 = vmatpush.msra.mxu0 0.0
    %v302 = vand.u32 %v40, 4294901760
    %303 = vmatpush.msra.mxu0 %v302
    %v304 = vand.u32 %v38, 4294901760
    %305 = vmatpush.msra.mxu0 %v304
    %v306 = vand.u32 %v36, 4294901760
    %307 = vmatpush.msra.mxu0 %v306
    %v308 = vand.u32 %v34, 4294901760
    %309 = vmatpush.msra.mxu0 %v308
    %v310 = vand.u32 %v32, 4294901760
    %311 = vmatpush.msra.mxu0 %v310
    %v312 = vand.u32 %v30, 4294901760
    %313 = vmatpush.msra.mxu0 %v312
    %v314 = vand.u32 %v28, 4294901760
    %315 = vmatpush.msra.mxu0 %v314
    %v316 = vand.u32 %v26, 4294901760
    %317 = vmatpush.msra.mxu0 %v316
    %v318 = vand.u32 %v55, 4294901760
    %v319 = vsub.f32 %v55, %v318
    %v320 = vand.u32 %v319, 4294901760
    %v321 = vsub.f32 %v319, %v320
    %v322 = vand.u32 %v321, 4294901760
    %323 = vmatmul.f32.gmra.mxu0 %v322
    %v324 = vpop.f32.mrf.mxu0
    %v325 = vadd.f32 0.0, %v324
    %326 = vdwg.mxu0
    %327 = vmatpush.msra.mxu0 0.0
    %328 = vmatpush.msra.mxu0 0.0
    %329 = vmatpush.msra.mxu0 0.0
    %330 = vmatpush.msra.mxu0 0.0
    %331 = vmatpush.msra.mxu0 0.0
    %332 = vmatpush.msra.mxu0 0.0
    %333 = vmatpush.msra.mxu0 0.0
    %334 = vmatpush.msra.mxu0 0.0
    %v335 = vand.u32 %v40, 4294901760
    %v336 = vsub.f32 %v40, %v335
    %v337 = vand.u32 %v336, 4294901760
    %v338 = vsub.f32 %v336, %v337
    %v339 = vand.u32 %v338, 4294901760
    %340 = vmatpush.msra.mxu0 %v339
    %v341 = vand.u32 %v38, 4294901760
    %v342 = vsub.f32 %v38, %v341
    %v343 = vand.u32 %v342, 4294901760
    %v344 = vsub.f32 %v342, %v343
    %v345 = vand.u32 %v344, 4294901760
    %346 = vmatpush.msra.mxu0 %v345
    %v347 = vand.u32 %v36, 4294901760
    %v348 = vsub.f32 %v36, %v347
    %v349 = vand.u32 %v348, 4294901760
    %v350 = vsub.f32 %v348, %v349
    %v351 = vand.u32 %v350, 4294901760
    %352 = vmatpush.msra.mxu0 %v351
    %v353 = vand.u32 %v34, 4294901760
    %v354 = vsub.f32 %v34, %v353
    %v355 = vand.u32 %v354, 4294901760
    %v356 = vsub.f32 %v354, %v355
    %v357 = vand.u32 %v356, 4294901760
    %358 = vmatpush.msra.mxu0 %v357
    %v359 = vand.u32 %v32, 4294901760
    %v360 = vsub.f32 %v32, %v359
    %v361 = vand.u32 %v360, 4294901760
    %v362 = vsub.f32 %v360, %v361
    %v363 = vand.u32 %v362, 4294901760
    %364 = vmatpush.msra.mxu0 %v363
    %v365 = vand.u32 %v30, 4294901760
    %v366 = vsub.f32 %v30, %v365
    %v367 = vand.u32 %v366, 4294901760
    %v368 = vsub.f32 %v366, %v367
    %v369 = vand.u32 %v368, 4294901760
    %370 = vmatpush.msra.mxu0 %v369
    %v371 = vand.u32 %v28, 4294901760
    %v372 = vsub.f32 %v28, %v371
    %v373 = vand.u32 %v372, 4294901760
    %v374 = vsub.f32 %v372, %v373
    %v375 = vand.u32 %v374, 4294901760
    %376 = vmatpush.msra.mxu0 %v375
    %v377 = vand.u32 %v26, 4294901760
    %v378 = vsub.f32 %v26, %v377
    %v379 = vand.u32 %v378, 4294901760
    %v380 = vsub.f32 %v378, %v379
    %v381 = vand.u32 %v380, 4294901760
    %382 = vmatpush.msra.mxu0 %v381
    %v383 = vand.u32 %v55, 4294901760
    %384 = vmatmul.f32.gmra.mxu0 %v383
    %v385 = vpop.f32.mrf.mxu0
    %v386 = vadd.f32 %v325, %v385
    %387 = vdwg.mxu0
    %388 = vmatpush.msra.mxu0 0.0
    %389 = vmatpush.msra.mxu0 0.0
    %390 = vmatpush.msra.mxu0 0.0
    %391 = vmatpush.msra.mxu0 0.0
    %392 = vmatpush.msra.mxu0 0.0
    %393 = vmatpush.msra.mxu0 0.0
    %394 = vmatpush.msra.mxu0 0.0
    %395 = vmatpush.msra.mxu0 0.0
    %v396 = vand.u32 %v40, 4294901760
    %v397 = vsub.f32 %v40, %v396
    %398 = vmatpush.msra.mxu0 %v397
    %v399 = vand.u32 %v38, 4294901760
    %v400 = vsub.f32 %v38, %v399
    %401 = vmatpush.msra.mxu0 %v400
    %v402 = vand.u32 %v36, 4294901760
    %v403 = vsub.f32 %v36, %v402
    %404 = vmatpush.msra.mxu0 %v403
    %v405 = vand.u32 %v34, 4294901760
    %v406 = vsub.f32 %v34, %v405
    %407 = vmatpush.msra.mxu0 %v406
    %v408 = vand.u32 %v32, 4294901760
    %v409 = vsub.f32 %v32, %v408
    %410 = vmatpush.msra.mxu0 %v409
    %v411 = vand.u32 %v30, 4294901760
    %v412 = vsub.f32 %v30, %v411
    %413 = vmatpush.msra.mxu0 %v412
    %v414 = vand.u32 %v28, 4294901760
    %v415 = vsub.f32 %v28, %v414
    %416 = vmatpush.msra.mxu0 %v415
    %v417 = vand.u32 %v26, 4294901760
    %v418 = vsub.f32 %v26, %v417
    %419 = vmatpush.msra.mxu0 %v418
    %v420 = vand.u32 %v55, 4294901760
    %v421 = vsub.f32 %v55, %v420
    %422 = vmatmul.f32.gmra.mxu0 %v421
    %v423 = vpop.f32.mrf.mxu0
    %v424 = vadd.f32 %v386, %v423
    %425 = vdwg.mxu0
    %426 = vmatpush.msra.mxu0 0.0
    %427 = vmatpush.msra.mxu0 0.0
    %428 = vmatpush.msra.mxu0 0.0
    %429 = vmatpush.msra.mxu0 0.0
    %430 = vmatpush.msra.mxu0 0.0
    %431 = vmatpush.msra.mxu0 0.0
    %432 = vmatpush.msra.mxu0 0.0
    %433 = vmatpush.msra.mxu0 0.0
    %v434 = vand.u32 %v40, 4294901760
    %435 = vmatpush.msra.mxu0 %v434
    %v436 = vand.u32 %v38, 4294901760
    %437 = vmatpush.msra.mxu0 %v436
    %v438 = vand.u32 %v36, 4294901760
    %439 = vmatpush.msra.mxu0 %v438
    %v440 = vand.u32 %v34, 4294901760
    %441 = vmatpush.msra.mxu0 %v440
    %v442 = vand.u32 %v32, 4294901760
    %443 = vmatpush.msra.mxu0 %v442
    %v444 = vand.u32 %v30, 4294901760
    %445 = vmatpush.msra.mxu0 %v444
    %v446 = vand.u32 %v28, 4294901760
    %447 = vmatpush.msra.mxu0 %v446
    %v448 = vand.u32 %v26, 4294901760
    %449 = vmatpush.msra.mxu0 %v448
    %v450 = vand.u32 %v55, 4294901760
    %v451 = vsub.f32 %v55, %v450
    %v452 = vand.u32 %v451, 4294901760
    %453 = vmatmul.f32.gmra.mxu0 %v452
    %v454 = vpop.f32.mrf.mxu0
    %v455 = vadd.f32 %v424, %v454
    %456 = vdwg.mxu0
    %457 = vmatpush.msra.mxu0 0.0
    %458 = vmatpush.msra.mxu0 0.0
    %459 = vmatpush.msra.mxu0 0.0
    %460 = vmatpush.msra.mxu0 0.0
    %461 = vmatpush.msra.mxu0 0.0
    %462 = vmatpush.msra.mxu0 0.0
    %463 = vmatpush.msra.mxu0 0.0
    %464 = vmatpush.msra.mxu0 0.0
    %v465 = vand.u32 %v40, 4294901760
    %v466 = vsub.f32 %v40, %v465
    %v467 = vand.u32 %v466, 4294901760
    %468 = vmatpush.msra.mxu0 %v467
    %v469 = vand.u32 %v38, 4294901760
    %v470 = vsub.f32 %v38, %v469
    %v471 = vand.u32 %v470, 4294901760
    %472 = vmatpush.msra.mxu0 %v471
    %v473 = vand.u32 %v36, 4294901760
    %v474 = vsub.f32 %v36, %v473
    %v475 = vand.u32 %v474, 4294901760
    %476 = vmatpush.msra.mxu0 %v475
    %v477 = vand.u32 %v34, 4294901760
    %v478 = vsub.f32 %v34, %v477
    %v479 = vand.u32 %v478, 4294901760
    %480 = vmatpush.msra.mxu0 %v479
    %v481 = vand.u32 %v32, 4294901760
    %v482 = vsub.f32 %v32, %v481
    %v483 = vand.u32 %v482, 4294901760
    %484 = vmatpush.msra.mxu0 %v483
    %v485 = vand.u32 %v30, 4294901760
    %v486 = vsub.f32 %v30, %v485
    %v487 = vand.u32 %v486, 4294901760
    %488 = vmatpush.msra.mxu0 %v487
    %v489 = vand.u32 %v28, 4294901760
    %v490 = vsub.f32 %v28, %v489
    %v491 = vand.u32 %v490, 4294901760
    %492 = vmatpush.msra.mxu0 %v491
    %v493 = vand.u32 %v26, 4294901760
    %v494 = vsub.f32 %v26, %v493
    %v495 = vand.u32 %v494, 4294901760
    %496 = vmatpush.msra.mxu0 %v495
    %v497 = vand.u32 %v55, 4294901760
    %498 = vmatmul.f32.gmra.mxu0 %v497
    %v499 = vpop.f32.mrf.mxu0
    %v500 = vadd.f32 %v455, %v499
    %501 = vdwg.mxu0
    %502 = vmatpush.msra.mxu0 0.0
    %503 = vmatpush.msra.mxu0 0.0
    %504 = vmatpush.msra.mxu0 0.0
    %505 = vmatpush.msra.mxu0 0.0
    %506 = vmatpush.msra.mxu0 0.0
    %507 = vmatpush.msra.mxu0 0.0
    %508 = vmatpush.msra.mxu0 0.0
    %509 = vmatpush.msra.mxu0 0.0
    %v510 = vand.u32 %v40, 4294901760
    %511 = vmatpush.msra.mxu0 %v510
    %v512 = vand.u32 %v38, 4294901760
    %513 = vmatpush.msra.mxu0 %v512
    %v514 = vand.u32 %v36, 4294901760
    %515 = vmatpush.msra.mxu0 %v514
    %v516 = vand.u32 %v34, 4294901760
    %517 = vmatpush.msra.mxu0 %v516
    %v518 = vand.u32 %v32, 4294901760
    %519 = vmatpush.msra.mxu0 %v518
    %v520 = vand.u32 %v30, 4294901760
    %521 = vmatpush.msra.mxu0 %v520
    %v522 = vand.u32 %v28, 4294901760
    %523 = vmatpush.msra.mxu0 %v522
    %v524 = vand.u32 %v26, 4294901760
    %525 = vmatpush.msra.mxu0 %v524
    %v526 = vand.u32 %v55, 4294901760
    %527 = vmatmul.f32.gmra.mxu0 %v526
    %v528 = vpop.f32.mrf.mxu0
    %v529 = vadd.f32 %v500, %v528
    %530 = vdwg.mxu0
    %v533 = vrot.slane %v529, 6
    %vm534 = vcmask 1041408
    %v535 = vsel %vm534, %v292, %v533
    %v537 = vadd.f32 %v52, %v535
    %v538 = vmul.f32 %v537, 0.5
    %540 = vst [vmem:[#allocation1] ss:$4 sm:$0xff] %v537
    %v541 = vld.sshfl [vmem:[#allocation1] sm:$0xff pattern:$0x73625140]
    %v542 = vld.sshfl [vmem:[#allocation1 + $0x8] sm:$0xff pattern:$0x73625140]
    %546 = vst [vmem:[#allocation1] ss:$4 sm:$0xff] %v538
    %v547 = vld.sshfl [vmem:[#allocation1] sm:$0xff pattern:$0x73625140]
    %v548 = vld.sshfl [vmem:[#allocation1 + $0x8] sm:$0xff pattern:$0x73625140]
    %v551 = vsel %vm48, %v541, %v547
    %v552 = vsel %vm49, %v542, %v548
    %v553 = vtanh.pop %v551
    %v554 = vtanh.pop %v552
    %v555 = vmul.f32 %v553, 0.5
    %v556 = vmul.f32 %v554, 0.5
    %v557 = vadd.f32 %v555, 0.5
    %v558 = vadd.f32 %v556, 0.5
    %v559 = vsel %vm48, %v553, %v557
    %v560 = vsel %vm49, %v554, %v558
    %562 = vrot.lane.b32.xlu0 %v51, 64
    %v563 = vpop.permute.xlu0 %562
    %v565 = vmul.f32 %v559, %v563
    %v566 = vmul.f32 %v559, %v560
    %568 = vrot.lane.b32.xlu0 %v566, 64
    %v569 = vpop.permute.xlu0 %568
    %v571 = vadd.f32 %v565, %v569
    %v572 = vtanh.pop %v571
    %v573 = vmul.f32 %v560, %v572
    %s574 = scalar_lea.vmem %s0, 4
    %v575 = vld [vmem:[%s574] sm:$0xf]
    %577 = vrot.lane.b32.xlu0 %v573, 64
    %v578 = vpop.permute.xlu0 %577
    %v579 = vsel %vm53, %v578, 0
    %581 = vmatpush.msra.mxu0 0.0
    %582 = vmatpush.msra.mxu0 0.0
    %583 = vmatpush.msra.mxu0 0.0
    %584 = vmatpush.msra.mxu0 0.0
    %585 = vmatpush.msra.mxu0 0.0
    %586 = vmatpush.msra.mxu0 0.0
    %587 = vmatpush.msra.mxu0 0.0
    %588 = vmatpush.msra.mxu0 0.0
    %v589 = vand.u32 %v39, 4294901760
    %590 = vmatpush.msra.mxu0 %v589
    %v591 = vand.u32 %v37, 4294901760
    %592 = vmatpush.msra.mxu0 %v591
    %v593 = vand.u32 %v35, 4294901760
    %594 = vmatpush.msra.mxu0 %v593
    %v595 = vand.u32 %v33, 4294901760
    %596 = vmatpush.msra.mxu0 %v595
    %v597 = vand.u32 %v31, 4294901760
    %598 = vmatpush.msra.mxu0 %v597
    %v599 = vand.u32 %v29, 4294901760
    %600 = vmatpush.msra.mxu0 %v599
    %v601 = vand.u32 %v27, 4294901760
    %602 = vmatpush.msra.mxu0 %v601
    %v603 = vand.u32 %v25, 4294901760
    %604 = vmatpush.msra.mxu0 %v603
    %v605 = vand.u32 %v579, 4294901760
    %v606 = vsub.f32 %v579, %v605
    %v607 = vand.u32 %v606, 4294901760
    %v608 = vsub.f32 %v606, %v607
    %v609 = vand.u32 %v608, 4294901760
    %610 = vmatmul.f32.gmra.mxu0 %v609
    %v611 = vpop.f32.mrf.mxu0
    %v612 = vadd.f32 0.0, %v611
    %613 = vdwg.mxu0
    %614 = vmatpush.msra.mxu0 0.0
    %615 = vmatpush.msra.mxu0 0.0
    %616 = vmatpush.msra.mxu0 0.0
    %617 = vmatpush.msra.mxu0 0.0
    %618 = vmatpush.msra.mxu0 0.0
    %619 = vmatpush.msra.mxu0 0.0
    %620 = vmatpush.msra.mxu0 0.0
    %621 = vmatpush.msra.mxu0 0.0
    %v622 = vand.u32 %v39, 4294901760
    %v623 = vsub.f32 %v39, %v622
    %v624 = vand.u32 %v623, 4294901760
    %v625 = vsub.f32 %v623, %v624
    %v626 = vand.u32 %v625, 4294901760
    %627 = vmatpush.msra.mxu0 %v626
    %v628 = vand.u32 %v37, 4294901760
    %v629 = vsub.f32 %v37, %v628
    %v630 = vand.u32 %v629, 4294901760
    %v631 = vsub.f32 %v629, %v630
    %v632 = vand.u32 %v631, 4294901760
    %633 = vmatpush.msra.mxu0 %v632
    %v634 = vand.u32 %v35, 4294901760
    %v635 = vsub.f32 %v35, %v634
    %v636 = vand.u32 %v635, 4294901760
    %v637 = vsub.f32 %v635, %v636
    %v638 = vand.u32 %v637, 4294901760
    %639 = vmatpush.msra.mxu0 %v638
    %v640 = vand.u32 %v33, 4294901760
    %v641 = vsub.f32 %v33, %v640
    %v642 = vand.u32 %v641, 4294901760
    %v643 = vsub.f32 %v641, %v642
    %v644 = vand.u32 %v643, 4294901760
    %645 = vmatpush.msra.mxu0 %v644
    %v646 = vand.u32 %v31, 4294901760
    %v647 = vsub.f32 %v31, %v646
    %v648 = vand.u32 %v647, 4294901760
    %v649 = vsub.f32 %v647, %v648
    %v650 = vand.u32 %v649, 4294901760
    %651 = vmatpush.msra.mxu0 %v650
    %v652 = vand.u32 %v29, 4294901760
    %v653 = vsub.f32 %v29, %v652
    %v654 = vand.u32 %v653, 4294901760
    %v655 = vsub.f32 %v653, %v654
    %v656 = vand.u32 %v655, 4294901760
    %657 = vmatpush.msra.mxu0 %v656
    %v658 = vand.u32 %v27, 4294901760
    %v659 = vsub.f32 %v27, %v658
    %v660 = vand.u32 %v659, 4294901760
    %v661 = vsub.f32 %v659, %v660
    %v662 = vand.u32 %v661, 4294901760
    %663 = vmatpush.msra.mxu0 %v662
    %v664 = vand.u32 %v25, 4294901760
    %v665 = vsub.f32 %v25, %v664
    %v666 = vand.u32 %v665, 4294901760
    %v667 = vsub.f32 %v665, %v666
    %v668 = vand.u32 %v667, 4294901760
    %669 = vmatpush.msra.mxu0 %v668
    %v670 = vand.u32 %v579, 4294901760
    %671 = vmatmul.f32.gmra.mxu0 %v670
    %v672 = vpop.f32.mrf.mxu0
    %v673 = vadd.f32 %v612, %v672
    %674 = vdwg.mxu0
    %675 = vmatpush.msra.mxu0 0.0
    %676 = vmatpush.msra.mxu0 0.0
    %677 = vmatpush.msra.mxu0 0.0
    %678 = vmatpush.msra.mxu0 0.0
    %679 = vmatpush.msra.mxu0 0.0
    %680 = vmatpush.msra.mxu0 0.0
    %681 = vmatpush.msra.mxu0 0.0
    %682 = vmatpush.msra.mxu0 0.0
    %v683 = vand.u32 %v39, 4294901760
    %v684 = vsub.f32 %v39, %v683
    %685 = vmatpush.msra.mxu0 %v684
    %v686 = vand.u32 %v37, 4294901760
    %v687 = vsub.f32 %v37, %v686
    %688 = vmatpush.msra.mxu0 %v687
    %v689 = vand.u32 %v35, 4294901760
    %v690 = vsub.f32 %v35, %v689
    %691 = vmatpush.msra.mxu0 %v690
    %v692 = vand.u32 %v33, 4294901760
    %v693 = vsub.f32 %v33, %v692
    %694 = vmatpush.msra.mxu0 %v693
    %v695 = vand.u32 %v31, 4294901760
    %v696 = vsub.f32 %v31, %v695
    %697 = vmatpush.msra.mxu0 %v696
    %v698 = vand.u32 %v29, 4294901760
    %v699 = vsub.f32 %v29, %v698
    %700 = vmatpush.msra.mxu0 %v699
    %v701 = vand.u32 %v27, 4294901760
    %v702 = vsub.f32 %v27, %v701
    %703 = vmatpush.msra.mxu0 %v702
    %v704 = vand.u32 %v25, 4294901760
    %v705 = vsub.f32 %v25, %v704
    %706 = vmatpush.msra.mxu0 %v705
    %v707 = vand.u32 %v579, 4294901760
    %v708 = vsub.f32 %v579, %v707
    %709 = vmatmul.f32.gmra.mxu0 %v708
    %v710 = vpop.f32.mrf.mxu0
    %v711 = vadd.f32 %v673, %v710
    %712 = vdwg.mxu0
    %713 = vmatpush.msra.mxu0 0.0
    %714 = vmatpush.msra.mxu0 0.0
    %715 = vmatpush.msra.mxu0 0.0
    %716 = vmatpush.msra.mxu0 0.0
    %717 = vmatpush.msra.mxu0 0.0
    %718 = vmatpush.msra.mxu0 0.0
    %719 = vmatpush.msra.mxu0 0.0
    %720 = vmatpush.msra.mxu0 0.0
    %v721 = vand.u32 %v39, 4294901760
    %722 = vmatpush.msra.mxu0 %v721
    %v723 = vand.u32 %v37, 4294901760
    %724 = vmatpush.msra.mxu0 %v723
    %v725 = vand.u32 %v35, 4294901760
    %726 = vmatpush.msra.mxu0 %v725
    %v727 = vand.u32 %v33, 4294901760
    %728 = vmatpush.msra.mxu0 %v727
    %v729 = vand.u32 %v31, 4294901760
    %730 = vmatpush.msra.mxu0 %v729
    %v731 = vand.u32 %v29, 4294901760
    %732 = vmatpush.msra.mxu0 %v731
    %v733 = vand.u32 %v27, 4294901760
    %734 = vmatpush.msra.mxu0 %v733
    %v735 = vand.u32 %v25, 4294901760
    %736 = vmatpush.msra.mxu0 %v735
    %v737 = vand.u32 %v579, 4294901760
    %v738 = vsub.f32 %v579, %v737
    %v739 = vand.u32 %v738, 4294901760
    %740 = vmatmul.f32.gmra.mxu0 %v739
    %v741 = vpop.f32.mrf.mxu0
    %v742 = vadd.f32 %v711, %v741
    %743 = vdwg.mxu0
    %744 = vmatpush.msra.mxu0 0.0
    %745 = vmatpush.msra.mxu0 0.0
    %746 = vmatpush.msra.mxu0 0.0
    %747 = vmatpush.msra.mxu0 0.0
    %748 = vmatpush.msra.mxu0 0.0
    %749 = vmatpush.msra.mxu0 0.0
    %750 = vmatpush.msra.mxu0 0.0
    %751 = vmatpush.msra.mxu0 0.0
    %v752 = vand.u32 %v39, 4294901760
    %v753 = vsub.f32 %v39, %v752
    %v754 = vand.u32 %v753, 4294901760
    %755 = vmatpush.msra.mxu0 %v754
    %v756 = vand.u32 %v37, 4294901760
    %v757 = vsub.f32 %v37, %v756
    %v758 = vand.u32 %v757, 4294901760
    %759 = vmatpush.msra.mxu0 %v758
    %v760 = vand.u32 %v35, 4294901760
    %v761 = vsub.f32 %v35, %v760
    %v762 = vand.u32 %v761, 4294901760
    %763 = vmatpush.msra.mxu0 %v762
    %v764 = vand.u32 %v33, 4294901760
    %v765 = vsub.f32 %v33, %v764
    %v766 = vand.u32 %v765, 4294901760
    %767 = vmatpush.msra.mxu0 %v766
    %v768 = vand.u32 %v31, 4294901760
    %v769 = vsub.f32 %v31, %v768
    %v770 = vand.u32 %v769, 4294901760
    %771 = vmatpush.msra.mxu0 %v770
    %v772 = vand.u32 %v29, 4294901760
    %v773 = vsub.f32 %v29, %v772
    %v774 = vand.u32 %v773, 4294901760
    %775 = vmatpush.msra.mxu0 %v774
    %v776 = vand.u32 %v27, 4294901760
    %v777 = vsub.f32 %v27, %v776
    %v778 = vand.u32 %v777, 4294901760
    %779 = vmatpush.msra.mxu0 %v778
    %v780 = vand.u32 %v25, 4294901760
    %v781 = vsub.f32 %v25, %v780
    %v782 = vand.u32 %v781, 4294901760
    %783 = vmatpush.msra.mxu0 %v782
    %v784 = vand.u32 %v579, 4294901760
    %785 = vmatmul.f32.gmra.mxu0 %v784
    %v786 = vpop.f32.mrf.mxu0
    %v787 = vadd.f32 %v742, %v786
    %788 = vdwg.mxu0
    %789 = vmatpush.msra.mxu0 0.0
    %790 = vmatpush.msra.mxu0 0.0
    %791 = vmatpush.msra.mxu0 0.0
    %792 = vmatpush.msra.mxu0 0.0
    %793 = vmatpush.msra.mxu0 0.0
    %794 = vmatpush.msra.mxu0 0.0
    %795 = vmatpush.msra.mxu0 0.0
    %796 = vmatpush.msra.mxu0 0.0
    %v797 = vand.u32 %v39, 4294901760
    %798 = vmatpush.msra.mxu0 %v797
    %v799 = vand.u32 %v37, 4294901760
    %800 = vmatpush.msra.mxu0 %v799
    %v801 = vand.u32 %v35, 4294901760
    %802 = vmatpush.msra.mxu0 %v801
    %v803 = vand.u32 %v33, 4294901760
    %804 = vmatpush.msra.mxu0 %v803
    %v805 = vand.u32 %v31, 4294901760
    %806 = vmatpush.msra.mxu0 %v805
    %v807 = vand.u32 %v29, 4294901760
    %808 = vmatpush.msra.mxu0 %v807
    %v809 = vand.u32 %v27, 4294901760
    %810 = vmatpush.msra.mxu0 %v809
    %v811 = vand.u32 %v25, 4294901760
    %812 = vmatpush.msra.mxu0 %v811
    %v813 = vand.u32 %v579, 4294901760
    %814 = vmatmul.f32.gmra.mxu0 %v813
    %v815 = vpop.f32.mrf.mxu0
    %v816 = vadd.f32 %v787, %v815
    %817 = vdwg.mxu0
    %818 = vmatpush.msra.mxu0 0.0
    %819 = vmatpush.msra.mxu0 0.0
    %820 = vmatpush.msra.mxu0 0.0
    %821 = vmatpush.msra.mxu0 0.0
    %822 = vmatpush.msra.mxu0 0.0
    %823 = vmatpush.msra.mxu0 0.0
    %824 = vmatpush.msra.mxu0 0.0
    %825 = vmatpush.msra.mxu0 0.0
    %v826 = vand.u32 %v40, 4294901760
    %827 = vmatpush.msra.mxu0 %v826
    %v828 = vand.u32 %v38, 4294901760
    %829 = vmatpush.msra.mxu0 %v828
    %v830 = vand.u32 %v36, 4294901760
    %831 = vmatpush.msra.mxu0 %v830
    %v832 = vand.u32 %v34, 4294901760
    %833 = vmatpush.msra.mxu0 %v832
    %v834 = vand.u32 %v32, 4294901760
    %835 = vmatpush.msra.mxu0 %v834
    %v836 = vand.u32 %v30, 4294901760
    %837 = vmatpush.msra.mxu0 %v836
    %v838 = vand.u32 %v28, 4294901760
    %839 = vmatpush.msra.mxu0 %v838
    %v840 = vand.u32 %v26, 4294901760
    %841 = vmatpush.msra.mxu0 %v840
    %v842 = vand.u32 %v579, 4294901760
    %v843 = vsub.f32 %v579, %v842
    %v844 = vand.u32 %v843, 4294901760
    %v845 = vsub.f32 %v843, %v844
    %v846 = vand.u32 %v845, 4294901760
    %847 = vmatmul.f32.gmra.mxu0 %v846
    %v848 = vpop.f32.mrf.mxu0
    %v849 = vadd.f32 0.0, %v848
    %850 = vdwg.mxu0
    %851 = vmatpush.msra.mxu0 0.0
    %852 = vmatpush.msra.mxu0 0.0
    %853 = vmatpush.msra.mxu0 0.0
    %854 = vmatpush.msra.mxu0 0.0
    %855 = vmatpush.msra.mxu0 0.0
    %856 = vmatpush.msra.mxu0 0.0
    %857 = vmatpush.msra.mxu0 0.0
    %858 = vmatpush.msra.mxu0 0.0
    %v859 = vand.u32 %v40, 4294901760
    %v860 = vsub.f32 %v40, %v859
    %v861 = vand.u32 %v860, 4294901760
    %v862 = vsub.f32 %v860, %v861
    %v863 = vand.u32 %v862, 4294901760
    %864 = vmatpush.msra.mxu0 %v863
    %v865 = vand.u32 %v38, 4294901760
    %v866 = vsub.f32 %v38, %v865
    %v867 = vand.u32 %v866, 4294901760
    %v868 = vsub.f32 %v866, %v867
    %v869 = vand.u32 %v868, 4294901760
    %870 = vmatpush.msra.mxu0 %v869
    %v871 = vand.u32 %v36, 4294901760
    %v872 = vsub.f32 %v36, %v871
    %v873 = vand.u32 %v872, 4294901760
    %v874 = vsub.f32 %v872, %v873
    %v875 = vand.u32 %v874, 4294901760
    %876 = vmatpush.msra.mxu0 %v875
    %v877 = vand.u32 %v34, 4294901760
    %v878 = vsub.f32 %v34, %v877
    %v879 = vand.u32 %v878, 4294901760
    %v880 = vsub.f32 %v878, %v879
    %v881 = vand.u32 %v880, 4294901760
    %882 = vmatpush.msra.mxu0 %v881
    %v883 = vand.u32 %v32, 4294901760
    %v884 = vsub.f32 %v32, %v883
    %v885 = vand.u32 %v884, 4294901760
    %v886 = vsub.f32 %v884, %v885
    %v887 = vand.u32 %v886, 4294901760
    %888 = vmatpush.msra.mxu0 %v887
    %v889 = vand.u32 %v30, 4294901760
    %v890 = vsub.f32 %v30, %v889
    %v891 = vand.u32 %v890, 4294901760
    %v892 = vsub.f32 %v890, %v891
    %v893 = vand.u32 %v892, 4294901760
    %894 = vmatpush.msra.mxu0 %v893
    %v895 = vand.u32 %v28, 4294901760
    %v896 = vsub.f32 %v28, %v895
    %v897 = vand.u32 %v896, 4294901760
    %v898 = vsub.f32 %v896, %v897
    %v899 = vand.u32 %v898, 4294901760
    %900 = vmatpush.msra.mxu0 %v899
    %v901 = vand.u32 %v26, 4294901760
    %v902 = vsub.f32 %v26, %v901
    %v903 = vand.u32 %v902, 4294901760
    %v904 = vsub.f32 %v902, %v903
    %v905 = vand.u32 %v904, 4294901760
    %906 = vmatpush.msra.mxu0 %v905
    %v907 = vand.u32 %v579, 4294901760
    %908 = vmatmul.f32.gmra.mxu0 %v907
    %v909 = vpop.f32.mrf.mxu0
    %v910 = vadd.f32 %v849, %v909
    %911 = vdwg.mxu0
    %912 = vmatpush.msra.mxu0 0.0
    %913 = vmatpush.msra.mxu0 0.0
    %914 = vmatpush.msra.mxu0 0.0
    %915 = vmatpush.msra.mxu0 0.0
    %916 = vmatpush.msra.mxu0 0.0
    %917 = vmatpush.msra.mxu0 0.0
    %918 = vmatpush.msra.mxu0 0.0
    %919 = vmatpush.msra.mxu0 0.0
    %v920 = vand.u32 %v40, 4294901760
    %v921 = vsub.f32 %v40, %v920
    %922 = vmatpush.msra.mxu0 %v921
    %v923 = vand.u32 %v38, 4294901760
    %v924 = vsub.f32 %v38, %v923
    %925 = vmatpush.msra.mxu0 %v924
    %v926 = vand.u32 %v36, 4294901760
    %v927 = vsub.f32 %v36, %v926
    %928 = vmatpush.msra.mxu0 %v927
    %v929 = vand.u32 %v34, 4294901760
    %v930 = vsub.f32 %v34, %v929
    %931 = vmatpush.msra.mxu0 %v930
    %v932 = vand.u32 %v32, 4294901760
    %v933 = vsub.f32 %v32, %v932
    %934 = vmatpush.msra.mxu0 %v933
    %v935 = vand.u32 %v30, 4294901760
    %v936 = vsub.f32 %v30, %v935
    %937 = vmatpush.msra.mxu0 %v936
    %v938 = vand.u32 %v28, 4294901760
    %v939 = vsub.f32 %v28, %v938
    %940 = vmatpush.msra.mxu0 %v939
    %v941 = vand.u32 %v26, 4294901760
    %v942 = vsub.f32 %v26, %v941
    %943 = vmatpush.msra.mxu0 %v942
    %v944 = vand.u32 %v579, 4294901760
    %v945 = vsub.f32 %v579, %v944
    %946 = vmatmul.f32.gmra.mxu0 %v945
    %v947 = vpop.f32.mrf.mxu0
    %v948 = vadd.f32 %v910, %v947
    %949 = vdwg.mxu0
    %950 = vmatpush.msra.mxu0 0.0
    %951 = vmatpush.msra.mxu0 0.0
    %952 = vmatpush.msra.mxu0 0.0
    %953 = vmatpush.msra.mxu0 0.0
    %954 = vmatpush.msra.mxu0 0.0
    %955 = vmatpush.msra.mxu0 0.0
    %956 = vmatpush.msra.mxu0 0.0
    %957 = vmatpush.msra.mxu0 0.0
    %v958 = vand.u32 %v40, 4294901760
    %959 = vmatpush.msra.mxu0 %v958
    %v960 = vand.u32 %v38, 4294901760
    %961 = vmatpush.msra.mxu0 %v960
    %v962 = vand.u32 %v36, 4294901760
    %963 = vmatpush.msra.mxu0 %v962
    %v964 = vand.u32 %v34, 4294901760
    %965 = vmatpush.msra.mxu0 %v964
    %v966 = vand.u32 %v32, 4294901760
    %967 = vmatpush.msra.mxu0 %v966
    %v968 = vand.u32 %v30, 4294901760
    %969 = vmatpush.msra.mxu0 %v968
    %v970 = vand.u32 %v28, 4294901760
    %971 = vmatpush.msra.mxu0 %v970
    %v972 = vand.u32 %v26, 4294901760
    %973 = vmatpush.msra.mxu0 %v972
    %v974 = vand.u32 %v579, 4294901760
    %v975 = vsub.f32 %v579, %v974
    %v976 = vand.u32 %v975, 4294901760
    %977 = vmatmul.f32.gmra.mxu0 %v976
    %v978 = vpop.f32.mrf.mxu0
    %v979 = vadd.f32 %v948, %v978
    %980 = vdwg.mxu0
    %981 = vmatpush.msra.mxu0 0.0
    %982 = vmatpush.msra.mxu0 0.0
    %983 = vmatpush.msra.mxu0 0.0
    %984 = vmatpush.msra.mxu0 0.0
    %985 = vmatpush.msra.mxu0 0.0
    %986 = vmatpush.msra.mxu0 0.0
    %987 = vmatpush.msra.mxu0 0.0
    %988 = vmatpush.msra.mxu0 0.0
    %v989 = vand.u32 %v40, 4294901760
    %v990 = vsub.f32 %v40, %v989
    %v991 = vand.u32 %v990, 4294901760
    %992 = vmatpush.msra.mxu0 %v991
    %v993 = vand.u32 %v38, 4294901760
    %v994 = vsub.f32 %v38, %v993
    %v995 = vand.u32 %v994, 4294901760
    %996 = vmatpush.msra.mxu0 %v995
    %v997 = vand.u32 %v36, 4294901760
    %v998 = vsub.f32 %v36, %v997
    %v999 = vand.u32 %v998, 4294901760
    %1000 = vmatpush.msra.mxu0 %v999
    %v1001 = vand.u32 %v34, 4294901760
    %v1002 = vsub.f32 %v34, %v1001
    %v1003 = vand.u32 %v1002, 4294901760
    %1004 = vmatpush.msra.mxu0 %v1003
    %v1005 = vand.u32 %v32, 4294901760
    %v1006 = vsub.f32 %v32, %v1005
    %v1007 = vand.u32 %v1006, 4294901760
    %1008 = vmatpush.msra.mxu0 %v1007
    %v1009 = vand.u32 %v30, 4294901760
    %v1010 = vsub.f32 %v30, %v1009
    %v1011 = vand.u32 %v1010, 4294901760
    %1012 = vmatpush.msra.mxu0 %v1011
    %v1013 = vand.u32 %v28, 4294901760
    %v1014 = vsub.f32 %v28, %v1013
    %v1015 = vand.u32 %v1014, 4294901760
    %1016 = vmatpush.msra.mxu0 %v1015
    %v1017 = vand.u32 %v26, 4294901760
    %v1018 = vsub.f32 %v26, %v1017
    %v1019 = vand.u32 %v1018, 4294901760
    %1020 = vmatpush.msra.mxu0 %v1019
    %v1021 = vand.u32 %v579, 4294901760
    %1022 = vmatmul.f32.gmra.mxu0 %v1021
    %v1023 = vpop.f32.mrf.mxu0
    %v1024 = vadd.f32 %v979, %v1023
    %1025 = vdwg.mxu0
    %1026 = vmatpush.msra.mxu0 0.0
    %1027 = vmatpush.msra.mxu0 0.0
    %1028 = vmatpush.msra.mxu0 0.0
    %1029 = vmatpush.msra.mxu0 0.0
    %1030 = vmatpush.msra.mxu0 0.0
    %1031 = vmatpush.msra.mxu0 0.0
    %1032 = vmatpush.msra.mxu0 0.0
    %1033 = vmatpush.msra.mxu0 0.0
    %v1034 = vand.u32 %v40, 4294901760
    %1035 = vmatpush.msra.mxu0 %v1034
    %v1036 = vand.u32 %v38, 4294901760
    %1037 = vmatpush.msra.mxu0 %v1036
    %v1038 = vand.u32 %v36, 4294901760
    %1039 = vmatpush.msra.mxu0 %v1038
    %v1040 = vand.u32 %v34, 4294901760
    %1041 = vmatpush.msra.mxu0 %v1040
    %v1042 = vand.u32 %v32, 4294901760
    %1043 = vmatpush.msra.mxu0 %v1042
    %v1044 = vand.u32 %v30, 4294901760
    %1045 = vmatpush.msra.mxu0 %v1044
    %v1046 = vand.u32 %v28, 4294901760
    %1047 = vmatpush.msra.mxu0 %v1046
    %v1048 = vand.u32 %v26, 4294901760
    %1049 = vmatpush.msra.mxu0 %v1048
    %v1050 = vand.u32 %v579, 4294901760
    %1051 = vmatmul.f32.gmra.mxu0 %v1050
    %v1052 = vpop.f32.mrf.mxu0
    %v1053 = vadd.f32 %v1024, %v1052
    %1054 = vdwg.mxu0
    %v1057 = vrot.slane %v1053, 6
    %v1058 = vsel %vm534, %v816, %v1057
    %v1060 = vadd.f32 %v575, %v1058
    %v1061 = vmul.f32 %v1060, 0.5
    %1063 = vst [vmem:[#allocation1] ss:$4 sm:$0xff] %v1060
    %v1064 = vld.sshfl [vmem:[#allocation1] sm:$0xff pattern:$0x73625140]
    %v1065 = vld.sshfl [vmem:[#allocation1 + $0x8] sm:$0xff pattern:$0x73625140]
    %1069 = vst [vmem:[#allocation1] ss:$4 sm:$0xff] %v1061
    %v1070 = vld.sshfl [vmem:[#allocation1] sm:$0xff pattern:$0x73625140]
    %v1071 = vld.sshfl [vmem:[#allocation1 + $0x8] sm:$0xff pattern:$0x73625140]
    %v1074 = vsel %vm48, %v1064, %v1070
    %v1075 = vsel %vm49, %v1065, %v1071
    %v1076 = vtanh.pop %v1074
    %v1077 = vtanh.pop %v1075
    %v1078 = vmul.f32 %v1076, 0.5
    %v1079 = vmul.f32 %v1077, 0.5
    %v1080 = vadd.f32 %v1078, 0.5
    %v1081 = vadd.f32 %v1079, 0.5
    %v1082 = vsel %vm48, %v1076, %v1080
    %v1083 = vsel %vm49, %v1077, %v1081
    %v1084 = vmul.f32 %v1082, %v571
    %v1085 = vmul.f32 %v1082, %v1083
    %1087 = vrot.lane.b32.xlu0 %v1085, 64
    %v1088 = vpop.permute.xlu0 %1087
    %v1090 = vadd.f32 %v1084, %v1088
    %v1091 = vtanh.pop %v1090
    %v1092 = vmul.f32 %v1083, %v1091
    %s1093 = scalar_lea.vmem %s0, 8
    %v1094 = vld [vmem:[%s1093] sm:$0xf]
    %1096 = vrot.lane.b32.xlu0 %v1092, 64
    %v1097 = vpop.permute.xlu0 %1096
    %v1098 = vsel %vm53, %v1097, 0
    %1100 = vmatpush.msra.mxu0 0.0
    %1101 = vmatpush.msra.mxu0 0.0
    %1102 = vmatpush.msra.mxu0 0.0
    %1103 = vmatpush.msra.mxu0 0.0
    %1104 = vmatpush.msra.mxu0 0.0
    %1105 = vmatpush.msra.mxu0 0.0
    %1106 = vmatpush.msra.mxu0 0.0
    %1107 = vmatpush.msra.mxu0 0.0
    %v1108 = vand.u32 %v39, 4294901760
    %1109 = vmatpush.msra.mxu0 %v1108
    %v1110 = vand.u32 %v37, 4294901760
    %1111 = vmatpush.msra.mxu0 %v1110
    %v1112 = vand.u32 %v35, 4294901760
    %1113 = vmatpush.msra.mxu0 %v1112
    %v1114 = vand.u32 %v33, 4294901760
    %1115 = vmatpush.msra.mxu0 %v1114
    %v1116 = vand.u32 %v31, 4294901760
    %1117 = vmatpush.msra.mxu0 %v1116
    %v1118 = vand.u32 %v29, 4294901760
    %1119 = vmatpush.msra.mxu0 %v1118
    %v1120 = vand.u32 %v27, 4294901760
    %1121 = vmatpush.msra.mxu0 %v1120
    %v1122 = vand.u32 %v25, 4294901760
    %1123 = vmatpush.msra.mxu0 %v1122
    %v1124 = vand.u32 %v1098, 4294901760
    %v1125 = vsub.f32 %v1098, %v1124
    %v1126 = vand.u32 %v1125, 4294901760
    %v1127 = vsub.f32 %v1125, %v1126
    %v1128 = vand.u32 %v1127, 4294901760
    %1129 = vmatmul.f32.gmra.mxu0 %v1128
    %v1130 = vpop.f32.mrf.mxu0
    %v1131 = vadd.f32 0.0, %v1130
    %1132 = vdwg.mxu0
    %1133 = vmatpush.msra.mxu0 0.0
    %1134 = vmatpush.msra.mxu0 0.0
    %1135 = vmatpush.msra.mxu0 0.0
    %1136 = vmatpush.msra.mxu0 0.0
    %1137 = vmatpush.msra.mxu0 0.0
    %1138 = vmatpush.msra.mxu0 0.0
    %1139 = vmatpush.msra.mxu0 0.0
    %1140 = vmatpush.msra.mxu0 0.0
    %v1141 = vand.u32 %v39, 4294901760
    %v1142 = vsub.f32 %v39, %v1141
    %v1143 = vand.u32 %v1142, 4294901760
    %v1144 = vsub.f32 %v1142, %v1143
    %v1145 = vand.u32 %v1144, 4294901760
    %1146 = vmatpush.msra.mxu0 %v1145
    %v1147 = vand.u32 %v37, 4294901760
    %v1148 = vsub.f32 %v37, %v1147
    %v1149 = vand.u32 %v1148, 4294901760
    %v1150 = vsub.f32 %v1148, %v1149
    %v1151 = vand.u32 %v1150, 4294901760
    %1152 = vmatpush.msra.mxu0 %v1151
    %v1153 = vand.u32 %v35, 4294901760
    %v1154 = vsub.f32 %v35, %v1153
    %v1155 = vand.u32 %v1154, 4294901760
    %v1156 = vsub.f32 %v1154, %v1155
    %v1157 = vand.u32 %v1156, 4294901760
    %1158 = vmatpush.msra.mxu0 %v1157
    %v1159 = vand.u32 %v33, 4294901760
    %v1160 = vsub.f32 %v33, %v1159
    %v1161 = vand.u32 %v1160, 4294901760
    %v1162 = vsub.f32 %v1160, %v1161
    %v1163 = vand.u32 %v1162, 4294901760
    %1164 = vmatpush.msra.mxu0 %v1163
    %v1165 = vand.u32 %v31, 4294901760
    %v1166 = vsub.f32 %v31, %v1165
    %v1167 = vand.u32 %v1166, 4294901760
    %v1168 = vsub.f32 %v1166, %v1167
    %v1169 = vand.u32 %v1168, 4294901760
    %1170 = vmatpush.msra.mxu0 %v1169
    %v1171 = vand.u32 %v29, 4294901760
    %v1172 = vsub.f32 %v29, %v1171
    %v1173 = vand.u32 %v1172, 4294901760
    %v1174 = vsub.f32 %v1172, %v1173
    %v1175 = vand.u32 %v1174, 4294901760
    %1176 = vmatpush.msra.mxu0 %v1175
    %v1177 = vand.u32 %v27, 4294901760
    %v1178 = vsub.f32 %v27, %v1177
    %v1179 = vand.u32 %v1178, 4294901760
    %v1180 = vsub.f32 %v1178, %v1179
    %v1181 = vand.u32 %v1180, 4294901760
    %1182 = vmatpush.msra.mxu0 %v1181
    %v1183 = vand.u32 %v25, 4294901760
    %v1184 = vsub.f32 %v25, %v1183
    %v1185 = vand.u32 %v1184, 4294901760
    %v1186 = vsub.f32 %v1184, %v1185
    %v1187 = vand.u32 %v1186, 4294901760
    %1188 = vmatpush.msra.mxu0 %v1187
    %v1189 = vand.u32 %v1098, 4294901760
    %1190 = vmatmul.f32.gmra.mxu0 %v1189
    %v1191 = vpop.f32.mrf.mxu0
    %v1192 = vadd.f32 %v1131, %v1191
    %1193 = vdwg.mxu0
    %1194 = vmatpush.msra.mxu0 0.0
    %1195 = vmatpush.msra.mxu0 0.0
    %1196 = vmatpush.msra.mxu0 0.0
    %1197 = vmatpush.msra.mxu0 0.0
    %1198 = vmatpush.msra.mxu0 0.0
    %1199 = vmatpush.msra.mxu0 0.0
    %1200 = vmatpush.msra.mxu0 0.0
    %1201 = vmatpush.msra.mxu0 0.0
    %v1202 = vand.u32 %v39, 4294901760
    %v1203 = vsub.f32 %v39, %v1202
    %1204 = vmatpush.msra.mxu0 %v1203
    %v1205 = vand.u32 %v37, 4294901760
    %v1206 = vsub.f32 %v37, %v1205
    %1207 = vmatpush.msra.mxu0 %v1206
    %v1208 = vand.u32 %v35, 4294901760
    %v1209 = vsub.f32 %v35, %v1208
    %1210 = vmatpush.msra.mxu0 %v1209
    %v1211 = vand.u32 %v33, 4294901760
    %v1212 = vsub.f32 %v33, %v1211
    %1213 = vmatpush.msra.mxu0 %v1212
    %v1214 = vand.u32 %v31, 4294901760
    %v1215 = vsub.f32 %v31, %v1214
    %1216 = vmatpush.msra.mxu0 %v1215
    %v1217 = vand.u32 %v29, 4294901760
    %v1218 = vsub.f32 %v29, %v1217
    %1219 = vmatpush.msra.mxu0 %v1218
    %v1220 = vand.u32 %v27, 4294901760
    %v1221 = vsub.f32 %v27, %v1220
    %1222 = vmatpush.msra.mxu0 %v1221
    %v1223 = vand.u32 %v25, 4294901760
    %v1224 = vsub.f32 %v25, %v1223
    %1225 = vmatpush.msra.mxu0 %v1224
    %v1226 = vand.u32 %v1098, 4294901760
    %v1227 = vsub.f32 %v1098, %v1226
    %1228 = vmatmul.f32.gmra.mxu0 %v1227
    %v1229 = vpop.f32.mrf.mxu0
    %v1230 = vadd.f32 %v1192, %v1229
    %1231 = vdwg.mxu0
    %1232 = vmatpush.msra.mxu0 0.0
    %1233 = vmatpush.msra.mxu0 0.0
    %1234 = vmatpush.msra.mxu0 0.0
    %1235 = vmatpush.msra.mxu0 0.0
    %1236 = vmatpush.msra.mxu0 0.0
    %1237 = vmatpush.msra.mxu0 0.0
    %1238 = vmatpush.msra.mxu0 0.0
    %1239 = vmatpush.msra.mxu0 0.0
    %v1240 = vand.u32 %v39, 4294901760
    %1241 = vmatpush.msra.mxu0 %v1240
    %v1242 = vand.u32 %v37, 4294901760
    %1243 = vmatpush.msra.mxu0 %v1242
    %v1244 = vand.u32 %v35, 4294901760
    %1245 = vmatpush.msra.mxu0 %v1244
    %v1246 = vand.u32 %v33, 4294901760
    %1247 = vmatpush.msra.mxu0 %v1246
    %v1248 = vand.u32 %v31, 4294901760
    %1249 = vmatpush.msra.mxu0 %v1248
    %v1250 = vand.u32 %v29, 4294901760
    %1251 = vmatpush.msra.mxu0 %v1250
    %v1252 = vand.u32 %v27, 4294901760
    %1253 = vmatpush.msra.mxu0 %v1252
    %v1254 = vand.u32 %v25, 4294901760
    %1255 = vmatpush.msra.mxu0 %v1254
    %v1256 = vand.u32 %v1098, 4294901760
    %v1257 = vsub.f32 %v1098, %v1256
    %v1258 = vand.u32 %v1257, 4294901760
    %1259 = vmatmul.f32.gmra.mxu0 %v1258
    %v1260 = vpop.f32.mrf.mxu0
    %v1261 = vadd.f32 %v1230, %v1260
    %1262 = vdwg.mxu0
    %1263 = vmatpush.msra.mxu0 0.0
    %1264 = vmatpush.msra.mxu0 0.0
    %1265 = vmatpush.msra.mxu0 0.0
    %1266 = vmatpush.msra.mxu0 0.0
    %1267 = vmatpush.msra.mxu0 0.0
    %1268 = vmatpush.msra.mxu0 0.0
    %1269 = vmatpush.msra.mxu0 0.0
    %1270 = vmatpush.msra.mxu0 0.0
    %v1271 = vand.u32 %v39, 4294901760
    %v1272 = vsub.f32 %v39, %v1271
    %v1273 = vand.u32 %v1272, 4294901760
    %1274 = vmatpush.msra.mxu0 %v1273
    %v1275 = vand.u32 %v37, 4294901760
    %v1276 = vsub.f32 %v37, %v1275
    %v1277 = vand.u32 %v1276, 4294901760
    %1278 = vmatpush.msra.mxu0 %v1277
    %v1279 = vand.u32 %v35, 4294901760
    %v1280 = vsub.f32 %v35, %v1279
    %v1281 = vand.u32 %v1280, 4294901760
    %1282 = vmatpush.msra.mxu0 %v1281
    %v1283 = vand.u32 %v33, 4294901760
    %v1284 = vsub.f32 %v33, %v1283
    %v1285 = vand.u32 %v1284, 4294901760
    %1286 = vmatpush.msra.mxu0 %v1285
    %v1287 = vand.u32 %v31, 4294901760
    %v1288 = vsub.f32 %v31, %v1287
    %v1289 = vand.u32 %v1288, 4294901760
    %1290 = vmatpush.msra.mxu0 %v1289
    %v1291 = vand.u32 %v29, 4294901760
    %v1292 = vsub.f32 %v29, %v1291
    %v1293 = vand.u32 %v1292, 4294901760
    %1294 = vmatpush.msra.mxu0 %v1293
    %v1295 = vand.u32 %v27, 4294901760
    %v1296 = vsub.f32 %v27, %v1295
    %v1297 = vand.u32 %v1296, 4294901760
    %1298 = vmatpush.msra.mxu0 %v1297
    %v1299 = vand.u32 %v25, 4294901760
    %v1300 = vsub.f32 %v25, %v1299
    %v1301 = vand.u32 %v1300, 4294901760
    %1302 = vmatpush.msra.mxu0 %v1301
    %v1303 = vand.u32 %v1098, 4294901760
    %1304 = vmatmul.f32.gmra.mxu0 %v1303
    %v1305 = vpop.f32.mrf.mxu0
    %v1306 = vadd.f32 %v1261, %v1305
    %1307 = vdwg.mxu0
    %1308 = vmatpush.msra.mxu0 0.0
    %1309 = vmatpush.msra.mxu0 0.0
    %1310 = vmatpush.msra.mxu0 0.0
    %1311 = vmatpush.msra.mxu0 0.0
    %1312 = vmatpush.msra.mxu0 0.0
    %1313 = vmatpush.msra.mxu0 0.0
    %1314 = vmatpush.msra.mxu0 0.0
    %1315 = vmatpush.msra.mxu0 0.0
    %v1316 = vand.u32 %v39, 4294901760
    %1317 = vmatpush.msra.mxu0 %v1316
    %v1318 = vand.u32 %v37, 4294901760
    %1319 = vmatpush.msra.mxu0 %v1318
    %v1320 = vand.u32 %v35, 4294901760
    %1321 = vmatpush.msra.mxu0 %v1320
    %v1322 = vand.u32 %v33, 4294901760
    %1323 = vmatpush.msra.mxu0 %v1322
    %v1324 = vand.u32 %v31, 4294901760
    %1325 = vmatpush.msra.mxu0 %v1324
    %v1326 = vand.u32 %v29, 4294901760
    %1327 = vmatpush.msra.mxu0 %v1326
    %v1328 = vand.u32 %v27, 4294901760
    %1329 = vmatpush.msra.mxu0 %v1328
    %v1330 = vand.u32 %v25, 4294901760
    %1331 = vmatpush.msra.mxu0 %v1330
    %v1332 = vand.u32 %v1098, 4294901760
    %1333 = vmatmul.f32.gmra.mxu0 %v1332
    %v1334 = vpop.f32.mrf.mxu0
    %v1335 = vadd.f32 %v1306, %v1334
    %1336 = vdwg.mxu0
    %1337 = vmatpush.msra.mxu0 0.0
    %1338 = vmatpush.msra.mxu0 0.0
    %1339 = vmatpush.msra.mxu0 0.0
    %1340 = vmatpush.msra.mxu0 0.0
    %1341 = vmatpush.msra.mxu0 0.0
    %1342 = vmatpush.msra.mxu0 0.0
    %1343 = vmatpush.msra.mxu0 0.0
    %1344 = vmatpush.msra.mxu0 0.0
    %v1345 = vand.u32 %v40, 4294901760
    %1346 = vmatpush.msra.mxu0 %v1345
    %v1347 = vand.u32 %v38, 4294901760
    %1348 = vmatpush.msra.mxu0 %v1347
    %v1349 = vand.u32 %v36, 4294901760
    %1350 = vmatpush.msra.mxu0 %v1349
    %v1351 = vand.u32 %v34, 4294901760
    %1352 = vmatpush.msra.mxu0 %v1351
    %v1353 = vand.u32 %v32, 4294901760
    %1354 = vmatpush.msra.mxu0 %v1353
    %v1355 = vand.u32 %v30, 4294901760
    %1356 = vmatpush.msra.mxu0 %v1355
    %v1357 = vand.u32 %v28, 4294901760
    %1358 = vmatpush.msra.mxu0 %v1357
    %v1359 = vand.u32 %v26, 4294901760
    %1360 = vmatpush.msra.mxu0 %v1359
    %v1361 = vand.u32 %v1098, 4294901760
    %v1362 = vsub.f32 %v1098, %v1361
    %v1363 = vand.u32 %v1362, 4294901760
    %v1364 = vsub.f32 %v1362, %v1363
    %v1365 = vand.u32 %v1364, 4294901760
    %1366 = vmatmul.f32.gmra.mxu0 %v1365
    %v1367 = vpop.f32.mrf.mxu0
    %v1368 = vadd.f32 0.0, %v1367
    %1369 = vdwg.mxu0
    %1370 = vmatpush.msra.mxu0 0.0
    %1371 = vmatpush.msra.mxu0 0.0
    %1372 = vmatpush.msra.mxu0 0.0
    %1373 = vmatpush.msra.mxu0 0.0
    %1374 = vmatpush.msra.mxu0 0.0
    %1375 = vmatpush.msra.mxu0 0.0
    %1376 = vmatpush.msra.mxu0 0.0
    %1377 = vmatpush.msra.mxu0 0.0
    %v1378 = vand.u32 %v40, 4294901760
    %v1379 = vsub.f32 %v40, %v1378
    %v1380 = vand.u32 %v1379, 4294901760
    %v1381 = vsub.f32 %v1379, %v1380
    %v1382 = vand.u32 %v1381, 4294901760
    %1383 = vmatpush.msra.mxu0 %v1382
    %v1384 = vand.u32 %v38, 4294901760
    %v1385 = vsub.f32 %v38, %v1384
    %v1386 = vand.u32 %v1385, 4294901760
    %v1387 = vsub.f32 %v1385, %v1386
    %v1388 = vand.u32 %v1387, 4294901760
    %1389 = vmatpush.msra.mxu0 %v1388
    %v1390 = vand.u32 %v36, 4294901760
    %v1391 = vsub.f32 %v36, %v1390
    %v1392 = vand.u32 %v1391, 4294901760
    %v1393 = vsub.f32 %v1391, %v1392
    %v1394 = vand.u32 %v1393, 4294901760
    %1395 = vmatpush.msra.mxu0 %v1394
    %v1396 = vand.u32 %v34, 4294901760
    %v1397 = vsub.f32 %v34, %v1396
    %v1398 = vand.u32 %v1397, 4294901760
    %v1399 = vsub.f32 %v1397, %v1398
    %v1400 = vand.u32 %v1399, 4294901760
    %1401 = vmatpush.msra.mxu0 %v1400
    %v1402 = vand.u32 %v32, 4294901760
    %v1403 = vsub.f32 %v32, %v1402
    %v1404 = vand.u32 %v1403, 4294901760
    %v1405 = vsub.f32 %v1403, %v1404
    %v1406 = vand.u32 %v1405, 4294901760
    %1407 = vmatpush.msra.mxu0 %v1406
    %v1408 = vand.u32 %v30, 4294901760
    %v1409 = vsub.f32 %v30, %v1408
    %v1410 = vand.u32 %v1409, 4294901760
    %v1411 = vsub.f32 %v1409, %v1410
    %v1412 = vand.u32 %v1411, 4294901760
    %1413 = vmatpush.msra.mxu0 %v1412
    %v1414 = vand.u32 %v28, 4294901760
    %v1415 = vsub.f32 %v28, %v1414
    %v1416 = vand.u32 %v1415, 4294901760
    %v1417 = vsub.f32 %v1415, %v1416
    %v1418 = vand.u32 %v1417, 4294901760
    %1419 = vmatpush.msra.mxu0 %v1418
    %v1420 = vand.u32 %v26, 4294901760
    %v1421 = vsub.f32 %v26, %v1420
    %v1422 = vand.u32 %v1421, 4294901760
    %v1423 = vsub.f32 %v1421, %v1422
    %v1424 = vand.u32 %v1423, 4294901760
    %1425 = vmatpush.msra.mxu0 %v1424
    %v1426 = vand.u32 %v1098, 4294901760
    %1427 = vmatmul.f32.gmra.mxu0 %v1426
    %v1428 = vpop.f32.mrf.mxu0
    %v1429 = vadd.f32 %v1368, %v1428
    %1430 = vdwg.mxu0
    %1431 = vmatpush.msra.mxu0 0.0
    %1432 = vmatpush.msra.mxu0 0.0
    %1433 = vmatpush.msra.mxu0 0.0
    %1434 = vmatpush.msra.mxu0 0.0
    %1435 = vmatpush.msra.mxu0 0.0
    %1436 = vmatpush.msra.mxu0 0.0
    %1437 = vmatpush.msra.mxu0 0.0
    %1438 = vmatpush.msra.mxu0 0.0
    %v1439 = vand.u32 %v40, 4294901760
    %v1440 = vsub.f32 %v40, %v1439
    %1441 = vmatpush.msra.mxu0 %v1440
    %v1442 = vand.u32 %v38, 4294901760
    %v1443 = vsub.f32 %v38, %v1442
    %1444 = vmatpush.msra.mxu0 %v1443
    %v1445 = vand.u32 %v36, 4294901760
    %v1446 = vsub.f32 %v36, %v1445
    %1447 = vmatpush.msra.mxu0 %v1446
    %v1448 = vand.u32 %v34, 4294901760
    %v1449 = vsub.f32 %v34, %v1448
    %1450 = vmatpush.msra.mxu0 %v1449
    %v1451 = vand.u32 %v32, 4294901760
    %v1452 = vsub.f32 %v32, %v1451
    %1453 = vmatpush.msra.mxu0 %v1452
    %v1454 = vand.u32 %v30, 4294901760
    %v1455 = vsub.f32 %v30, %v1454
    %1456 = vmatpush.msra.mxu0 %v1455
    %v1457 = vand.u32 %v28, 4294901760
    %v1458 = vsub.f32 %v28, %v1457
    %1459 = vmatpush.msra.mxu0 %v1458
    %v1460 = vand.u32 %v26, 4294901760
    %v1461 = vsub.f32 %v26, %v1460
    %1462 = vmatpush.msra.mxu0 %v1461
    %v1463 = vand.u32 %v1098, 4294901760
    %v1464 = vsub.f32 %v1098, %v1463
    %1465 = vmatmul.f32.gmra.mxu0 %v1464
    %v1466 = vpop.f32.mrf.mxu0
    %v1467 = vadd.f32 %v1429, %v1466
    %1468 = vdwg.mxu0
    %1469 = vmatpush.msra.mxu0 0.0
    %1470 = vmatpush.msra.mxu0 0.0
    %1471 = vmatpush.msra.mxu0 0.0
    %1472 = vmatpush.msra.mxu0 0.0
    %1473 = vmatpush.msra.mxu0 0.0
    %1474 = vmatpush.msra.mxu0 0.0
    %1475 = vmatpush.msra.mxu0 0.0
    %1476 = vmatpush.msra.mxu0 0.0
    %v1477 = vand.u32 %v40, 4294901760
    %1478 = vmatpush.msra.mxu0 %v1477
    %v1479 = vand.u32 %v38, 4294901760
    %1480 = vmatpush.msra.mxu0 %v1479
    %v1481 = vand.u32 %v36, 4294901760
    %1482 = vmatpush.msra.mxu0 %v1481
    %v1483 = vand.u32 %v34, 4294901760
    %1484 = vmatpush.msra.mxu0 %v1483
    %v1485 = vand.u32 %v32, 4294901760
    %1486 = vmatpush.msra.mxu0 %v1485
    %v1487 = vand.u32 %v30, 4294901760
    %1488 = vmatpush.msra.mxu0 %v1487
    %v1489 = vand.u32 %v28, 4294901760
    %1490 = vmatpush.msra.mxu0 %v1489
    %v1491 = vand.u32 %v26, 4294901760
    %1492 = vmatpush.msra.mxu0 %v1491
    %v1493 = vand.u32 %v1098, 4294901760
    %v1494 = vsub.f32 %v1098, %v1493
    %v1495 = vand.u32 %v1494, 4294901760
    %1496 = vmatmul.f32.gmra.mxu0 %v1495
    %v1497 = vpop.f32.mrf.mxu0
    %v1498 = vadd.f32 %v1467, %v1497
    %1499 = vdwg.mxu0
    %1500 = vmatpush.msra.mxu0 0.0
    %1501 = vmatpush.msra.mxu0 0.0
    %1502 = vmatpush.msra.mxu0 0.0
    %1503 = vmatpush.msra.mxu0 0.0
    %1504 = vmatpush.msra.mxu0 0.0
    %1505 = vmatpush.msra.mxu0 0.0
    %1506 = vmatpush.msra.mxu0 0.0
    %1507 = vmatpush.msra.mxu0 0.0
    %v1508 = vand.u32 %v40, 4294901760
    %v1509 = vsub.f32 %v40, %v1508
    %v1510 = vand.u32 %v1509, 4294901760
    %1511 = vmatpush.msra.mxu0 %v1510
    %v1512 = vand.u32 %v38, 4294901760
    %v1513 = vsub.f32 %v38, %v1512
    %v1514 = vand.u32 %v1513, 4294901760
    %1515 = vmatpush.msra.mxu0 %v1514
    %v1516 = vand.u32 %v36, 4294901760
    %v1517 = vsub.f32 %v36, %v1516
    %v1518 = vand.u32 %v1517, 4294901760
    %1519 = vmatpush.msra.mxu0 %v1518
    %v1520 = vand.u32 %v34, 4294901760
    %v1521 = vsub.f32 %v34, %v1520
    %v1522 = vand.u32 %v1521, 4294901760
    %1523 = vmatpush.msra.mxu0 %v1522
    %v1524 = vand.u32 %v32, 4294901760
    %v1525 = vsub.f32 %v32, %v1524
    %v1526 = vand.u32 %v1525, 4294901760
    %1527 = vmatpush.msra.mxu0 %v1526
    %v1528 = vand.u32 %v30, 4294901760
    %v1529 = vsub.f32 %v30, %v1528
    %v1530 = vand.u32 %v1529, 4294901760
    %1531 = vmatpush.msra.mxu0 %v1530
    %v1532 = vand.u32 %v28, 4294901760
    %v1533 = vsub.f32 %v28, %v1532
    %v1534 = vand.u32 %v1533, 4294901760
    %1535 = vmatpush.msra.mxu0 %v1534
    %v1536 = vand.u32 %v26, 4294901760
    %v1537 = vsub.f32 %v26, %v1536
    %v1538 = vand.u32 %v1537, 4294901760
    %1539 = vmatpush.msra.mxu0 %v1538
    %v1540 = vand.u32 %v1098, 4294901760
    %1541 = vmatmul.f32.gmra.mxu0 %v1540
    %v1542 = vpop.f32.mrf.mxu0
    %v1543 = vadd.f32 %v1498, %v1542
    %1544 = vdwg.mxu0
    %1545 = vmatpush.msra.mxu0 0.0
    %1546 = vmatpush.msra.mxu0 0.0
    %1547 = vmatpush.msra.mxu0 0.0
    %1548 = vmatpush.msra.mxu0 0.0
    %1549 = vmatpush.msra.mxu0 0.0
    %1550 = vmatpush.msra.mxu0 0.0
    %1551 = vmatpush.msra.mxu0 0.0
    %1552 = vmatpush.msra.mxu0 0.0
    %v1553 = vand.u32 %v40, 4294901760
    %1554 = vmatpush.msra.mxu0 %v1553
    %v1555 = vand.u32 %v38, 4294901760
    %1556 = vmatpush.msra.mxu0 %v1555
    %v1557 = vand.u32 %v36, 4294901760
    %1558 = vmatpush.msra.mxu0 %v1557
    %v1559 = vand.u32 %v34, 4294901760
    %1560 = vmatpush.msra.mxu0 %v1559
    %v1561 = vand.u32 %v32, 4294901760
    %1562 = vmatpush.msra.mxu0 %v1561
    %v1563 = vand.u32 %v30, 4294901760
    %1564 = vmatpush.msra.mxu0 %v1563
    %v1565 = vand.u32 %v28, 4294901760
    %1566 = vmatpush.msra.mxu0 %v1565
    %v1567 = vand.u32 %v26, 4294901760
    %1568 = vmatpush.msra.mxu0 %v1567
    %v1569 = vand.u32 %v1098, 4294901760
    %1570 = vmatmul.f32.gmra.mxu0 %v1569
    %v1571 = vpop.f32.mrf.mxu0
    %v1572 = vadd.f32 %v1543, %v1571
    %1573 = vdwg.mxu0
    %v1576 = vrot.slane %v1572, 6
    %v1577 = vsel %vm534, %v1335, %v1576
    %v1579 = vadd.f32 %v1094, %v1577
    %v1580 = vmul.f32 %v1579, 0.5
    %1582 = vst [vmem:[#allocation1] ss:$4 sm:$0xff] %v1579
    %v1583 = vld.sshfl [vmem:[#allocation1] sm:$0xff pattern:$0x73625140]
    %v1584 = vld.sshfl [vmem:[#allocation1 + $0x8] sm:$0xff pattern:$0x73625140]
    %1588 = vst [vmem:[#allocation1] ss:$4 sm:$0xff] %v1580
    %v1589 = vld.sshfl [vmem:[#allocation1] sm:$0xff pattern:$0x73625140]
    %v1590 = vld.sshfl [vmem:[#allocation1 + $0x8] sm:$0xff pattern:$0x73625140]
    %v1593 = vsel %vm48, %v1583, %v1589
    %v1594 = vsel %vm49, %v1584, %v1590
    %v1595 = vtanh.pop %v1593
    %v1596 = vtanh.pop %v1594
    %v1597 = vmul.f32 %v1595, 0.5
    %v1598 = vmul.f32 %v1596, 0.5
    %v1599 = vadd.f32 %v1597, 0.5
    %v1600 = vadd.f32 %v1598, 0.5
    %v1601 = vsel %vm48, %v1595, %v1599
    %v1602 = vsel %vm49, %v1596, %v1600
    %v1603 = vmul.f32 %v1601, %v1090
    %v1604 = vmul.f32 %v1601, %v1602
    %1606 = vrot.lane.b32.xlu0 %v1604, 64
    %v1607 = vpop.permute.xlu0 %1606
    %v1609 = vadd.f32 %v1603, %v1607
    %v1610 = vtanh.pop %v1609
    %v1611 = vmul.f32 %v1602, %v1610
    %s1612 = scalar_lea.vmem %s0, 12
    %v1613 = vld [vmem:[%s1612] sm:$0xf]
    %1615 = vrot.lane.b32.xlu0 %v1611, 64
    %v1616 = vpop.permute.xlu0 %1615
    %v1617 = vsel %vm53, %v1616, 0
    %1619 = vmatpush.msra.mxu0 0.0
    %1620 = vmatpush.msra.mxu0 0.0
    %1621 = vmatpush.msra.mxu0 0.0
    %1622 = vmatpush.msra.mxu0 0.0
    %1623 = vmatpush.msra.mxu0 0.0
    %1624 = vmatpush.msra.mxu0 0.0
    %1625 = vmatpush.msra.mxu0 0.0
    %1626 = vmatpush.msra.mxu0 0.0
    %v1627 = vand.u32 %v39, 4294901760
    %1628 = vmatpush.msra.mxu0 %v1627
    %v1629 = vand.u32 %v37, 4294901760
    %1630 = vmatpush.msra.mxu0 %v1629
    %v1631 = vand.u32 %v35, 4294901760
    %1632 = vmatpush.msra.mxu0 %v1631
    %v1633 = vand.u32 %v33, 4294901760
    %1634 = vmatpush.msra.mxu0 %v1633
    %v1635 = vand.u32 %v31, 4294901760
    %1636 = vmatpush.msra.mxu0 %v1635
    %v1637 = vand.u32 %v29, 4294901760
    %1638 = vmatpush.msra.mxu0 %v1637
    %v1639 = vand.u32 %v27, 4294901760
    %1640 = vmatpush.msra.mxu0 %v1639
    %v1641 = vand.u32 %v25, 4294901760
    %1642 = vmatpush.msra.mxu0 %v1641
    %v1643 = vand.u32 %v1617, 4294901760
    %v1644 = vsub.f32 %v1617, %v1643
    %v1645 = vand.u32 %v1644, 4294901760
    %v1646 = vsub.f32 %v1644, %v1645
    %v1647 = vand.u32 %v1646, 4294901760
    %1648 = vmatmul.f32.gmra.mxu0 %v1647
    %v1649 = vpop.f32.mrf.mxu0
    %v1650 = vadd.f32 0.0, %v1649
    %1651 = vdwg.mxu0
    %1652 = vmatpush.msra.mxu0 0.0
    %1653 = vmatpush.msra.mxu0 0.0
    %1654 = vmatpush.msra.mxu0 0.0
    %1655 = vmatpush.msra.mxu0 0.0
    %1656 = vmatpush.msra.mxu0 0.0
    %1657 = vmatpush.msra.mxu0 0.0
    %1658 = vmatpush.msra.mxu0 0.0
    %1659 = vmatpush.msra.mxu0 0.0
    %v1660 = vand.u32 %v39, 4294901760
    %v1661 = vsub.f32 %v39, %v1660
    %v1662 = vand.u32 %v1661, 4294901760
    %v1663 = vsub.f32 %v1661, %v1662
    %v1664 = vand.u32 %v1663, 4294901760
    %1665 = vmatpush.msra.mxu0 %v1664
    %v1666 = vand.u32 %v37, 4294901760
    %v1667 = vsub.f32 %v37, %v1666
    %v1668 = vand.u32 %v1667, 4294901760
    %v1669 = vsub.f32 %v1667, %v1668
    %v1670 = vand.u32 %v1669, 4294901760
    %1671 = vmatpush.msra.mxu0 %v1670
    %v1672 = vand.u32 %v35, 4294901760
    %v1673 = vsub.f32 %v35, %v1672
    %v1674 = vand.u32 %v1673, 4294901760
    %v1675 = vsub.f32 %v1673, %v1674
    %v1676 = vand.u32 %v1675, 4294901760
    %1677 = vmatpush.msra.mxu0 %v1676
    %v1678 = vand.u32 %v33, 4294901760
    %v1679 = vsub.f32 %v33, %v1678
    %v1680 = vand.u32 %v1679, 4294901760
    %v1681 = vsub.f32 %v1679, %v1680
    %v1682 = vand.u32 %v1681, 4294901760
    %1683 = vmatpush.msra.mxu0 %v1682
    %v1684 = vand.u32 %v31, 4294901760
    %v1685 = vsub.f32 %v31, %v1684
    %v1686 = vand.u32 %v1685, 4294901760
    %v1687 = vsub.f32 %v1685, %v1686
    %v1688 = vand.u32 %v1687, 4294901760
    %1689 = vmatpush.msra.mxu0 %v1688
    %v1690 = vand.u32 %v29, 4294901760
    %v1691 = vsub.f32 %v29, %v1690
    %v1692 = vand.u32 %v1691, 4294901760
    %v1693 = vsub.f32 %v1691, %v1692
    %v1694 = vand.u32 %v1693, 4294901760
    %1695 = vmatpush.msra.mxu0 %v1694
    %v1696 = vand.u32 %v27, 4294901760
    %v1697 = vsub.f32 %v27, %v1696
    %v1698 = vand.u32 %v1697, 4294901760
    %v1699 = vsub.f32 %v1697, %v1698
    %v1700 = vand.u32 %v1699, 4294901760
    %1701 = vmatpush.msra.mxu0 %v1700
    %v1702 = vand.u32 %v25, 4294901760
    %v1703 = vsub.f32 %v25, %v1702
    %v1704 = vand.u32 %v1703, 4294901760
    %v1705 = vsub.f32 %v1703, %v1704
    %v1706 = vand.u32 %v1705, 4294901760
    %1707 = vmatpush.msra.mxu0 %v1706
    %v1708 = vand.u32 %v1617, 4294901760
    %1709 = vmatmul.f32.gmra.mxu0 %v1708
    %v1710 = vpop.f32.mrf.mxu0
    %v1711 = vadd.f32 %v1650, %v1710
    %1712 = vdwg.mxu0
    %1713 = vmatpush.msra.mxu0 0.0
    %1714 = vmatpush.msra.mxu0 0.0
    %1715 = vmatpush.msra.mxu0 0.0
    %1716 = vmatpush.msra.mxu0 0.0
    %1717 = vmatpush.msra.mxu0 0.0
    %1718 = vmatpush.msra.mxu0 0.0
    %1719 = vmatpush.msra.mxu0 0.0
    %1720 = vmatpush.msra.mxu0 0.0
    %v1721 = vand.u32 %v39, 4294901760
    %v1722 = vsub.f32 %v39, %v1721
    %1723 = vmatpush.msra.mxu0 %v1722
    %v1724 = vand.u32 %v37, 4294901760
    %v1725 = vsub.f32 %v37, %v1724
    %1726 = vmatpush.msra.mxu0 %v1725
    %v1727 = vand.u32 %v35, 4294901760
    %v1728 = vsub.f32 %v35, %v1727
    %1729 = vmatpush.msra.mxu0 %v1728
    %v1730 = vand.u32 %v33, 4294901760
    %v1731 = vsub.f32 %v33, %v1730
    %1732 = vmatpush.msra.mxu0 %v1731
    %v1733 = vand.u32 %v31, 4294901760
    %v1734 = vsub.f32 %v31, %v1733
    %1735 = vmatpush.msra.mxu0 %v1734
    %v1736 = vand.u32 %v29, 4294901760
    %v1737 = vsub.f32 %v29, %v1736
    %1738 = vmatpush.msra.mxu0 %v1737
    %v1739 = vand.u32 %v27, 4294901760
    %v1740 = vsub.f32 %v27, %v1739
    %1741 = vmatpush.msra.mxu0 %v1740
    %v1742 = vand.u32 %v25, 4294901760
    %v1743 = vsub.f32 %v25, %v1742
    %1744 = vmatpush.msra.mxu0 %v1743
    %v1745 = vand.u32 %v1617, 4294901760
    %v1746 = vsub.f32 %v1617, %v1745
    %1747 = vmatmul.f32.gmra.mxu0 %v1746
    %v1748 = vpop.f32.mrf.mxu0
    %v1749 = vadd.f32 %v1711, %v1748
    %1750 = vdwg.mxu0
    %1751 = vmatpush.msra.mxu0 0.0
    %1752 = vmatpush.msra.mxu0 0.0
    %1753 = vmatpush.msra.mxu0 0.0
    %1754 = vmatpush.msra.mxu0 0.0
    %1755 = vmatpush.msra.mxu0 0.0
    %1756 = vmatpush.msra.mxu0 0.0
    %1757 = vmatpush.msra.mxu0 0.0
    %1758 = vmatpush.msra.mxu0 0.0
    %v1759 = vand.u32 %v39, 4294901760
    %1760 = vmatpush.msra.mxu0 %v1759
    %v1761 = vand.u32 %v37, 4294901760
    %1762 = vmatpush.msra.mxu0 %v1761
    %v1763 = vand.u32 %v35, 4294901760
    %1764 = vmatpush.msra.mxu0 %v1763
    %v1765 = vand.u32 %v33, 4294901760
    %1766 = vmatpush.msra.mxu0 %v1765
    %v1767 = vand.u32 %v31, 4294901760
    %1768 = vmatpush.msra.mxu0 %v1767
    %v1769 = vand.u32 %v29, 4294901760
    %1770 = vmatpush.msra.mxu0 %v1769
    %v1771 = vand.u32 %v27, 4294901760
    %1772 = vmatpush.msra.mxu0 %v1771
    %v1773 = vand.u32 %v25, 4294901760
    %1774 = vmatpush.msra.mxu0 %v1773
    %v1775 = vand.u32 %v1617, 4294901760
    %v1776 = vsub.f32 %v1617, %v1775
    %v1777 = vand.u32 %v1776, 4294901760
    %1778 = vmatmul.f32.gmra.mxu0 %v1777
    %v1779 = vpop.f32.mrf.mxu0
    %v1780 = vadd.f32 %v1749, %v1779
    %1781 = vdwg.mxu0
    %1782 = vmatpush.msra.mxu0 0.0
    %1783 = vmatpush.msra.mxu0 0.0
    %1784 = vmatpush.msra.mxu0 0.0
    %1785 = vmatpush.msra.mxu0 0.0
    %1786 = vmatpush.msra.mxu0 0.0
    %1787 = vmatpush.msra.mxu0 0.0
    %1788 = vmatpush.msra.mxu0 0.0
    %1789 = vmatpush.msra.mxu0 0.0
    %v1790 = vand.u32 %v39, 4294901760
    %v1791 = vsub.f32 %v39, %v1790
    %v1792 = vand.u32 %v1791, 4294901760
    %1793 = vmatpush.msra.mxu0 %v1792
    %v1794 = vand.u32 %v37, 4294901760
    %v1795 = vsub.f32 %v37, %v1794
    %v1796 = vand.u32 %v1795, 4294901760
    %1797 = vmatpush.msra.mxu0 %v1796
    %v1798 = vand.u32 %v35, 4294901760
    %v1799 = vsub.f32 %v35, %v1798
    %v1800 = vand.u32 %v1799, 4294901760
    %1801 = vmatpush.msra.mxu0 %v1800
    %v1802 = vand.u32 %v33, 4294901760
    %v1803 = vsub.f32 %v33, %v1802
    %v1804 = vand.u32 %v1803, 4294901760
    %1805 = vmatpush.msra.mxu0 %v1804
    %v1806 = vand.u32 %v31, 4294901760
    %v1807 = vsub.f32 %v31, %v1806
    %v1808 = vand.u32 %v1807, 4294901760
    %1809 = vmatpush.msra.mxu0 %v1808
    %v1810 = vand.u32 %v29, 4294901760
    %v1811 = vsub.f32 %v29, %v1810
    %v1812 = vand.u32 %v1811, 4294901760
    %1813 = vmatpush.msra.mxu0 %v1812
    %v1814 = vand.u32 %v27, 4294901760
    %v1815 = vsub.f32 %v27, %v1814
    %v1816 = vand.u32 %v1815, 4294901760
    %1817 = vmatpush.msra.mxu0 %v1816
    %v1818 = vand.u32 %v25, 4294901760
    %v1819 = vsub.f32 %v25, %v1818
    %v1820 = vand.u32 %v1819, 4294901760
    %1821 = vmatpush.msra.mxu0 %v1820
    %v1822 = vand.u32 %v1617, 4294901760
    %1823 = vmatmul.f32.gmra.mxu0 %v1822
    %v1824 = vpop.f32.mrf.mxu0
    %v1825 = vadd.f32 %v1780, %v1824
    %1826 = vdwg.mxu0
    %1827 = vmatpush.msra.mxu0 0.0
    %1828 = vmatpush.msra.mxu0 0.0
    %1829 = vmatpush.msra.mxu0 0.0
    %1830 = vmatpush.msra.mxu0 0.0
    %1831 = vmatpush.msra.mxu0 0.0
    %1832 = vmatpush.msra.mxu0 0.0
    %1833 = vmatpush.msra.mxu0 0.0
    %1834 = vmatpush.msra.mxu0 0.0
    %v1835 = vand.u32 %v39, 4294901760
    %1836 = vmatpush.msra.mxu0 %v1835
    %v1837 = vand.u32 %v37, 4294901760
    %1838 = vmatpush.msra.mxu0 %v1837
    %v1839 = vand.u32 %v35, 4294901760
    %1840 = vmatpush.msra.mxu0 %v1839
    %v1841 = vand.u32 %v33, 4294901760
    %1842 = vmatpush.msra.mxu0 %v1841
    %v1843 = vand.u32 %v31, 4294901760
    %1844 = vmatpush.msra.mxu0 %v1843
    %v1845 = vand.u32 %v29, 4294901760
    %1846 = vmatpush.msra.mxu0 %v1845
    %v1847 = vand.u32 %v27, 4294901760
    %1848 = vmatpush.msra.mxu0 %v1847
    %v1849 = vand.u32 %v25, 4294901760
    %1850 = vmatpush.msra.mxu0 %v1849
    %v1851 = vand.u32 %v1617, 4294901760
    %1852 = vmatmul.f32.gmra.mxu0 %v1851
    %v1853 = vpop.f32.mrf.mxu0
    %v1854 = vadd.f32 %v1825, %v1853
    %1855 = vdwg.mxu0
    %1856 = vmatpush.msra.mxu0 0.0
    %1857 = vmatpush.msra.mxu0 0.0
    %1858 = vmatpush.msra.mxu0 0.0
    %1859 = vmatpush.msra.mxu0 0.0
    %1860 = vmatpush.msra.mxu0 0.0
    %1861 = vmatpush.msra.mxu0 0.0
    %1862 = vmatpush.msra.mxu0 0.0
    %1863 = vmatpush.msra.mxu0 0.0
    %v1864 = vand.u32 %v40, 4294901760
    %1865 = vmatpush.msra.mxu0 %v1864
    %v1866 = vand.u32 %v38, 4294901760
    %1867 = vmatpush.msra.mxu0 %v1866
    %v1868 = vand.u32 %v36, 4294901760
    %1869 = vmatpush.msra.mxu0 %v1868
    %v1870 = vand.u32 %v34, 4294901760
    %1871 = vmatpush.msra.mxu0 %v1870
    %v1872 = vand.u32 %v32, 4294901760
    %1873 = vmatpush.msra.mxu0 %v1872
    %v1874 = vand.u32 %v30, 4294901760
    %1875 = vmatpush.msra.mxu0 %v1874
    %v1876 = vand.u32 %v28, 4294901760
    %1877 = vmatpush.msra.mxu0 %v1876
    %v1878 = vand.u32 %v26, 4294901760
    %1879 = vmatpush.msra.mxu0 %v1878
    %v1880 = vand.u32 %v1617, 4294901760
    %v1881 = vsub.f32 %v1617, %v1880
    %v1882 = vand.u32 %v1881, 4294901760
    %v1883 = vsub.f32 %v1881, %v1882
    %v1884 = vand.u32 %v1883, 4294901760
    %1885 = vmatmul.f32.gmra.mxu0 %v1884
    %v1886 = vpop.f32.mrf.mxu0
    %v1887 = vadd.f32 0.0, %v1886
    %1888 = vdwg.mxu0
    %1889 = vmatpush.msra.mxu0 0.0
    %1890 = vmatpush.msra.mxu0 0.0
    %1891 = vmatpush.msra.mxu0 0.0
    %1892 = vmatpush.msra.mxu0 0.0
    %1893 = vmatpush.msra.mxu0 0.0
    %1894 = vmatpush.msra.mxu0 0.0
    %1895 = vmatpush.msra.mxu0 0.0
    %1896 = vmatpush.msra.mxu0 0.0
    %v1897 = vand.u32 %v40, 4294901760
    %v1898 = vsub.f32 %v40, %v1897
    %v1899 = vand.u32 %v1898, 4294901760
    %v1900 = vsub.f32 %v1898, %v1899
    %v1901 = vand.u32 %v1900, 4294901760
    %1902 = vmatpush.msra.mxu0 %v1901
    %v1903 = vand.u32 %v38, 4294901760
    %v1904 = vsub.f32 %v38, %v1903
    %v1905 = vand.u32 %v1904, 4294901760
    %v1906 = vsub.f32 %v1904, %v1905
    %v1907 = vand.u32 %v1906, 4294901760
    %1908 = vmatpush.msra.mxu0 %v1907
    %v1909 = vand.u32 %v36, 4294901760
    %v1910 = vsub.f32 %v36, %v1909
    %v1911 = vand.u32 %v1910, 4294901760
    %v1912 = vsub.f32 %v1910, %v1911
    %v1913 = vand.u32 %v1912, 4294901760
    %1914 = vmatpush.msra.mxu0 %v1913
    %v1915 = vand.u32 %v34, 4294901760
    %v1916 = vsub.f32 %v34, %v1915
    %v1917 = vand.u32 %v1916, 4294901760
    %v1918 = vsub.f32 %v1916, %v1917
    %v1919 = vand.u32 %v1918, 4294901760
    %1920 = vmatpush.msra.mxu0 %v1919
    %v1921 = vand.u32 %v32, 4294901760
    %v1922 = vsub.f32 %v32, %v1921
    %v1923 = vand.u32 %v1922, 4294901760
    %v1924 = vsub.f32 %v1922, %v1923
    %v1925 = vand.u32 %v1924, 4294901760
    %1926 = vmatpush.msra.mxu0 %v1925
    %v1927 = vand.u32 %v30, 4294901760
    %v1928 = vsub.f32 %v30, %v1927
    %v1929 = vand.u32 %v1928, 4294901760
    %v1930 = vsub.f32 %v1928, %v1929
    %v1931 = vand.u32 %v1930, 4294901760
    %1932 = vmatpush.msra.mxu0 %v1931
    %v1933 = vand.u32 %v28, 4294901760
    %v1934 = vsub.f32 %v28, %v1933
    %v1935 = vand.u32 %v1934, 4294901760
    %v1936 = vsub.f32 %v1934, %v1935
    %v1937 = vand.u32 %v1936, 4294901760
    %1938 = vmatpush.msra.mxu0 %v1937
    %v1939 = vand.u32 %v26, 4294901760
    %v1940 = vsub.f32 %v26, %v1939
    %v1941 = vand.u32 %v1940, 4294901760
    %v1942 = vsub.f32 %v1940, %v1941
    %v1943 = vand.u32 %v1942, 4294901760
    %1944 = vmatpush.msra.mxu0 %v1943
    %v1945 = vand.u32 %v1617, 4294901760
    %1946 = vmatmul.f32.gmra.mxu0 %v1945
    %v1947 = vpop.f32.mrf.mxu0
    %v1948 = vadd.f32 %v1887, %v1947
    %1949 = vdwg.mxu0
    %1950 = vmatpush.msra.mxu0 0.0
    %1951 = vmatpush.msra.mxu0 0.0
    %1952 = vmatpush.msra.mxu0 0.0
    %1953 = vmatpush.msra.mxu0 0.0
    %1954 = vmatpush.msra.mxu0 0.0
    %1955 = vmatpush.msra.mxu0 0.0
    %1956 = vmatpush.msra.mxu0 0.0
    %1957 = vmatpush.msra.mxu0 0.0
    %v1958 = vand.u32 %v40, 4294901760
    %v1959 = vsub.f32 %v40, %v1958
    %1960 = vmatpush.msra.mxu0 %v1959
    %v1961 = vand.u32 %v38, 4294901760
    %v1962 = vsub.f32 %v38, %v1961
    %1963 = vmatpush.msra.mxu0 %v1962
    %v1964 = vand.u32 %v36, 4294901760
    %v1965 = vsub.f32 %v36, %v1964
    %1966 = vmatpush.msra.mxu0 %v1965
    %v1967 = vand.u32 %v34, 4294901760
    %v1968 = vsub.f32 %v34, %v1967
    %1969 = vmatpush.msra.mxu0 %v1968
    %v1970 = vand.u32 %v32, 4294901760
    %v1971 = vsub.f32 %v32, %v1970
    %1972 = vmatpush.msra.mxu0 %v1971
    %v1973 = vand.u32 %v30, 4294901760
    %v1974 = vsub.f32 %v30, %v1973
    %1975 = vmatpush.msra.mxu0 %v1974
    %v1976 = vand.u32 %v28, 4294901760
    %v1977 = vsub.f32 %v28, %v1976
    %1978 = vmatpush.msra.mxu0 %v1977
    %v1979 = vand.u32 %v26, 4294901760
    %v1980 = vsub.f32 %v26, %v1979
    %1981 = vmatpush.msra.mxu0 %v1980
    %v1982 = vand.u32 %v1617, 4294901760
    %v1983 = vsub.f32 %v1617, %v1982
    %1984 = vmatmul.f32.gmra.mxu0 %v1983
    %v1985 = vpop.f32.mrf.mxu0
    %v1986 = vadd.f32 %v1948, %v1985
    %1987 = vdwg.mxu0
    %1988 = vmatpush.msra.mxu0 0.0
    %1989 = vmatpush.msra.mxu0 0.0
    %1990 = vmatpush.msra.mxu0 0.0
    %1991 = vmatpush.msra.mxu0 0.0
    %1992 = vmatpush.msra.mxu0 0.0
    %1993 = vmatpush.msra.mxu0 0.0
    %1994 = vmatpush.msra.mxu0 0.0
    %1995 = vmatpush.msra.mxu0 0.0
    %v1996 = vand.u32 %v40, 4294901760
    %1997 = vmatpush.msra.mxu0 %v1996
    %v1998 = vand.u32 %v38, 4294901760
    %1999 = vmatpush.msra.mxu0 %v1998
    %v2000 = vand.u32 %v36, 4294901760
    %2001 = vmatpush.msra.mxu0 %v2000
    %v2002 = vand.u32 %v34, 4294901760
    %2003 = vmatpush.msra.mxu0 %v2002
    %v2004 = vand.u32 %v32, 4294901760
    %2005 = vmatpush.msra.mxu0 %v2004
    %v2006 = vand.u32 %v30, 4294901760
    %2007 = vmatpush.msra.mxu0 %v2006
    %v2008 = vand.u32 %v28, 4294901760
    %2009 = vmatpush.msra.mxu0 %v2008
    %v2010 = vand.u32 %v26, 4294901760
    %2011 = vmatpush.msra.mxu0 %v2010
    %v2012 = vand.u32 %v1617, 4294901760
    %v2013 = vsub.f32 %v1617, %v2012
    %v2014 = vand.u32 %v2013, 4294901760
    %2015 = vmatmul.f32.gmra.mxu0 %v2014
    %v2016 = vpop.f32.mrf.mxu0
    %v2017 = vadd.f32 %v1986, %v2016
    %2018 = vdwg.mxu0
    %2019 = vmatpush.msra.mxu0 0.0
    %2020 = vmatpush.msra.mxu0 0.0
    %2021 = vmatpush.msra.mxu0 0.0
    %2022 = vmatpush.msra.mxu0 0.0
    %2023 = vmatpush.msra.mxu0 0.0
    %2024 = vmatpush.msra.mxu0 0.0
    %2025 = vmatpush.msra.mxu0 0.0
    %2026 = vmatpush.msra.mxu0 0.0
    %v2027 = vand.u32 %v40, 4294901760
    %v2028 = vsub.f32 %v40, %v2027
    %v2029 = vand.u32 %v2028, 4294901760
    %2030 = vmatpush.msra.mxu0 %v2029
    %v2031 = vand.u32 %v38, 4294901760
    %v2032 = vsub.f32 %v38, %v2031
    %v2033 = vand.u32 %v2032, 4294901760
    %2034 = vmatpush.msra.mxu0 %v2033
    %v2035 = vand.u32 %v36, 4294901760
    %v2036 = vsub.f32 %v36, %v2035
    %v2037 = vand.u32 %v2036, 4294901760
    %2038 = vmatpush.msra.mxu0 %v2037
    %v2039 = vand.u32 %v34, 4294901760
    %v2040 = vsub.f32 %v34, %v2039
    %v2041 = vand.u32 %v2040, 4294901760
    %2042 = vmatpush.msra.mxu0 %v2041
    %v2043 = vand.u32 %v32, 4294901760
    %v2044 = vsub.f32 %v32, %v2043
    %v2045 = vand.u32 %v2044, 4294901760
    %2046 = vmatpush.msra.mxu0 %v2045
    %v2047 = vand.u32 %v30, 4294901760
    %v2048 = vsub.f32 %v30, %v2047
    %v2049 = vand.u32 %v2048, 4294901760
    %2050 = vmatpush.msra.mxu0 %v2049
    %v2051 = vand.u32 %v28, 4294901760
    %v2052 = vsub.f32 %v28, %v2051
    %v2053 = vand.u32 %v2052, 4294901760
    %2054 = vmatpush.msra.mxu0 %v2053
    %v2055 = vand.u32 %v26, 4294901760
    %v2056 = vsub.f32 %v26, %v2055
    %v2057 = vand.u32 %v2056, 4294901760
    %2058 = vmatpush.msra.mxu0 %v2057
    %v2059 = vand.u32 %v1617, 4294901760
    %2060 = vmatmul.f32.gmra.mxu0 %v2059
    %v2061 = vpop.f32.mrf.mxu0
    %v2062 = vadd.f32 %v2017, %v2061
    %2063 = vdwg.mxu0
    %2064 = vmatpush.msra.mxu0 0.0
    %2065 = vmatpush.msra.mxu0 0.0
    %2066 = vmatpush.msra.mxu0 0.0
    %2067 = vmatpush.msra.mxu0 0.0
    %2068 = vmatpush.msra.mxu0 0.0
    %2069 = vmatpush.msra.mxu0 0.0
    %2070 = vmatpush.msra.mxu0 0.0
    %2071 = vmatpush.msra.mxu0 0.0
    %v2072 = vand.u32 %v40, 4294901760
    %2073 = vmatpush.msra.mxu0 %v2072
    %v2074 = vand.u32 %v38, 4294901760
    %2075 = vmatpush.msra.mxu0 %v2074
    %v2076 = vand.u32 %v36, 4294901760
    %2077 = vmatpush.msra.mxu0 %v2076
    %v2078 = vand.u32 %v34, 4294901760
    %2079 = vmatpush.msra.mxu0 %v2078
    %v2080 = vand.u32 %v32, 4294901760
    %2081 = vmatpush.msra.mxu0 %v2080
    %v2082 = vand.u32 %v30, 4294901760
    %2083 = vmatpush.msra.mxu0 %v2082
    %v2084 = vand.u32 %v28, 4294901760
    %2085 = vmatpush.msra.mxu0 %v2084
    %v2086 = vand.u32 %v26, 4294901760
    %2087 = vmatpush.msra.mxu0 %v2086
    %v2088 = vand.u32 %v1617, 4294901760
    %2089 = vmatmul.f32.gmra.mxu0 %v2088
    %v2090 = vpop.f32.mrf.mxu0
    %v2091 = vadd.f32 %v2062, %v2090
    %2092 = vdwg.mxu0
    %v2095 = vrot.slane %v2091, 6
    %v2096 = vsel %vm534, %v1854, %v2095
    %v2098 = vadd.f32 %v1613, %v2096
    %v2099 = vmul.f32 %v2098, 0.5
    %2101 = vst [vmem:[#allocation1] ss:$4 sm:$0xff] %v2098
    %v2102 = vld.sshfl [vmem:[#allocation1] sm:$0xff pattern:$0x73625140]
    %v2103 = vld.sshfl [vmem:[#allocation1 + $0x8] sm:$0xff pattern:$0x73625140]
    %2107 = vst [vmem:[#allocation1] ss:$4 sm:$0xff] %v2099
    %v2108 = vld.sshfl [vmem:[#allocation1] sm:$0xff pattern:$0x73625140]
    %v2109 = vld.sshfl [vmem:[#allocation1 + $0x8] sm:$0xff pattern:$0x73625140]
    %v2112 = vsel %vm48, %v2102, %v2108
    %v2113 = vsel %vm49, %v2103, %v2109
    %v2114 = vtanh.pop %v2112
    %v2115 = vtanh.pop %v2113
    %v2116 = vmul.f32 %v2114, 0.5
    %v2117 = vmul.f32 %v2115, 0.5
    %v2118 = vadd.f32 %v2116, 0.5
    %v2119 = vadd.f32 %v2117, 0.5
    %v2120 = vsel %vm48, %v2114, %v2118
    %v2121 = vsel %vm49, %v2115, %v2119
    %v2122 = vmul.f32 %v2120, %v1609
    %v2123 = vmul.f32 %v2120, %v2121
    %2125 = vrot.lane.b32.xlu0 %v2123, 64
    %v2126 = vpop.permute.xlu0 %2125
    %v2128 = vadd.f32 %v2122, %v2126
    %v2129 = vtanh.pop %v2128
    %v2130 = vmul.f32 %v2121, %v2129
    %s2131 = scalar_lea.vmem %s0, 16
    %v2132 = vld [vmem:[%s2131] sm:$0xf]
    %2134 = vrot.lane.b32.xlu0 %v2130, 64
    %v2135 = vpop.permute.xlu0 %2134
    %v2136 = vsel %vm53, %v2135, 0
    %2138 = vmatpush.msra.mxu0 0.0
    %2139 = vmatpush.msra.mxu0 0.0
    %2140 = vmatpush.msra.mxu0 0.0
    %2141 = vmatpush.msra.mxu0 0.0
    %2142 = vmatpush.msra.mxu0 0.0
    %2143 = vmatpush.msra.mxu0 0.0
    %2144 = vmatpush.msra.mxu0 0.0
    %2145 = vmatpush.msra.mxu0 0.0
    %v2146 = vand.u32 %v39, 4294901760
    %2147 = vmatpush.msra.mxu0 %v2146
    %v2148 = vand.u32 %v37, 4294901760
    %2149 = vmatpush.msra.mxu0 %v2148
    %v2150 = vand.u32 %v35, 4294901760
    %2151 = vmatpush.msra.mxu0 %v2150
    %v2152 = vand.u32 %v33, 4294901760
    %2153 = vmatpush.msra.mxu0 %v2152
    %v2154 = vand.u32 %v31, 4294901760
    %2155 = vmatpush.msra.mxu0 %v2154
    %v2156 = vand.u32 %v29, 4294901760
    %2157 = vmatpush.msra.mxu0 %v2156
    %v2158 = vand.u32 %v27, 4294901760
    %2159 = vmatpush.msra.mxu0 %v2158
    %v2160 = vand.u32 %v25, 4294901760
    %2161 = vmatpush.msra.mxu0 %v2160
    %v2162 = vand.u32 %v2136, 4294901760
    %v2163 = vsub.f32 %v2136, %v2162
    %v2164 = vand.u32 %v2163, 4294901760
    %v2165 = vsub.f32 %v2163, %v2164
    %v2166 = vand.u32 %v2165, 4294901760
    %2167 = vmatmul.f32.gmra.mxu0 %v2166
    %v2168 = vpop.f32.mrf.mxu0
    %v2169 = vadd.f32 0.0, %v2168
    %2170 = vdwg.mxu0
    %2171 = vmatpush.msra.mxu0 0.0
    %2172 = vmatpush.msra.mxu0 0.0
    %2173 = vmatpush.msra.mxu0 0.0
    %2174 = vmatpush.msra.mxu0 0.0
    %2175 = vmatpush.msra.mxu0 0.0
    %2176 = vmatpush.msra.mxu0 0.0
    %2177 = vmatpush.msra.mxu0 0.0
    %2178 = vmatpush.msra.mxu0 0.0
    %v2179 = vand.u32 %v39, 4294901760
    %v2180 = vsub.f32 %v39, %v2179
    %v2181 = vand.u32 %v2180, 4294901760
    %v2182 = vsub.f32 %v2180, %v2181
    %v2183 = vand.u32 %v2182, 4294901760
    %2184 = vmatpush.msra.mxu0 %v2183
    %v2185 = vand.u32 %v37, 4294901760
    %v2186 = vsub.f32 %v37, %v2185
    %v2187 = vand.u32 %v2186, 4294901760
    %v2188 = vsub.f32 %v2186, %v2187
    %v2189 = vand.u32 %v2188, 4294901760
    %2190 = vmatpush.msra.mxu0 %v2189
    %v2191 = vand.u32 %v35, 4294901760
    %v2192 = vsub.f32 %v35, %v2191
    %v2193 = vand.u32 %v2192, 4294901760
    %v2194 = vsub.f32 %v2192, %v2193
    %v2195 = vand.u32 %v2194, 4294901760
    %2196 = vmatpush.msra.mxu0 %v2195
    %v2197 = vand.u32 %v33, 4294901760
    %v2198 = vsub.f32 %v33, %v2197
    %v2199 = vand.u32 %v2198, 4294901760
    %v2200 = vsub.f32 %v2198, %v2199
    %v2201 = vand.u32 %v2200, 4294901760
    %2202 = vmatpush.msra.mxu0 %v2201
    %v2203 = vand.u32 %v31, 4294901760
    %v2204 = vsub.f32 %v31, %v2203
    %v2205 = vand.u32 %v2204, 4294901760
    %v2206 = vsub.f32 %v2204, %v2205
    %v2207 = vand.u32 %v2206, 4294901760
    %2208 = vmatpush.msra.mxu0 %v2207
    %v2209 = vand.u32 %v29, 4294901760
    %v2210 = vsub.f32 %v29, %v2209
    %v2211 = vand.u32 %v2210, 4294901760
    %v2212 = vsub.f32 %v2210, %v2211
    %v2213 = vand.u32 %v2212, 4294901760
    %2214 = vmatpush.msra.mxu0 %v2213
    %v2215 = vand.u32 %v27, 4294901760
    %v2216 = vsub.f32 %v27, %v2215
    %v2217 = vand.u32 %v2216, 4294901760
    %v2218 = vsub.f32 %v2216, %v2217
    %v2219 = vand.u32 %v2218, 4294901760
    %2220 = vmatpush.msra.mxu0 %v2219
    %v2221 = vand.u32 %v25, 4294901760
    %v2222 = vsub.f32 %v25, %v2221
    %v2223 = vand.u32 %v2222, 4294901760
    %v2224 = vsub.f32 %v2222, %v2223
    %v2225 = vand.u32 %v2224, 4294901760
    %2226 = vmatpush.msra.mxu0 %v2225
    %v2227 = vand.u32 %v2136, 4294901760
    %2228 = vmatmul.f32.gmra.mxu0 %v2227
    %v2229 = vpop.f32.mrf.mxu0
    %v2230 = vadd.f32 %v2169, %v2229
    %2231 = vdwg.mxu0
    %2232 = vmatpush.msra.mxu0 0.0
    %2233 = vmatpush.msra.mxu0 0.0
    %2234 = vmatpush.msra.mxu0 0.0
    %2235 = vmatpush.msra.mxu0 0.0
    %2236 = vmatpush.msra.mxu0 0.0
    %2237 = vmatpush.msra.mxu0 0.0
    %2238 = vmatpush.msra.mxu0 0.0
    %2239 = vmatpush.msra.mxu0 0.0
    %v2240 = vand.u32 %v39, 4294901760
    %v2241 = vsub.f32 %v39, %v2240
    %2242 = vmatpush.msra.mxu0 %v2241
    %v2243 = vand.u32 %v37, 4294901760
    %v2244 = vsub.f32 %v37, %v2243
    %2245 = vmatpush.msra.mxu0 %v2244
    %v2246 = vand.u32 %v35, 4294901760
    %v2247 = vsub.f32 %v35, %v2246
    %2248 = vmatpush.msra.mxu0 %v2247
    %v2249 = vand.u32 %v33, 4294901760
    %v2250 = vsub.f32 %v33, %v2249
    %2251 = vmatpush.msra.mxu0 %v2250
    %v2252 = vand.u32 %v31, 4294901760
    %v2253 = vsub.f32 %v31, %v2252
    %2254 = vmatpush.msra.mxu0 %v2253
    %v2255 = vand.u32 %v29, 4294901760
    %v2256 = vsub.f32 %v29, %v2255
    %2257 = vmatpush.msra.mxu0 %v2256
    %v2258 = vand.u32 %v27, 4294901760
    %v2259 = vsub.f32 %v27, %v2258
    %2260 = vmatpush.msra.mxu0 %v2259
    %v2261 = vand.u32 %v25, 4294901760
    %v2262 = vsub.f32 %v25, %v2261
    %2263 = vmatpush.msra.mxu0 %v2262
    %v2264 = vand.u32 %v2136, 4294901760
    %v2265 = vsub.f32 %v2136, %v2264
    %2266 = vmatmul.f32.gmra.mxu0 %v2265
    %v2267 = vpop.f32.mrf.mxu0
    %v2268 = vadd.f32 %v2230, %v2267
    %2269 = vdwg.mxu0
    %2270 = vmatpush.msra.mxu0 0.0
    %2271 = vmatpush.msra.mxu0 0.0
    %2272 = vmatpush.msra.mxu0 0.0
    %2273 = vmatpush.msra.mxu0 0.0
    %2274 = vmatpush.msra.mxu0 0.0
    %2275 = vmatpush.msra.mxu0 0.0
    %2276 = vmatpush.msra.mxu0 0.0
    %2277 = vmatpush.msra.mxu0 0.0
    %v2278 = vand.u32 %v39, 4294901760
    %2279 = vmatpush.msra.mxu0 %v2278
    %v2280 = vand.u32 %v37, 4294901760
    %2281 = vmatpush.msra.mxu0 %v2280
    %v2282 = vand.u32 %v35, 4294901760
    %2283 = vmatpush.msra.mxu0 %v2282
    %v2284 = vand.u32 %v33, 4294901760
    %2285 = vmatpush.msra.mxu0 %v2284
    %v2286 = vand.u32 %v31, 4294901760
    %2287 = vmatpush.msra.mxu0 %v2286
    %v2288 = vand.u32 %v29, 4294901760
    %2289 = vmatpush.msra.mxu0 %v2288
    %v2290 = vand.u32 %v27, 4294901760
    %2291 = vmatpush.msra.mxu0 %v2290
    %v2292 = vand.u32 %v25, 4294901760
    %2293 = vmatpush.msra.mxu0 %v2292
    %v2294 = vand.u32 %v2136, 4294901760
    %v2295 = vsub.f32 %v2136, %v2294
    %v2296 = vand.u32 %v2295, 4294901760
    %2297 = vmatmul.f32.gmra.mxu0 %v2296
    %v2298 = vpop.f32.mrf.mxu0
    %v2299 = vadd.f32 %v2268, %v2298
    %2300 = vdwg.mxu0
    %2301 = vmatpush.msra.mxu0 0.0
    %2302 = vmatpush.msra.mxu0 0.0
    %2303 = vmatpush.msra.mxu0 0.0
    %2304 = vmatpush.msra.mxu0 0.0
    %2305 = vmatpush.msra.mxu0 0.0
    %2306 = vmatpush.msra.mxu0 0.0
    %2307 = vmatpush.msra.mxu0 0.0
    %2308 = vmatpush.msra.mxu0 0.0
    %v2309 = vand.u32 %v39, 4294901760
    %v2310 = vsub.f32 %v39, %v2309
    %v2311 = vand.u32 %v2310, 4294901760
    %2312 = vmatpush.msra.mxu0 %v2311
    %v2313 = vand.u32 %v37, 4294901760
    %v2314 = vsub.f32 %v37, %v2313
    %v2315 = vand.u32 %v2314, 4294901760
    %2316 = vmatpush.msra.mxu0 %v2315
    %v2317 = vand.u32 %v35, 4294901760
    %v2318 = vsub.f32 %v35, %v2317
    %v2319 = vand.u32 %v2318, 4294901760
    %2320 = vmatpush.msra.mxu0 %v2319
    %v2321 = vand.u32 %v33, 4294901760
    %v2322 = vsub.f32 %v33, %v2321
    %v2323 = vand.u32 %v2322, 4294901760
    %2324 = vmatpush.msra.mxu0 %v2323
    %v2325 = vand.u32 %v31, 4294901760
    %v2326 = vsub.f32 %v31, %v2325
    %v2327 = vand.u32 %v2326, 4294901760
    %2328 = vmatpush.msra.mxu0 %v2327
    %v2329 = vand.u32 %v29, 4294901760
    %v2330 = vsub.f32 %v29, %v2329
    %v2331 = vand.u32 %v2330, 4294901760
    %2332 = vmatpush.msra.mxu0 %v2331
    %v2333 = vand.u32 %v27, 4294901760
    %v2334 = vsub.f32 %v27, %v2333
    %v2335 = vand.u32 %v2334, 4294901760
    %2336 = vmatpush.msra.mxu0 %v2335
    %v2337 = vand.u32 %v25, 4294901760
    %v2338 = vsub.f32 %v25, %v2337
    %v2339 = vand.u32 %v2338, 4294901760
    %2340 = vmatpush.msra.mxu0 %v2339
    %v2341 = vand.u32 %v2136, 4294901760
    %2342 = vmatmul.f32.gmra.mxu0 %v2341
    %v2343 = vpop.f32.mrf.mxu0
    %v2344 = vadd.f32 %v2299, %v2343
    %2345 = vdwg.mxu0
    %2346 = vmatpush.msra.mxu0 0.0
    %2347 = vmatpush.msra.mxu0 0.0
    %2348 = vmatpush.msra.mxu0 0.0
    %2349 = vmatpush.msra.mxu0 0.0
    %2350 = vmatpush.msra.mxu0 0.0
    %2351 = vmatpush.msra.mxu0 0.0
    %2352 = vmatpush.msra.mxu0 0.0
    %2353 = vmatpush.msra.mxu0 0.0
    %v2354 = vand.u32 %v39, 4294901760
    %2355 = vmatpush.msra.mxu0 %v2354
    %v2356 = vand.u32 %v37, 4294901760
    %2357 = vmatpush.msra.mxu0 %v2356
    %v2358 = vand.u32 %v35, 4294901760
    %2359 = vmatpush.msra.mxu0 %v2358
    %v2360 = vand.u32 %v33, 4294901760
    %2361 = vmatpush.msra.mxu0 %v2360
    %v2362 = vand.u32 %v31, 4294901760
    %2363 = vmatpush.msra.mxu0 %v2362
    %v2364 = vand.u32 %v29, 4294901760
    %2365 = vmatpush.msra.mxu0 %v2364
    %v2366 = vand.u32 %v27, 4294901760
    %2367 = vmatpush.msra.mxu0 %v2366
    %v2368 = vand.u32 %v25, 4294901760
    %2369 = vmatpush.msra.mxu0 %v2368
    %v2370 = vand.u32 %v2136, 4294901760
    %2371 = vmatmul.f32.gmra.mxu0 %v2370
    %v2372 = vpop.f32.mrf.mxu0
    %v2373 = vadd.f32 %v2344, %v2372
    %2374 = vdwg.mxu0
    %2375 = vmatpush.msra.mxu0 0.0
    %2376 = vmatpush.msra.mxu0 0.0
    %2377 = vmatpush.msra.mxu0 0.0
    %2378 = vmatpush.msra.mxu0 0.0
    %2379 = vmatpush.msra.mxu0 0.0
    %2380 = vmatpush.msra.mxu0 0.0
    %2381 = vmatpush.msra.mxu0 0.0
    %2382 = vmatpush.msra.mxu0 0.0
    %v2383 = vand.u32 %v40, 4294901760
    %2384 = vmatpush.msra.mxu0 %v2383
    %v2385 = vand.u32 %v38, 4294901760
    %2386 = vmatpush.msra.mxu0 %v2385
    %v2387 = vand.u32 %v36, 4294901760
    %2388 = vmatpush.msra.mxu0 %v2387
    %v2389 = vand.u32 %v34, 4294901760
    %2390 = vmatpush.msra.mxu0 %v2389
    %v2391 = vand.u32 %v32, 4294901760
    %2392 = vmatpush.msra.mxu0 %v2391
    %v2393 = vand.u32 %v30, 4294901760
    %2394 = vmatpush.msra.mxu0 %v2393
    %v2395 = vand.u32 %v28, 4294901760
    %2396 = vmatpush.msra.mxu0 %v2395
    %v2397 = vand.u32 %v26, 4294901760
    %2398 = vmatpush.msra.mxu0 %v2397
    %v2399 = vand.u32 %v2136, 4294901760
    %v2400 = vsub.f32 %v2136, %v2399
    %v2401 = vand.u32 %v2400, 4294901760
    %v2402 = vsub.f32 %v2400, %v2401
    %v2403 = vand.u32 %v2402, 4294901760
    %2404 = vmatmul.f32.gmra.mxu0 %v2403
    %v2405 = vpop.f32.mrf.mxu0
    %v2406 = vadd.f32 0.0, %v2405
    %2407 = vdwg.mxu0
    %2408 = vmatpush.msra.mxu0 0.0
    %2409 = vmatpush.msra.mxu0 0.0
    %2410 = vmatpush.msra.mxu0 0.0
    %2411 = vmatpush.msra.mxu0 0.0
    %2412 = vmatpush.msra.mxu0 0.0
    %2413 = vmatpush.msra.mxu0 0.0
    %2414 = vmatpush.msra.mxu0 0.0
    %2415 = vmatpush.msra.mxu0 0.0
    %v2416 = vand.u32 %v40, 4294901760
    %v2417 = vsub.f32 %v40, %v2416
    %v2418 = vand.u32 %v2417, 4294901760
    %v2419 = vsub.f32 %v2417, %v2418
    %v2420 = vand.u32 %v2419, 4294901760
    %2421 = vmatpush.msra.mxu0 %v2420
    %v2422 = vand.u32 %v38, 4294901760
    %v2423 = vsub.f32 %v38, %v2422
    %v2424 = vand.u32 %v2423, 4294901760
    %v2425 = vsub.f32 %v2423, %v2424
    %v2426 = vand.u32 %v2425, 4294901760
    %2427 = vmatpush.msra.mxu0 %v2426
    %v2428 = vand.u32 %v36, 4294901760
    %v2429 = vsub.f32 %v36, %v2428
    %v2430 = vand.u32 %v2429, 4294901760
    %v2431 = vsub.f32 %v2429, %v2430
    %v2432 = vand.u32 %v2431, 4294901760
    %2433 = vmatpush.msra.mxu0 %v2432
    %v2434 = vand.u32 %v34, 4294901760
    %v2435 = vsub.f32 %v34, %v2434
    %v2436 = vand.u32 %v2435, 4294901760
    %v2437 = vsub.f32 %v2435, %v2436
    %v2438 = vand.u32 %v2437, 4294901760
    %2439 = vmatpush.msra.mxu0 %v2438
    %v2440 = vand.u32 %v32, 4294901760
    %v2441 = vsub.f32 %v32, %v2440
    %v2442 = vand.u32 %v2441, 4294901760
    %v2443 = vsub.f32 %v2441, %v2442
    %v2444 = vand.u32 %v2443, 4294901760
    %2445 = vmatpush.msra.mxu0 %v2444
    %v2446 = vand.u32 %v30, 4294901760
    %v2447 = vsub.f32 %v30, %v2446
    %v2448 = vand.u32 %v2447, 4294901760
    %v2449 = vsub.f32 %v2447, %v2448
    %v2450 = vand.u32 %v2449, 4294901760
    %2451 = vmatpush.msra.mxu0 %v2450
    %v2452 = vand.u32 %v28, 4294901760
    %v2453 = vsub.f32 %v28, %v2452
    %v2454 = vand.u32 %v2453, 4294901760
    %v2455 = vsub.f32 %v2453, %v2454
    %v2456 = vand.u32 %v2455, 4294901760
    %2457 = vmatpush.msra.mxu0 %v2456
    %v2458 = vand.u32 %v26, 4294901760
    %v2459 = vsub.f32 %v26, %v2458
    %v2460 = vand.u32 %v2459, 4294901760
    %v2461 = vsub.f32 %v2459, %v2460
    %v2462 = vand.u32 %v2461, 4294901760
    %2463 = vmatpush.msra.mxu0 %v2462
    %v2464 = vand.u32 %v2136, 4294901760
    %2465 = vmatmul.f32.gmra.mxu0 %v2464
    %v2466 = vpop.f32.mrf.mxu0
    %v2467 = vadd.f32 %v2406, %v2466
    %2468 = vdwg.mxu0
    %2469 = vmatpush.msra.mxu0 0.0
    %2470 = vmatpush.msra.mxu0 0.0
    %2471 = vmatpush.msra.mxu0 0.0
    %2472 = vmatpush.msra.mxu0 0.0
    %2473 = vmatpush.msra.mxu0 0.0
    %2474 = vmatpush.msra.mxu0 0.0
    %2475 = vmatpush.msra.mxu0 0.0
    %2476 = vmatpush.msra.mxu0 0.0
    %v2477 = vand.u32 %v40, 4294901760
    %v2478 = vsub.f32 %v40, %v2477
    %2479 = vmatpush.msra.mxu0 %v2478
    %v2480 = vand.u32 %v38, 4294901760
    %v2481 = vsub.f32 %v38, %v2480
    %2482 = vmatpush.msra.mxu0 %v2481
    %v2483 = vand.u32 %v36, 4294901760
    %v2484 = vsub.f32 %v36, %v2483
    %2485 = vmatpush.msra.mxu0 %v2484
    %v2486 = vand.u32 %v34, 4294901760
    %v2487 = vsub.f32 %v34, %v2486
    %2488 = vmatpush.msra.mxu0 %v2487
    %v2489 = vand.u32 %v32, 4294901760
    %v2490 = vsub.f32 %v32, %v2489
    %2491 = vmatpush.msra.mxu0 %v2490
    %v2492 = vand.u32 %v30, 4294901760
    %v2493 = vsub.f32 %v30, %v2492
    %2494 = vmatpush.msra.mxu0 %v2493
    %v2495 = vand.u32 %v28, 4294901760
    %v2496 = vsub.f32 %v28, %v2495
    %2497 = vmatpush.msra.mxu0 %v2496
    %v2498 = vand.u32 %v26, 4294901760
    %v2499 = vsub.f32 %v26, %v2498
    %2500 = vmatpush.msra.mxu0 %v2499
    %v2501 = vand.u32 %v2136, 4294901760
    %v2502 = vsub.f32 %v2136, %v2501
    %2503 = vmatmul.f32.gmra.mxu0 %v2502
    %v2504 = vpop.f32.mrf.mxu0
    %v2505 = vadd.f32 %v2467, %v2504
    %2506 = vdwg.mxu0
    %2507 = vmatpush.msra.mxu0 0.0
    %2508 = vmatpush.msra.mxu0 0.0
    %2509 = vmatpush.msra.mxu0 0.0
    %2510 = vmatpush.msra.mxu0 0.0
    %2511 = vmatpush.msra.mxu0 0.0
    %2512 = vmatpush.msra.mxu0 0.0
    %2513 = vmatpush.msra.mxu0 0.0
    %2514 = vmatpush.msra.mxu0 0.0
    %v2515 = vand.u32 %v40, 4294901760
    %2516 = vmatpush.msra.mxu0 %v2515
    %v2517 = vand.u32 %v38, 4294901760
    %2518 = vmatpush.msra.mxu0 %v2517
    %v2519 = vand.u32 %v36, 4294901760
    %2520 = vmatpush.msra.mxu0 %v2519
    %v2521 = vand.u32 %v34, 4294901760
    %2522 = vmatpush.msra.mxu0 %v2521
    %v2523 = vand.u32 %v32, 4294901760
    %2524 = vmatpush.msra.mxu0 %v2523
    %v2525 = vand.u32 %v30, 4294901760
    %2526 = vmatpush.msra.mxu0 %v2525
    %v2527 = vand.u32 %v28, 4294901760
    %2528 = vmatpush.msra.mxu0 %v2527
    %v2529 = vand.u32 %v26, 4294901760
    %2530 = vmatpush.msra.mxu0 %v2529
    %v2531 = vand.u32 %v2136, 4294901760
    %v2532 = vsub.f32 %v2136, %v2531
    %v2533 = vand.u32 %v2532, 4294901760
    %2534 = vmatmul.f32.gmra.mxu0 %v2533
    %v2535 = vpop.f32.mrf.mxu0
    %v2536 = vadd.f32 %v2505, %v2535
    %2537 = vdwg.mxu0
    %2538 = vmatpush.msra.mxu0 0.0
    %2539 = vmatpush.msra.mxu0 0.0
    %2540 = vmatpush.msra.mxu0 0.0
    %2541 = vmatpush.msra.mxu0 0.0
    %2542 = vmatpush.msra.mxu0 0.0
    %2543 = vmatpush.msra.mxu0 0.0
    %2544 = vmatpush.msra.mxu0 0.0
    %2545 = vmatpush.msra.mxu0 0.0
    %v2546 = vand.u32 %v40, 4294901760
    %v2547 = vsub.f32 %v40, %v2546
    %v2548 = vand.u32 %v2547, 4294901760
    %2549 = vmatpush.msra.mxu0 %v2548
    %v2550 = vand.u32 %v38, 4294901760
    %v2551 = vsub.f32 %v38, %v2550
    %v2552 = vand.u32 %v2551, 4294901760
    %2553 = vmatpush.msra.mxu0 %v2552
    %v2554 = vand.u32 %v36, 4294901760
    %v2555 = vsub.f32 %v36, %v2554
    %v2556 = vand.u32 %v2555, 4294901760
    %2557 = vmatpush.msra.mxu0 %v2556
    %v2558 = vand.u32 %v34, 4294901760
    %v2559 = vsub.f32 %v34, %v2558
    %v2560 = vand.u32 %v2559, 4294901760
    %2561 = vmatpush.msra.mxu0 %v2560
    %v2562 = vand.u32 %v32, 4294901760
    %v2563 = vsub.f32 %v32, %v2562
    %v2564 = vand.u32 %v2563, 4294901760
    %2565 = vmatpush.msra.mxu0 %v2564
    %v2566 = vand.u32 %v30, 4294901760
    %v2567 = vsub.f32 %v30, %v2566
    %v2568 = vand.u32 %v2567, 4294901760
    %2569 = vmatpush.msra.mxu0 %v2568
    %v2570 = vand.u32 %v28, 4294901760
    %v2571 = vsub.f32 %v28, %v2570
    %v2572 = vand.u32 %v2571, 4294901760
    %2573 = vmatpush.msra.mxu0 %v2572
    %v2574 = vand.u32 %v26, 4294901760
    %v2575 = vsub.f32 %v26, %v2574
    %v2576 = vand.u32 %v2575, 4294901760
    %2577 = vmatpush.msra.mxu0 %v2576
    %v2578 = vand.u32 %v2136, 4294901760
    %2579 = vmatmul.f32.gmra.mxu0 %v2578
    %v2580 = vpop.f32.mrf.mxu0
    %v2581 = vadd.f32 %v2536, %v2580
    %2582 = vdwg.mxu0
    %2583 = vmatpush.msra.mxu0 0.0
    %2584 = vmatpush.msra.mxu0 0.0
    %2585 = vmatpush.msra.mxu0 0.0
    %2586 = vmatpush.msra.mxu0 0.0
    %2587 = vmatpush.msra.mxu0 0.0
    %2588 = vmatpush.msra.mxu0 0.0
    %2589 = vmatpush.msra.mxu0 0.0
    %2590 = vmatpush.msra.mxu0 0.0
    %v2591 = vand.u32 %v40, 4294901760
    %2592 = vmatpush.msra.mxu0 %v2591
    %v2593 = vand.u32 %v38, 4294901760
    %2594 = vmatpush.msra.mxu0 %v2593
    %v2595 = vand.u32 %v36, 4294901760
    %2596 = vmatpush.msra.mxu0 %v2595
    %v2597 = vand.u32 %v34, 4294901760
    %2598 = vmatpush.msra.mxu0 %v2597
    %v2599 = vand.u32 %v32, 4294901760
    %2600 = vmatpush.msra.mxu0 %v2599
    %v2601 = vand.u32 %v30, 4294901760
    %2602 = vmatpush.msra.mxu0 %v2601
    %v2603 = vand.u32 %v28, 4294901760
    %2604 = vmatpush.msra.mxu0 %v2603
    %v2605 = vand.u32 %v26, 4294901760
    %2606 = vmatpush.msra.mxu0 %v2605
    %v2607 = vand.u32 %v2136, 4294901760
    %2608 = vmatmul.f32.gmra.mxu0 %v2607
    %v2609 = vpop.f32.mrf.mxu0
    %v2610 = vadd.f32 %v2581, %v2609
    %2611 = vdwg.mxu0
    %v2614 = vrot.slane %v2610, 6
    %v2615 = vsel %vm534, %v2373, %v2614
    %v2617 = vadd.f32 %v2132, %v2615
    %v2618 = vmul.f32 %v2617, 0.5
    %2620 = vst [vmem:[#allocation1] ss:$4 sm:$0xff] %v2617
    %v2621 = vld.sshfl [vmem:[#allocation1] sm:$0xff pattern:$0x73625140]
    %v2622 = vld.sshfl [vmem:[#allocation1 + $0x8] sm:$0xff pattern:$0x73625140]
    %2626 = vst [vmem:[#allocation1] ss:$4 sm:$0xff] %v2618
    %v2627 = vld.sshfl [vmem:[#allocation1] sm:$0xff pattern:$0x73625140]
    %v2628 = vld.sshfl [vmem:[#allocation1 + $0x8] sm:$0xff pattern:$0x73625140]
    %v2631 = vsel %vm48, %v2621, %v2627
    %v2632 = vsel %vm49, %v2622, %v2628
    %v2633 = vtanh.pop %v2631
    %v2634 = vtanh.pop %v2632
    %v2635 = vmul.f32 %v2633, 0.5
    %v2636 = vmul.f32 %v2634, 0.5
    %v2637 = vadd.f32 %v2635, 0.5
    %v2638 = vadd.f32 %v2636, 0.5
    %v2639 = vsel %vm48, %v2633, %v2637
    %v2640 = vsel %vm49, %v2634, %v2638
    %v2641 = vmul.f32 %v2639, %v2128
    %v2642 = vmul.f32 %v2639, %v2640
    %2644 = vrot.lane.b32.xlu0 %v2642, 64
    %v2645 = vpop.permute.xlu0 %2644
    %v2647 = vadd.f32 %v2641, %v2645
    %v2648 = vtanh.pop %v2647
    %v2649 = vmul.f32 %v2640, %v2648
    %s2650 = scalar_lea.vmem %s0, 20
    %v2651 = vld [vmem:[%s2650] sm:$0xf]
    %2653 = vrot.lane.b32.xlu0 %v2649, 64
    %v2654 = vpop.permute.xlu0 %2653
    %v2655 = vsel %vm53, %v2654, 0
    %2657 = vmatpush.msra.mxu0 0.0
    %2658 = vmatpush.msra.mxu0 0.0
    %2659 = vmatpush.msra.mxu0 0.0
    %2660 = vmatpush.msra.mxu0 0.0
    %2661 = vmatpush.msra.mxu0 0.0
    %2662 = vmatpush.msra.mxu0 0.0
    %2663 = vmatpush.msra.mxu0 0.0
    %2664 = vmatpush.msra.mxu0 0.0
    %v2665 = vand.u32 %v39, 4294901760
    %2666 = vmatpush.msra.mxu0 %v2665
    %v2667 = vand.u32 %v37, 4294901760
    %2668 = vmatpush.msra.mxu0 %v2667
    %v2669 = vand.u32 %v35, 4294901760
    %2670 = vmatpush.msra.mxu0 %v2669
    %v2671 = vand.u32 %v33, 4294901760
    %2672 = vmatpush.msra.mxu0 %v2671
    %v2673 = vand.u32 %v31, 4294901760
    %2674 = vmatpush.msra.mxu0 %v2673
    %v2675 = vand.u32 %v29, 4294901760
    %2676 = vmatpush.msra.mxu0 %v2675
    %v2677 = vand.u32 %v27, 4294901760
    %2678 = vmatpush.msra.mxu0 %v2677
    %v2679 = vand.u32 %v25, 4294901760
    %2680 = vmatpush.msra.mxu0 %v2679
    %v2681 = vand.u32 %v2655, 4294901760
    %v2682 = vsub.f32 %v2655, %v2681
    %v2683 = vand.u32 %v2682, 4294901760
    %v2684 = vsub.f32 %v2682, %v2683
    %v2685 = vand.u32 %v2684, 4294901760
    %2686 = vmatmul.f32.gmra.mxu0 %v2685
    %v2687 = vpop.f32.mrf.mxu0
    %v2688 = vadd.f32 0.0, %v2687
    %2689 = vdwg.mxu0
    %2690 = vmatpush.msra.mxu0 0.0
    %2691 = vmatpush.msra.mxu0 0.0
    %2692 = vmatpush.msra.mxu0 0.0
    %2693 = vmatpush.msra.mxu0 0.0
    %2694 = vmatpush.msra.mxu0 0.0
    %2695 = vmatpush.msra.mxu0 0.0
    %2696 = vmatpush.msra.mxu0 0.0
    %2697 = vmatpush.msra.mxu0 0.0
    %v2698 = vand.u32 %v39, 4294901760
    %v2699 = vsub.f32 %v39, %v2698
    %v2700 = vand.u32 %v2699, 4294901760
    %v2701 = vsub.f32 %v2699, %v2700
    %v2702 = vand.u32 %v2701, 4294901760
    %2703 = vmatpush.msra.mxu0 %v2702
    %v2704 = vand.u32 %v37, 4294901760
    %v2705 = vsub.f32 %v37, %v2704
    %v2706 = vand.u32 %v2705, 4294901760
    %v2707 = vsub.f32 %v2705, %v2706
    %v2708 = vand.u32 %v2707, 4294901760
    %2709 = vmatpush.msra.mxu0 %v2708
    %v2710 = vand.u32 %v35, 4294901760
    %v2711 = vsub.f32 %v35, %v2710
    %v2712 = vand.u32 %v2711, 4294901760
    %v2713 = vsub.f32 %v2711, %v2712
    %v2714 = vand.u32 %v2713, 4294901760
    %2715 = vmatpush.msra.mxu0 %v2714
    %v2716 = vand.u32 %v33, 4294901760
    %v2717 = vsub.f32 %v33, %v2716
    %v2718 = vand.u32 %v2717, 4294901760
    %v2719 = vsub.f32 %v2717, %v2718
    %v2720 = vand.u32 %v2719, 4294901760
    %2721 = vmatpush.msra.mxu0 %v2720
    %v2722 = vand.u32 %v31, 4294901760
    %v2723 = vsub.f32 %v31, %v2722
    %v2724 = vand.u32 %v2723, 4294901760
    %v2725 = vsub.f32 %v2723, %v2724
    %v2726 = vand.u32 %v2725, 4294901760
    %2727 = vmatpush.msra.mxu0 %v2726
    %v2728 = vand.u32 %v29, 4294901760
    %v2729 = vsub.f32 %v29, %v2728
    %v2730 = vand.u32 %v2729, 4294901760
    %v2731 = vsub.f32 %v2729, %v2730
    %v2732 = vand.u32 %v2731, 4294901760
    %2733 = vmatpush.msra.mxu0 %v2732
    %v2734 = vand.u32 %v27, 4294901760
    %v2735 = vsub.f32 %v27, %v2734
    %v2736 = vand.u32 %v2735, 4294901760
    %v2737 = vsub.f32 %v2735, %v2736
    %v2738 = vand.u32 %v2737, 4294901760
    %2739 = vmatpush.msra.mxu0 %v2738
    %v2740 = vand.u32 %v25, 4294901760
    %v2741 = vsub.f32 %v25, %v2740
    %v2742 = vand.u32 %v2741, 4294901760
    %v2743 = vsub.f32 %v2741, %v2742
    %v2744 = vand.u32 %v2743, 4294901760
    %2745 = vmatpush.msra.mxu0 %v2744
    %v2746 = vand.u32 %v2655, 4294901760
    %2747 = vmatmul.f32.gmra.mxu0 %v2746
    %v2748 = vpop.f32.mrf.mxu0
    %v2749 = vadd.f32 %v2688, %v2748
    %2750 = vdwg.mxu0
    %2751 = vmatpush.msra.mxu0 0.0
    %2752 = vmatpush.msra.mxu0 0.0
    %2753 = vmatpush.msra.mxu0 0.0
    %2754 = vmatpush.msra.mxu0 0.0
    %2755 = vmatpush.msra.mxu0 0.0
    %2756 = vmatpush.msra.mxu0 0.0
    %2757 = vmatpush.msra.mxu0 0.0
    %2758 = vmatpush.msra.mxu0 0.0
    %v2759 = vand.u32 %v39, 4294901760
    %v2760 = vsub.f32 %v39, %v2759
    %2761 = vmatpush.msra.mxu0 %v2760
    %v2762 = vand.u32 %v37, 4294901760
    %v2763 = vsub.f32 %v37, %v2762
    %2764 = vmatpush.msra.mxu0 %v2763
    %v2765 = vand.u32 %v35, 4294901760
    %v2766 = vsub.f32 %v35, %v2765
    %2767 = vmatpush.msra.mxu0 %v2766
    %v2768 = vand.u32 %v33, 4294901760
    %v2769 = vsub.f32 %v33, %v2768
    %2770 = vmatpush.msra.mxu0 %v2769
    %v2771 = vand.u32 %v31, 4294901760
    %v2772 = vsub.f32 %v31, %v2771
    %2773 = vmatpush.msra.mxu0 %v2772
    %v2774 = vand.u32 %v29, 4294901760
    %v2775 = vsub.f32 %v29, %v2774
    %2776 = vmatpush.msra.mxu0 %v2775
    %v2777 = vand.u32 %v27, 4294901760
    %v2778 = vsub.f32 %v27, %v2777
    %2779 = vmatpush.msra.mxu0 %v2778
    %v2780 = vand.u32 %v25, 4294901760
    %v2781 = vsub.f32 %v25, %v2780
    %2782 = vmatpush.msra.mxu0 %v2781
    %v2783 = vand.u32 %v2655, 4294901760
    %v2784 = vsub.f32 %v2655, %v2783
    %2785 = vmatmul.f32.gmra.mxu0 %v2784
    %v2786 = vpop.f32.mrf.mxu0
    %v2787 = vadd.f32 %v2749, %v2786
    %2788 = vdwg.mxu0
    %2789 = vmatpush.msra.mxu0 0.0
    %2790 = vmatpush.msra.mxu0 0.0
    %2791 = vmatpush.msra.mxu0 0.0
    %2792 = vmatpush.msra.mxu0 0.0
    %2793 = vmatpush.msra.mxu0 0.0
    %2794 = vmatpush.msra.mxu0 0.0
    %2795 = vmatpush.msra.mxu0 0.0
    %2796 = vmatpush.msra.mxu0 0.0
    %v2797 = vand.u32 %v39, 4294901760
    %2798 = vmatpush.msra.mxu0 %v2797
    %v2799 = vand.u32 %v37, 4294901760
    %2800 = vmatpush.msra.mxu0 %v2799
    %v2801 = vand.u32 %v35, 4294901760
    %2802 = vmatpush.msra.mxu0 %v2801
    %v2803 = vand.u32 %v33, 4294901760
    %2804 = vmatpush.msra.mxu0 %v2803
    %v2805 = vand.u32 %v31, 4294901760
    %2806 = vmatpush.msra.mxu0 %v2805
    %v2807 = vand.u32 %v29, 4294901760
    %2808 = vmatpush.msra.mxu0 %v2807
    %v2809 = vand.u32 %v27, 4294901760
    %2810 = vmatpush.msra.mxu0 %v2809
    %v2811 = vand.u32 %v25, 4294901760
    %2812 = vmatpush.msra.mxu0 %v2811
    %v2813 = vand.u32 %v2655, 4294901760
    %v2814 = vsub.f32 %v2655, %v2813
    %v2815 = vand.u32 %v2814, 4294901760
    %2816 = vmatmul.f32.gmra.mxu0 %v2815
    %v2817 = vpop.f32.mrf.mxu0
    %v2818 = vadd.f32 %v2787, %v2817
    %2819 = vdwg.mxu0
    %2820 = vmatpush.msra.mxu0 0.0
    %2821 = vmatpush.msra.mxu0 0.0
    %2822 = vmatpush.msra.mxu0 0.0
    %2823 = vmatpush.msra.mxu0 0.0
    %2824 = vmatpush.msra.mxu0 0.0
    %2825 = vmatpush.msra.mxu0 0.0
    %2826 = vmatpush.msra.mxu0 0.0
    %2827 = vmatpush.msra.mxu0 0.0
    %v2828 = vand.u32 %v39, 4294901760
    %v2829 = vsub.f32 %v39, %v2828
    %v2830 = vand.u32 %v2829, 4294901760
    %2831 = vmatpush.msra.mxu0 %v2830
    %v2832 = vand.u32 %v37, 4294901760
    %v2833 = vsub.f32 %v37, %v2832
    %v2834 = vand.u32 %v2833, 4294901760
    %2835 = vmatpush.msra.mxu0 %v2834
    %v2836 = vand.u32 %v35, 4294901760
    %v2837 = vsub.f32 %v35, %v2836
    %v2838 = vand.u32 %v2837, 4294901760
    %2839 = vmatpush.msra.mxu0 %v2838
    %v2840 = vand.u32 %v33, 4294901760
    %v2841 = vsub.f32 %v33, %v2840
    %v2842 = vand.u32 %v2841, 4294901760
    %2843 = vmatpush.msra.mxu0 %v2842
    %v2844 = vand.u32 %v31, 4294901760
    %v2845 = vsub.f32 %v31, %v2844
    %v2846 = vand.u32 %v2845, 4294901760
    %2847 = vmatpush.msra.mxu0 %v2846
    %v2848 = vand.u32 %v29, 4294901760
    %v2849 = vsub.f32 %v29, %v2848
    %v2850 = vand.u32 %v2849, 4294901760
    %2851 = vmatpush.msra.mxu0 %v2850
    %v2852 = vand.u32 %v27, 4294901760
    %v2853 = vsub.f32 %v27, %v2852
    %v2854 = vand.u32 %v2853, 4294901760
    %2855 = vmatpush.msra.mxu0 %v2854
    %v2856 = vand.u32 %v25, 4294901760
    %v2857 = vsub.f32 %v25, %v2856
    %v2858 = vand.u32 %v2857, 4294901760
    %2859 = vmatpush.msra.mxu0 %v2858
    %v2860 = vand.u32 %v2655, 4294901760
    %2861 = vmatmul.f32.gmra.mxu0 %v2860
    %v2862 = vpop.f32.mrf.mxu0
    %v2863 = vadd.f32 %v2818, %v2862
    %2864 = vdwg.mxu0
    %2865 = vmatpush.msra.mxu0 0.0
    %2866 = vmatpush.msra.mxu0 0.0
    %2867 = vmatpush.msra.mxu0 0.0
    %2868 = vmatpush.msra.mxu0 0.0
    %2869 = vmatpush.msra.mxu0 0.0
    %2870 = vmatpush.msra.mxu0 0.0
    %2871 = vmatpush.msra.mxu0 0.0
    %2872 = vmatpush.msra.mxu0 0.0
    %v2873 = vand.u32 %v39, 4294901760
    %2874 = vmatpush.msra.mxu0 %v2873
    %v2875 = vand.u32 %v37, 4294901760
    %2876 = vmatpush.msra.mxu0 %v2875
    %v2877 = vand.u32 %v35, 4294901760
    %2878 = vmatpush.msra.mxu0 %v2877
    %v2879 = vand.u32 %v33, 4294901760
    %2880 = vmatpush.msra.mxu0 %v2879
    %v2881 = vand.u32 %v31, 4294901760
    %2882 = vmatpush.msra.mxu0 %v2881
    %v2883 = vand.u32 %v29, 4294901760
    %2884 = vmatpush.msra.mxu0 %v2883
    %v2885 = vand.u32 %v27, 4294901760
    %2886 = vmatpush.msra.mxu0 %v2885
    %v2887 = vand.u32 %v25, 4294901760
    %2888 = vmatpush.msra.mxu0 %v2887
    %v2889 = vand.u32 %v2655, 4294901760
    %2890 = vmatmul.f32.gmra.mxu0 %v2889
    %v2891 = vpop.f32.mrf.mxu0
    %v2892 = vadd.f32 %v2863, %v2891
    %2893 = vdwg.mxu0
    %2894 = vmatpush.msra.mxu0 0.0
    %2895 = vmatpush.msra.mxu0 0.0
    %2896 = vmatpush.msra.mxu0 0.0
    %2897 = vmatpush.msra.mxu0 0.0
    %2898 = vmatpush.msra.mxu0 0.0
    %2899 = vmatpush.msra.mxu0 0.0
    %2900 = vmatpush.msra.mxu0 0.0
    %2901 = vmatpush.msra.mxu0 0.0
    %v2902 = vand.u32 %v40, 4294901760
    %2903 = vmatpush.msra.mxu0 %v2902
    %v2904 = vand.u32 %v38, 4294901760
    %2905 = vmatpush.msra.mxu0 %v2904
    %v2906 = vand.u32 %v36, 4294901760
    %2907 = vmatpush.msra.mxu0 %v2906
    %v2908 = vand.u32 %v34, 4294901760
    %2909 = vmatpush.msra.mxu0 %v2908
    %v2910 = vand.u32 %v32, 4294901760
    %2911 = vmatpush.msra.mxu0 %v2910
    %v2912 = vand.u32 %v30, 4294901760
    %2913 = vmatpush.msra.mxu0 %v2912
    %v2914 = vand.u32 %v28, 4294901760
    %2915 = vmatpush.msra.mxu0 %v2914
    %v2916 = vand.u32 %v26, 4294901760
    %2917 = vmatpush.msra.mxu0 %v2916
    %v2918 = vand.u32 %v2655, 4294901760
    %v2919 = vsub.f32 %v2655, %v2918
    %v2920 = vand.u32 %v2919, 4294901760
    %v2921 = vsub.f32 %v2919, %v2920
    %v2922 = vand.u32 %v2921, 4294901760
    %2923 = vmatmul.f32.gmra.mxu0 %v2922
    %v2924 = vpop.f32.mrf.mxu0
    %v2925 = vadd.f32 0.0, %v2924
    %2926 = vdwg.mxu0
    %2927 = vmatpush.msra.mxu0 0.0
    %2928 = vmatpush.msra.mxu0 0.0
    %2929 = vmatpush.msra.mxu0 0.0
    %2930 = vmatpush.msra.mxu0 0.0
    %2931 = vmatpush.msra.mxu0 0.0
    %2932 = vmatpush.msra.mxu0 0.0
    %2933 = vmatpush.msra.mxu0 0.0
    %2934 = vmatpush.msra.mxu0 0.0
    %v2935 = vand.u32 %v40, 4294901760
    %v2936 = vsub.f32 %v40, %v2935
    %v2937 = vand.u32 %v2936, 4294901760
    %v2938 = vsub.f32 %v2936, %v2937
    %v2939 = vand.u32 %v2938, 4294901760
    %2940 = vmatpush.msra.mxu0 %v2939
    %v2941 = vand.u32 %v38, 4294901760
    %v2942 = vsub.f32 %v38, %v2941
    %v2943 = vand.u32 %v2942, 4294901760
    %v2944 = vsub.f32 %v2942, %v2943
    %v2945 = vand.u32 %v2944, 4294901760
    %2946 = vmatpush.msra.mxu0 %v2945
    %v2947 = vand.u32 %v36, 4294901760
    %v2948 = vsub.f32 %v36, %v2947
    %v2949 = vand.u32 %v2948, 4294901760
    %v2950 = vsub.f32 %v2948, %v2949
    %v2951 = vand.u32 %v2950, 4294901760
    %2952 = vmatpush.msra.mxu0 %v2951
    %v2953 = vand.u32 %v34, 4294901760
    %v2954 = vsub.f32 %v34, %v2953
    %v2955 = vand.u32 %v2954, 4294901760
    %v2956 = vsub.f32 %v2954, %v2955
    %v2957 = vand.u32 %v2956, 4294901760
    %2958 = vmatpush.msra.mxu0 %v2957
    %v2959 = vand.u32 %v32, 4294901760
    %v2960 = vsub.f32 %v32, %v2959
    %v2961 = vand.u32 %v2960, 4294901760
    %v2962 = vsub.f32 %v2960, %v2961
    %v2963 = vand.u32 %v2962, 4294901760
    %2964 = vmatpush.msra.mxu0 %v2963
    %v2965 = vand.u32 %v30, 4294901760
    %v2966 = vsub.f32 %v30, %v2965
    %v2967 = vand.u32 %v2966, 4294901760
    %v2968 = vsub.f32 %v2966, %v2967
    %v2969 = vand.u32 %v2968, 4294901760
    %2970 = vmatpush.msra.mxu0 %v2969
    %v2971 = vand.u32 %v28, 4294901760
    %v2972 = vsub.f32 %v28, %v2971
    %v2973 = vand.u32 %v2972, 4294901760
    %v2974 = vsub.f32 %v2972, %v2973
    %v2975 = vand.u32 %v2974, 4294901760
    %2976 = vmatpush.msra.mxu0 %v2975
    %v2977 = vand.u32 %v26, 4294901760
    %v2978 = vsub.f32 %v26, %v2977
    %v2979 = vand.u32 %v2978, 4294901760
    %v2980 = vsub.f32 %v2978, %v2979
    %v2981 = vand.u32 %v2980, 4294901760
    %2982 = vmatpush.msra.mxu0 %v2981
    %v2983 = vand.u32 %v2655, 4294901760
    %2984 = vmatmul.f32.gmra.mxu0 %v2983
    %v2985 = vpop.f32.mrf.mxu0
    %v2986 = vadd.f32 %v2925, %v2985
    %2987 = vdwg.mxu0
    %2988 = vmatpush.msra.mxu0 0.0
    %2989 = vmatpush.msra.mxu0 0.0
    %2990 = vmatpush.msra.mxu0 0.0
    %2991 = vmatpush.msra.mxu0 0.0
    %2992 = vmatpush.msra.mxu0 0.0
    %2993 = vmatpush.msra.mxu0 0.0
    %2994 = vmatpush.msra.mxu0 0.0
    %2995 = vmatpush.msra.mxu0 0.0
    %v2996 = vand.u32 %v40, 4294901760
    %v2997 = vsub.f32 %v40, %v2996
    %2998 = vmatpush.msra.mxu0 %v2997
    %v2999 = vand.u32 %v38, 4294901760
    %v3000 = vsub.f32 %v38, %v2999
    %3001 = vmatpush.msra.mxu0 %v3000
    %v3002 = vand.u32 %v36, 4294901760
    %v3003 = vsub.f32 %v36, %v3002
    %3004 = vmatpush.msra.mxu0 %v3003
    %v3005 = vand.u32 %v34, 4294901760
    %v3006 = vsub.f32 %v34, %v3005
    %3007 = vmatpush.msra.mxu0 %v3006
    %v3008 = vand.u32 %v32, 4294901760
    %v3009 = vsub.f32 %v32, %v3008
    %3010 = vmatpush.msra.mxu0 %v3009
    %v3011 = vand.u32 %v30, 4294901760
    %v3012 = vsub.f32 %v30, %v3011
    %3013 = vmatpush.msra.mxu0 %v3012
    %v3014 = vand.u32 %v28, 4294901760
    %v3015 = vsub.f32 %v28, %v3014
    %3016 = vmatpush.msra.mxu0 %v3015
    %v3017 = vand.u32 %v26, 4294901760
    %v3018 = vsub.f32 %v26, %v3017
    %3019 = vmatpush.msra.mxu0 %v3018
    %v3020 = vand.u32 %v2655, 4294901760
    %v3021 = vsub.f32 %v2655, %v3020
    %3022 = vmatmul.f32.gmra.mxu0 %v3021
    %v3023 = vpop.f32.mrf.mxu0
    %v3024 = vadd.f32 %v2986, %v3023
    %3025 = vdwg.mxu0
    %3026 = vmatpush.msra.mxu0 0.0
    %3027 = vmatpush.msra.mxu0 0.0
    %3028 = vmatpush.msra.mxu0 0.0
    %3029 = vmatpush.msra.mxu0 0.0
    %3030 = vmatpush.msra.mxu0 0.0
    %3031 = vmatpush.msra.mxu0 0.0
    %3032 = vmatpush.msra.mxu0 0.0
    %3033 = vmatpush.msra.mxu0 0.0
    %v3034 = vand.u32 %v40, 4294901760
    %3035 = vmatpush.msra.mxu0 %v3034
    %v3036 = vand.u32 %v38, 4294901760
    %3037 = vmatpush.msra.mxu0 %v3036
    %v3038 = vand.u32 %v36, 4294901760
    %3039 = vmatpush.msra.mxu0 %v3038
    %v3040 = vand.u32 %v34, 4294901760
    %3041 = vmatpush.msra.mxu0 %v3040
    %v3042 = vand.u32 %v32, 4294901760
    %3043 = vmatpush.msra.mxu0 %v3042
    %v3044 = vand.u32 %v30, 4294901760
    %3045 = vmatpush.msra.mxu0 %v3044
    %v3046 = vand.u32 %v28, 4294901760
    %3047 = vmatpush.msra.mxu0 %v3046
    %v3048 = vand.u32 %v26, 4294901760
    %3049 = vmatpush.msra.mxu0 %v3048
    %v3050 = vand.u32 %v2655, 4294901760
    %v3051 = vsub.f32 %v2655, %v3050
    %v3052 = vand.u32 %v3051, 4294901760
    %3053 = vmatmul.f32.gmra.mxu0 %v3052
    %v3054 = vpop.f32.mrf.mxu0
    %v3055 = vadd.f32 %v3024, %v3054
    %3056 = vdwg.mxu0
    %3057 = vmatpush.msra.mxu0 0.0
    %3058 = vmatpush.msra.mxu0 0.0
    %3059 = vmatpush.msra.mxu0 0.0
    %3060 = vmatpush.msra.mxu0 0.0
    %3061 = vmatpush.msra.mxu0 0.0
    %3062 = vmatpush.msra.mxu0 0.0
    %3063 = vmatpush.msra.mxu0 0.0
    %3064 = vmatpush.msra.mxu0 0.0
    %v3065 = vand.u32 %v40, 4294901760
    %v3066 = vsub.f32 %v40, %v3065
    %v3067 = vand.u32 %v3066, 4294901760
    %3068 = vmatpush.msra.mxu0 %v3067
    %v3069 = vand.u32 %v38, 4294901760
    %v3070 = vsub.f32 %v38, %v3069
    %v3071 = vand.u32 %v3070, 4294901760
    %3072 = vmatpush.msra.mxu0 %v3071
    %v3073 = vand.u32 %v36, 4294901760
    %v3074 = vsub.f32 %v36, %v3073
    %v3075 = vand.u32 %v3074, 4294901760
    %3076 = vmatpush.msra.mxu0 %v3075
    %v3077 = vand.u32 %v34, 4294901760
    %v3078 = vsub.f32 %v34, %v3077
    %v3079 = vand.u32 %v3078, 4294901760
    %3080 = vmatpush.msra.mxu0 %v3079
    %v3081 = vand.u32 %v32, 4294901760
    %v3082 = vsub.f32 %v32, %v3081
    %v3083 = vand.u32 %v3082, 4294901760
    %3084 = vmatpush.msra.mxu0 %v3083
    %v3085 = vand.u32 %v30, 4294901760
    %v3086 = vsub.f32 %v30, %v3085
    %v3087 = vand.u32 %v3086, 4294901760
    %3088 = vmatpush.msra.mxu0 %v3087
    %v3089 = vand.u32 %v28, 4294901760
    %v3090 = vsub.f32 %v28, %v3089
    %v3091 = vand.u32 %v3090, 4294901760
    %3092 = vmatpush.msra.mxu0 %v3091
    %v3093 = vand.u32 %v26, 4294901760
    %v3094 = vsub.f32 %v26, %v3093
    %v3095 = vand.u32 %v3094, 4294901760
    %3096 = vmatpush.msra.mxu0 %v3095
    %v3097 = vand.u32 %v2655, 4294901760
    %3098 = vmatmul.f32.gmra.mxu0 %v3097
    %v3099 = vpop.f32.mrf.mxu0
    %v3100 = vadd.f32 %v3055, %v3099
    %3101 = vdwg.mxu0
    %3102 = vmatpush.msra.mxu0 0.0
    %3103 = vmatpush.msra.mxu0 0.0
    %3104 = vmatpush.msra.mxu0 0.0
    %3105 = vmatpush.msra.mxu0 0.0
    %3106 = vmatpush.msra.mxu0 0.0
    %3107 = vmatpush.msra.mxu0 0.0
    %3108 = vmatpush.msra.mxu0 0.0
    %3109 = vmatpush.msra.mxu0 0.0
    %v3110 = vand.u32 %v40, 4294901760
    %3111 = vmatpush.msra.mxu0 %v3110
    %v3112 = vand.u32 %v38, 4294901760
    %3113 = vmatpush.msra.mxu0 %v3112
    %v3114 = vand.u32 %v36, 4294901760
    %3115 = vmatpush.msra.mxu0 %v3114
    %v3116 = vand.u32 %v34, 4294901760
    %3117 = vmatpush.msra.mxu0 %v3116
    %v3118 = vand.u32 %v32, 4294901760
    %3119 = vmatpush.msra.mxu0 %v3118
    %v3120 = vand.u32 %v30, 4294901760
    %3121 = vmatpush.msra.mxu0 %v3120
    %v3122 = vand.u32 %v28, 4294901760
    %3123 = vmatpush.msra.mxu0 %v3122
    %v3124 = vand.u32 %v26, 4294901760
    %3125 = vmatpush.msra.mxu0 %v3124
    %v3126 = vand.u32 %v2655, 4294901760
    %3127 = vmatmul.f32.gmra.mxu0 %v3126
    %v3128 = vpop.f32.mrf.mxu0
    %v3129 = vadd.f32 %v3100, %v3128
    %3130 = vdwg.mxu0
    %v3133 = vrot.slane %v3129, 6
    %v3134 = vsel %vm534, %v2892, %v3133
    %v3136 = vadd.f32 %v2651, %v3134
    %v3137 = vmul.f32 %v3136, 0.5
    %3139 = vst [vmem:[#allocation1] ss:$4 sm:$0xff] %v3136
    %v3140 = vld.sshfl [vmem:[#allocation1] sm:$0xff pattern:$0x73625140]
    %v3141 = vld.sshfl [vmem:[#allocation1 + $0x8] sm:$0xff pattern:$0x73625140]
    %3145 = vst [vmem:[#allocation1] ss:$4 sm:$0xff] %v3137
    %v3146 = vld.sshfl [vmem:[#allocation1] sm:$0xff pattern:$0x73625140]
    %v3147 = vld.sshfl [vmem:[#allocation1 + $0x8] sm:$0xff pattern:$0x73625140]
    %v3150 = vsel %vm48, %v3140, %v3146
    %v3151 = vsel %vm49, %v3141, %v3147
    %v3152 = vtanh.pop %v3150
    %v3153 = vtanh.pop %v3151
    %v3154 = vmul.f32 %v3152, 0.5
    %v3155 = vmul.f32 %v3153, 0.5
    %v3156 = vadd.f32 %v3154, 0.5
    %v3157 = vadd.f32 %v3155, 0.5
    %v3158 = vsel %vm48, %v3152, %v3156
    %v3159 = vsel %vm49, %v3153, %v3157
    %v3160 = vmul.f32 %v3158, %v2647
    %v3161 = vmul.f32 %v3158, %v3159
    %3163 = vrot.lane.b32.xlu0 %v3161, 64
    %v3164 = vpop.permute.xlu0 %3163
    %v3166 = vadd.f32 %v3160, %v3164
    %v3167 = vtanh.pop %v3166
    %v3168 = vmul.f32 %v3159, %v3167
    %s3169 = scalar_lea.vmem %s0, 24
    %v3170 = vld [vmem:[%s3169] sm:$0xf]
    %3172 = vrot.lane.b32.xlu0 %v3168, 64
    %v3173 = vpop.permute.xlu0 %3172
    %v3174 = vsel %vm53, %v3173, 0
    %3176 = vmatpush.msra.mxu0 0.0
    %3177 = vmatpush.msra.mxu0 0.0
    %3178 = vmatpush.msra.mxu0 0.0
    %3179 = vmatpush.msra.mxu0 0.0
    %3180 = vmatpush.msra.mxu0 0.0
    %3181 = vmatpush.msra.mxu0 0.0
    %3182 = vmatpush.msra.mxu0 0.0
    %3183 = vmatpush.msra.mxu0 0.0
    %v3184 = vand.u32 %v39, 4294901760
    %3185 = vmatpush.msra.mxu0 %v3184
    %v3186 = vand.u32 %v37, 4294901760
    %3187 = vmatpush.msra.mxu0 %v3186
    %v3188 = vand.u32 %v35, 4294901760
    %3189 = vmatpush.msra.mxu0 %v3188
    %v3190 = vand.u32 %v33, 4294901760
    %3191 = vmatpush.msra.mxu0 %v3190
    %v3192 = vand.u32 %v31, 4294901760
    %3193 = vmatpush.msra.mxu0 %v3192
    %v3194 = vand.u32 %v29, 4294901760
    %3195 = vmatpush.msra.mxu0 %v3194
    %v3196 = vand.u32 %v27, 4294901760
    %3197 = vmatpush.msra.mxu0 %v3196
    %v3198 = vand.u32 %v25, 4294901760
    %3199 = vmatpush.msra.mxu0 %v3198
    %v3200 = vand.u32 %v3174, 4294901760
    %v3201 = vsub.f32 %v3174, %v3200
    %v3202 = vand.u32 %v3201, 4294901760
    %v3203 = vsub.f32 %v3201, %v3202
    %v3204 = vand.u32 %v3203, 4294901760
    %3205 = vmatmul.f32.gmra.mxu0 %v3204
    %v3206 = vpop.f32.mrf.mxu0
    %v3207 = vadd.f32 0.0, %v3206
    %3208 = vdwg.mxu0
    %3209 = vmatpush.msra.mxu0 0.0
    %3210 = vmatpush.msra.mxu0 0.0
    %3211 = vmatpush.msra.mxu0 0.0
    %3212 = vmatpush.msra.mxu0 0.0
    %3213 = vmatpush.msra.mxu0 0.0
    %3214 = vmatpush.msra.mxu0 0.0
    %3215 = vmatpush.msra.mxu0 0.0
    %3216 = vmatpush.msra.mxu0 0.0
    %v3217 = vand.u32 %v39, 4294901760
    %v3218 = vsub.f32 %v39, %v3217
    %v3219 = vand.u32 %v3218, 4294901760
    %v3220 = vsub.f32 %v3218, %v3219
    %v3221 = vand.u32 %v3220, 4294901760
    %3222 = vmatpush.msra.mxu0 %v3221
    %v3223 = vand.u32 %v37, 4294901760
    %v3224 = vsub.f32 %v37, %v3223
    %v3225 = vand.u32 %v3224, 4294901760
    %v3226 = vsub.f32 %v3224, %v3225
    %v3227 = vand.u32 %v3226, 4294901760
    %3228 = vmatpush.msra.mxu0 %v3227
    %v3229 = vand.u32 %v35, 4294901760
    %v3230 = vsub.f32 %v35, %v3229
    %v3231 = vand.u32 %v3230, 4294901760
    %v3232 = vsub.f32 %v3230, %v3231
    %v3233 = vand.u32 %v3232, 4294901760
    %3234 = vmatpush.msra.mxu0 %v3233
    %v3235 = vand.u32 %v33, 4294901760
    %v3236 = vsub.f32 %v33, %v3235
    %v3237 = vand.u32 %v3236, 4294901760
    %v3238 = vsub.f32 %v3236, %v3237
    %v3239 = vand.u32 %v3238, 4294901760
    %3240 = vmatpush.msra.mxu0 %v3239
    %v3241 = vand.u32 %v31, 4294901760
    %v3242 = vsub.f32 %v31, %v3241
    %v3243 = vand.u32 %v3242, 4294901760
    %v3244 = vsub.f32 %v3242, %v3243
    %v3245 = vand.u32 %v3244, 4294901760
    %3246 = vmatpush.msra.mxu0 %v3245
    %v3247 = vand.u32 %v29, 4294901760
    %v3248 = vsub.f32 %v29, %v3247
    %v3249 = vand.u32 %v3248, 4294901760
    %v3250 = vsub.f32 %v3248, %v3249
    %v3251 = vand.u32 %v3250, 4294901760
    %3252 = vmatpush.msra.mxu0 %v3251
    %v3253 = vand.u32 %v27, 4294901760
    %v3254 = vsub.f32 %v27, %v3253
    %v3255 = vand.u32 %v3254, 4294901760
    %v3256 = vsub.f32 %v3254, %v3255
    %v3257 = vand.u32 %v3256, 4294901760
    %3258 = vmatpush.msra.mxu0 %v3257
    %v3259 = vand.u32 %v25, 4294901760
    %v3260 = vsub.f32 %v25, %v3259
    %v3261 = vand.u32 %v3260, 4294901760
    %v3262 = vsub.f32 %v3260, %v3261
    %v3263 = vand.u32 %v3262, 4294901760
    %3264 = vmatpush.msra.mxu0 %v3263
    %v3265 = vand.u32 %v3174, 4294901760
    %3266 = vmatmul.f32.gmra.mxu0 %v3265
    %v3267 = vpop.f32.mrf.mxu0
    %v3268 = vadd.f32 %v3207, %v3267
    %3269 = vdwg.mxu0
    %3270 = vmatpush.msra.mxu0 0.0
    %3271 = vmatpush.msra.mxu0 0.0
    %3272 = vmatpush.msra.mxu0 0.0
    %3273 = vmatpush.msra.mxu0 0.0
    %3274 = vmatpush.msra.mxu0 0.0
    %3275 = vmatpush.msra.mxu0 0.0
    %3276 = vmatpush.msra.mxu0 0.0
    %3277 = vmatpush.msra.mxu0 0.0
    %v3278 = vand.u32 %v39, 4294901760
    %v3279 = vsub.f32 %v39, %v3278
    %3280 = vmatpush.msra.mxu0 %v3279
    %v3281 = vand.u32 %v37, 4294901760
    %v3282 = vsub.f32 %v37, %v3281
    %3283 = vmatpush.msra.mxu0 %v3282
    %v3284 = vand.u32 %v35, 4294901760
    %v3285 = vsub.f32 %v35, %v3284
    %3286 = vmatpush.msra.mxu0 %v3285
    %v3287 = vand.u32 %v33, 4294901760
    %v3288 = vsub.f32 %v33, %v3287
    %3289 = vmatpush.msra.mxu0 %v3288
    %v3290 = vand.u32 %v31, 4294901760
    %v3291 = vsub.f32 %v31, %v3290
    %3292 = vmatpush.msra.mxu0 %v3291
    %v3293 = vand.u32 %v29, 4294901760
    %v3294 = vsub.f32 %v29, %v3293
    %3295 = vmatpush.msra.mxu0 %v3294
    %v3296 = vand.u32 %v27, 4294901760
    %v3297 = vsub.f32 %v27, %v3296
    %3298 = vmatpush.msra.mxu0 %v3297
    %v3299 = vand.u32 %v25, 4294901760
    %v3300 = vsub.f32 %v25, %v3299
    %3301 = vmatpush.msra.mxu0 %v3300
    %v3302 = vand.u32 %v3174, 4294901760
    %v3303 = vsub.f32 %v3174, %v3302
    %3304 = vmatmul.f32.gmra.mxu0 %v3303
    %v3305 = vpop.f32.mrf.mxu0
    %v3306 = vadd.f32 %v3268, %v3305
    %3307 = vdwg.mxu0
    %3308 = vmatpush.msra.mxu0 0.0
    %3309 = vmatpush.msra.mxu0 0.0
    %3310 = vmatpush.msra.mxu0 0.0
    %3311 = vmatpush.msra.mxu0 0.0
    %3312 = vmatpush.msra.mxu0 0.0
    %3313 = vmatpush.msra.mxu0 0.0
    %3314 = vmatpush.msra.mxu0 0.0
    %3315 = vmatpush.msra.mxu0 0.0
    %v3316 = vand.u32 %v39, 4294901760
    %3317 = vmatpush.msra.mxu0 %v3316
    %v3318 = vand.u32 %v37, 4294901760
    %3319 = vmatpush.msra.mxu0 %v3318
    %v3320 = vand.u32 %v35, 4294901760
    %3321 = vmatpush.msra.mxu0 %v3320
    %v3322 = vand.u32 %v33, 4294901760
    %3323 = vmatpush.msra.mxu0 %v3322
    %v3324 = vand.u32 %v31, 4294901760
    %3325 = vmatpush.msra.mxu0 %v3324
    %v3326 = vand.u32 %v29, 4294901760
    %3327 = vmatpush.msra.mxu0 %v3326
    %v3328 = vand.u32 %v27, 4294901760
    %3329 = vmatpush.msra.mxu0 %v3328
    %v3330 = vand.u32 %v25, 4294901760
    %3331 = vmatpush.msra.mxu0 %v3330
    %v3332 = vand.u32 %v3174, 4294901760
    %v3333 = vsub.f32 %v3174, %v3332
    %v3334 = vand.u32 %v3333, 4294901760
    %3335 = vmatmul.f32.gmra.mxu0 %v3334
    %v3336 = vpop.f32.mrf.mxu0
    %v3337 = vadd.f32 %v3306, %v3336
    %3338 = vdwg.mxu0
    %3339 = vmatpush.msra.mxu0 0.0
    %3340 = vmatpush.msra.mxu0 0.0
    %3341 = vmatpush.msra.mxu0 0.0
    %3342 = vmatpush.msra.mxu0 0.0
    %3343 = vmatpush.msra.mxu0 0.0
    %3344 = vmatpush.msra.mxu0 0.0
    %3345 = vmatpush.msra.mxu0 0.0
    %3346 = vmatpush.msra.mxu0 0.0
    %v3347 = vand.u32 %v39, 4294901760
    %v3348 = vsub.f32 %v39, %v3347
    %v3349 = vand.u32 %v3348, 4294901760
    %3350 = vmatpush.msra.mxu0 %v3349
    %v3351 = vand.u32 %v37, 4294901760
    %v3352 = vsub.f32 %v37, %v3351
    %v3353 = vand.u32 %v3352, 4294901760
    %3354 = vmatpush.msra.mxu0 %v3353
    %v3355 = vand.u32 %v35, 4294901760
    %v3356 = vsub.f32 %v35, %v3355
    %v3357 = vand.u32 %v3356, 4294901760
    %3358 = vmatpush.msra.mxu0 %v3357
    %v3359 = vand.u32 %v33, 4294901760
    %v3360 = vsub.f32 %v33, %v3359
    %v3361 = vand.u32 %v3360, 4294901760
    %3362 = vmatpush.msra.mxu0 %v3361
    %v3363 = vand.u32 %v31, 4294901760
    %v3364 = vsub.f32 %v31, %v3363
    %v3365 = vand.u32 %v3364, 4294901760
    %3366 = vmatpush.msra.mxu0 %v3365
    %v3367 = vand.u32 %v29, 4294901760
    %v3368 = vsub.f32 %v29, %v3367
    %v3369 = vand.u32 %v3368, 4294901760
    %3370 = vmatpush.msra.mxu0 %v3369
    %v3371 = vand.u32 %v27, 4294901760
    %v3372 = vsub.f32 %v27, %v3371
    %v3373 = vand.u32 %v3372, 4294901760
    %3374 = vmatpush.msra.mxu0 %v3373
    %v3375 = vand.u32 %v25, 4294901760
    %v3376 = vsub.f32 %v25, %v3375
    %v3377 = vand.u32 %v3376, 4294901760
    %3378 = vmatpush.msra.mxu0 %v3377
    %v3379 = vand.u32 %v3174, 4294901760
    %3380 = vmatmul.f32.gmra.mxu0 %v3379
    %v3381 = vpop.f32.mrf.mxu0
    %v3382 = vadd.f32 %v3337, %v3381
    %3383 = vdwg.mxu0
    %3384 = vmatpush.msra.mxu0 0.0
    %3385 = vmatpush.msra.mxu0 0.0
    %3386 = vmatpush.msra.mxu0 0.0
    %3387 = vmatpush.msra.mxu0 0.0
    %3388 = vmatpush.msra.mxu0 0.0
    %3389 = vmatpush.msra.mxu0 0.0
    %3390 = vmatpush.msra.mxu0 0.0
    %3391 = vmatpush.msra.mxu0 0.0
    %v3392 = vand.u32 %v39, 4294901760
    %3393 = vmatpush.msra.mxu0 %v3392
    %v3394 = vand.u32 %v37, 4294901760
    %3395 = vmatpush.msra.mxu0 %v3394
    %v3396 = vand.u32 %v35, 4294901760
    %3397 = vmatpush.msra.mxu0 %v3396
    %v3398 = vand.u32 %v33, 4294901760
    %3399 = vmatpush.msra.mxu0 %v3398
    %v3400 = vand.u32 %v31, 4294901760
    %3401 = vmatpush.msra.mxu0 %v3400
    %v3402 = vand.u32 %v29, 4294901760
    %3403 = vmatpush.msra.mxu0 %v3402
    %v3404 = vand.u32 %v27, 4294901760
    %3405 = vmatpush.msra.mxu0 %v3404
    %v3406 = vand.u32 %v25, 4294901760
    %3407 = vmatpush.msra.mxu0 %v3406
    %v3408 = vand.u32 %v3174, 4294901760
    %3409 = vmatmul.f32.gmra.mxu0 %v3408
    %v3410 = vpop.f32.mrf.mxu0
    %v3411 = vadd.f32 %v3382, %v3410
    %3412 = vdwg.mxu0
    %3413 = vmatpush.msra.mxu0 0.0
    %3414 = vmatpush.msra.mxu0 0.0
    %3415 = vmatpush.msra.mxu0 0.0
    %3416 = vmatpush.msra.mxu0 0.0
    %3417 = vmatpush.msra.mxu0 0.0
    %3418 = vmatpush.msra.mxu0 0.0
    %3419 = vmatpush.msra.mxu0 0.0
    %3420 = vmatpush.msra.mxu0 0.0
    %v3421 = vand.u32 %v40, 4294901760
    %3422 = vmatpush.msra.mxu0 %v3421
    %v3423 = vand.u32 %v38, 4294901760
    %3424 = vmatpush.msra.mxu0 %v3423
    %v3425 = vand.u32 %v36, 4294901760
    %3426 = vmatpush.msra.mxu0 %v3425
    %v3427 = vand.u32 %v34, 4294901760
    %3428 = vmatpush.msra.mxu0 %v3427
    %v3429 = vand.u32 %v32, 4294901760
    %3430 = vmatpush.msra.mxu0 %v3429
    %v3431 = vand.u32 %v30, 4294901760
    %3432 = vmatpush.msra.mxu0 %v3431
    %v3433 = vand.u32 %v28, 4294901760
    %3434 = vmatpush.msra.mxu0 %v3433
    %v3435 = vand.u32 %v26, 4294901760
    %3436 = vmatpush.msra.mxu0 %v3435
    %v3437 = vand.u32 %v3174, 4294901760
    %v3438 = vsub.f32 %v3174, %v3437
    %v3439 = vand.u32 %v3438, 4294901760
    %v3440 = vsub.f32 %v3438, %v3439
    %v3441 = vand.u32 %v3440, 4294901760
    %3442 = vmatmul.f32.gmra.mxu0 %v3441
    %v3443 = vpop.f32.mrf.mxu0
    %v3444 = vadd.f32 0.0, %v3443
    %3445 = vdwg.mxu0
    %3446 = vmatpush.msra.mxu0 0.0
    %3447 = vmatpush.msra.mxu0 0.0
    %3448 = vmatpush.msra.mxu0 0.0
    %3449 = vmatpush.msra.mxu0 0.0
    %3450 = vmatpush.msra.mxu0 0.0
    %3451 = vmatpush.msra.mxu0 0.0
    %3452 = vmatpush.msra.mxu0 0.0
    %3453 = vmatpush.msra.mxu0 0.0
    %v3454 = vand.u32 %v40, 4294901760
    %v3455 = vsub.f32 %v40, %v3454
    %v3456 = vand.u32 %v3455, 4294901760
    %v3457 = vsub.f32 %v3455, %v3456
    %v3458 = vand.u32 %v3457, 4294901760
    %3459 = vmatpush.msra.mxu0 %v3458
    %v3460 = vand.u32 %v38, 4294901760
    %v3461 = vsub.f32 %v38, %v3460
    %v3462 = vand.u32 %v3461, 4294901760
    %v3463 = vsub.f32 %v3461, %v3462
    %v3464 = vand.u32 %v3463, 4294901760
    %3465 = vmatpush.msra.mxu0 %v3464
    %v3466 = vand.u32 %v36, 4294901760
    %v3467 = vsub.f32 %v36, %v3466
    %v3468 = vand.u32 %v3467, 4294901760
    %v3469 = vsub.f32 %v3467, %v3468
    %v3470 = vand.u32 %v3469, 4294901760
    %3471 = vmatpush.msra.mxu0 %v3470
    %v3472 = vand.u32 %v34, 4294901760
    %v3473 = vsub.f32 %v34, %v3472
    %v3474 = vand.u32 %v3473, 4294901760
    %v3475 = vsub.f32 %v3473, %v3474
    %v3476 = vand.u32 %v3475, 4294901760
    %3477 = vmatpush.msra.mxu0 %v3476
    %v3478 = vand.u32 %v32, 4294901760
    %v3479 = vsub.f32 %v32, %v3478
    %v3480 = vand.u32 %v3479, 4294901760
    %v3481 = vsub.f32 %v3479, %v3480
    %v3482 = vand.u32 %v3481, 4294901760
    %3483 = vmatpush.msra.mxu0 %v3482
    %v3484 = vand.u32 %v30, 4294901760
    %v3485 = vsub.f32 %v30, %v3484
    %v3486 = vand.u32 %v3485, 4294901760
    %v3487 = vsub.f32 %v3485, %v3486
    %v3488 = vand.u32 %v3487, 4294901760
    %3489 = vmatpush.msra.mxu0 %v3488
    %v3490 = vand.u32 %v28, 4294901760
    %v3491 = vsub.f32 %v28, %v3490
    %v3492 = vand.u32 %v3491, 4294901760
    %v3493 = vsub.f32 %v3491, %v3492
    %v3494 = vand.u32 %v3493, 4294901760
    %3495 = vmatpush.msra.mxu0 %v3494
    %v3496 = vand.u32 %v26, 4294901760
    %v3497 = vsub.f32 %v26, %v3496
    %v3498 = vand.u32 %v3497, 4294901760
    %v3499 = vsub.f32 %v3497, %v3498
    %v3500 = vand.u32 %v3499, 4294901760
    %3501 = vmatpush.msra.mxu0 %v3500
    %v3502 = vand.u32 %v3174, 4294901760
    %3503 = vmatmul.f32.gmra.mxu0 %v3502
    %v3504 = vpop.f32.mrf.mxu0
    %v3505 = vadd.f32 %v3444, %v3504
    %3506 = vdwg.mxu0
    %3507 = vmatpush.msra.mxu0 0.0
    %3508 = vmatpush.msra.mxu0 0.0
    %3509 = vmatpush.msra.mxu0 0.0
    %3510 = vmatpush.msra.mxu0 0.0
    %3511 = vmatpush.msra.mxu0 0.0
    %3512 = vmatpush.msra.mxu0 0.0
    %3513 = vmatpush.msra.mxu0 0.0
    %3514 = vmatpush.msra.mxu0 0.0
    %v3515 = vand.u32 %v40, 4294901760
    %v3516 = vsub.f32 %v40, %v3515
    %3517 = vmatpush.msra.mxu0 %v3516
    %v3518 = vand.u32 %v38, 4294901760
    %v3519 = vsub.f32 %v38, %v3518
    %3520 = vmatpush.msra.mxu0 %v3519
    %v3521 = vand.u32 %v36, 4294901760
    %v3522 = vsub.f32 %v36, %v3521
    %3523 = vmatpush.msra.mxu0 %v3522
    %v3524 = vand.u32 %v34, 4294901760
    %v3525 = vsub.f32 %v34, %v3524
    %3526 = vmatpush.msra.mxu0 %v3525
    %v3527 = vand.u32 %v32, 4294901760
    %v3528 = vsub.f32 %v32, %v3527
    %3529 = vmatpush.msra.mxu0 %v3528
    %v3530 = vand.u32 %v30, 4294901760
    %v3531 = vsub.f32 %v30, %v3530
    %3532 = vmatpush.msra.mxu0 %v3531
    %v3533 = vand.u32 %v28, 4294901760
    %v3534 = vsub.f32 %v28, %v3533
    %3535 = vmatpush.msra.mxu0 %v3534
    %v3536 = vand.u32 %v26, 4294901760
    %v3537 = vsub.f32 %v26, %v3536
    %3538 = vmatpush.msra.mxu0 %v3537
    %v3539 = vand.u32 %v3174, 4294901760
    %v3540 = vsub.f32 %v3174, %v3539
    %3541 = vmatmul.f32.gmra.mxu0 %v3540
    %v3542 = vpop.f32.mrf.mxu0
    %v3543 = vadd.f32 %v3505, %v3542
    %3544 = vdwg.mxu0
    %3545 = vmatpush.msra.mxu0 0.0
    %3546 = vmatpush.msra.mxu0 0.0
    %3547 = vmatpush.msra.mxu0 0.0
    %3548 = vmatpush.msra.mxu0 0.0
    %3549 = vmatpush.msra.mxu0 0.0
    %3550 = vmatpush.msra.mxu0 0.0
    %3551 = vmatpush.msra.mxu0 0.0
    %3552 = vmatpush.msra.mxu0 0.0
    %v3553 = vand.u32 %v40, 4294901760
    %3554 = vmatpush.msra.mxu0 %v3553
    %v3555 = vand.u32 %v38, 4294901760
    %3556 = vmatpush.msra.mxu0 %v3555
    %v3557 = vand.u32 %v36, 4294901760
    %3558 = vmatpush.msra.mxu0 %v3557
    %v3559 = vand.u32 %v34, 4294901760
    %3560 = vmatpush.msra.mxu0 %v3559
    %v3561 = vand.u32 %v32, 4294901760
    %3562 = vmatpush.msra.mxu0 %v3561
    %v3563 = vand.u32 %v30, 4294901760
    %3564 = vmatpush.msra.mxu0 %v3563
    %v3565 = vand.u32 %v28, 4294901760
    %3566 = vmatpush.msra.mxu0 %v3565
    %v3567 = vand.u32 %v26, 4294901760
    %3568 = vmatpush.msra.mxu0 %v3567
    %v3569 = vand.u32 %v3174, 4294901760
    %v3570 = vsub.f32 %v3174, %v3569
    %v3571 = vand.u32 %v3570, 4294901760
    %3572 = vmatmul.f32.gmra.mxu0 %v3571
    %v3573 = vpop.f32.mrf.mxu0
    %v3574 = vadd.f32 %v3543, %v3573
    %3575 = vdwg.mxu0
    %3576 = vmatpush.msra.mxu0 0.0
    %3577 = vmatpush.msra.mxu0 0.0
    %3578 = vmatpush.msra.mxu0 0.0
    %3579 = vmatpush.msra.mxu0 0.0
    %3580 = vmatpush.msra.mxu0 0.0
    %3581 = vmatpush.msra.mxu0 0.0
    %3582 = vmatpush.msra.mxu0 0.0
    %3583 = vmatpush.msra.mxu0 0.0
    %v3584 = vand.u32 %v40, 4294901760
    %v3585 = vsub.f32 %v40, %v3584
    %v3586 = vand.u32 %v3585, 4294901760
    %3587 = vmatpush.msra.mxu0 %v3586
    %v3588 = vand.u32 %v38, 4294901760
    %v3589 = vsub.f32 %v38, %v3588
    %v3590 = vand.u32 %v3589, 4294901760
    %3591 = vmatpush.msra.mxu0 %v3590
    %v3592 = vand.u32 %v36, 4294901760
    %v3593 = vsub.f32 %v36, %v3592
    %v3594 = vand.u32 %v3593, 4294901760
    %3595 = vmatpush.msra.mxu0 %v3594
    %v3596 = vand.u32 %v34, 4294901760
    %v3597 = vsub.f32 %v34, %v3596
    %v3598 = vand.u32 %v3597, 4294901760
    %3599 = vmatpush.msra.mxu0 %v3598
    %v3600 = vand.u32 %v32, 4294901760
    %v3601 = vsub.f32 %v32, %v3600
    %v3602 = vand.u32 %v3601, 4294901760
    %3603 = vmatpush.msra.mxu0 %v3602
    %v3604 = vand.u32 %v30, 4294901760
    %v3605 = vsub.f32 %v30, %v3604
    %v3606 = vand.u32 %v3605, 4294901760
    %3607 = vmatpush.msra.mxu0 %v3606
    %v3608 = vand.u32 %v28, 4294901760
    %v3609 = vsub.f32 %v28, %v3608
    %v3610 = vand.u32 %v3609, 4294901760
    %3611 = vmatpush.msra.mxu0 %v3610
    %v3612 = vand.u32 %v26, 4294901760
    %v3613 = vsub.f32 %v26, %v3612
    %v3614 = vand.u32 %v3613, 4294901760
    %3615 = vmatpush.msra.mxu0 %v3614
    %v3616 = vand.u32 %v3174, 4294901760
    %3617 = vmatmul.f32.gmra.mxu0 %v3616
    %v3618 = vpop.f32.mrf.mxu0
    %v3619 = vadd.f32 %v3574, %v3618
    %3620 = vdwg.mxu0
    %3621 = vmatpush.msra.mxu0 0.0
    %3622 = vmatpush.msra.mxu0 0.0
    %3623 = vmatpush.msra.mxu0 0.0
    %3624 = vmatpush.msra.mxu0 0.0
    %3625 = vmatpush.msra.mxu0 0.0
    %3626 = vmatpush.msra.mxu0 0.0
    %3627 = vmatpush.msra.mxu0 0.0
    %3628 = vmatpush.msra.mxu0 0.0
    %v3629 = vand.u32 %v40, 4294901760
    %3630 = vmatpush.msra.mxu0 %v3629
    %v3631 = vand.u32 %v38, 4294901760
    %3632 = vmatpush.msra.mxu0 %v3631
    %v3633 = vand.u32 %v36, 4294901760
    %3634 = vmatpush.msra.mxu0 %v3633
    %v3635 = vand.u32 %v34, 4294901760
    %3636 = vmatpush.msra.mxu0 %v3635
    %v3637 = vand.u32 %v32, 4294901760
    %3638 = vmatpush.msra.mxu0 %v3637
    %v3639 = vand.u32 %v30, 4294901760
    %3640 = vmatpush.msra.mxu0 %v3639
    %v3641 = vand.u32 %v28, 4294901760
    %3642 = vmatpush.msra.mxu0 %v3641
    %v3643 = vand.u32 %v26, 4294901760
    %3644 = vmatpush.msra.mxu0 %v3643
    %v3645 = vand.u32 %v3174, 4294901760
    %3646 = vmatmul.f32.gmra.mxu0 %v3645
    %v3647 = vpop.f32.mrf.mxu0
    %v3648 = vadd.f32 %v3619, %v3647
    %3649 = vdwg.mxu0
    %v3652 = vrot.slane %v3648, 6
    %v3653 = vsel %vm534, %v3411, %v3652
    %v3655 = vadd.f32 %v3170, %v3653
    %v3656 = vmul.f32 %v3655, 0.5
    %3658 = vst [vmem:[#allocation1] ss:$4 sm:$0xff] %v3655
    %v3659 = vld.sshfl [vmem:[#allocation1] sm:$0xff pattern:$0x73625140]
    %v3660 = vld.sshfl [vmem:[#allocation1 + $0x8] sm:$0xff pattern:$0x73625140]
    %3664 = vst [vmem:[#allocation1] ss:$4 sm:$0xff] %v3656
    %v3665 = vld.sshfl [vmem:[#allocation1] sm:$0xff pattern:$0x73625140]
    %v3666 = vld.sshfl [vmem:[#allocation1 + $0x8] sm:$0xff pattern:$0x73625140]
    %v3669 = vsel %vm48, %v3659, %v3665
    %v3670 = vsel %vm49, %v3660, %v3666
    %v3671 = vtanh.pop %v3669
    %v3672 = vtanh.pop %v3670
    %v3673 = vmul.f32 %v3671, 0.5
    %v3674 = vmul.f32 %v3672, 0.5
    %v3675 = vadd.f32 %v3673, 0.5
    %v3676 = vadd.f32 %v3674, 0.5
    %v3677 = vsel %vm48, %v3671, %v3675
    %v3678 = vsel %vm49, %v3672, %v3676
    %v3679 = vmul.f32 %v3677, %v3166
    %v3680 = vmul.f32 %v3677, %v3678
    %3682 = vrot.lane.b32.xlu0 %v3680, 64
    %v3683 = vpop.permute.xlu0 %3682
    %v3685 = vadd.f32 %v3679, %v3683
    %v3686 = vtanh.pop %v3685
    %v3687 = vmul.f32 %v3678, %v3686
    %s3688 = scalar_lea.vmem %s0, 28
    %v3689 = vld [vmem:[%s3688] sm:$0xf]
    %3691 = vrot.lane.b32.xlu0 %v3687, 64
    %v3692 = vpop.permute.xlu0 %3691
    %v3693 = vsel %vm53, %v3692, 0
    %3695 = vmatpush.msra.mxu0 0.0
    %3696 = vmatpush.msra.mxu0 0.0
    %3697 = vmatpush.msra.mxu0 0.0
    %3698 = vmatpush.msra.mxu0 0.0
    %3699 = vmatpush.msra.mxu0 0.0
    %3700 = vmatpush.msra.mxu0 0.0
    %3701 = vmatpush.msra.mxu0 0.0
    %3702 = vmatpush.msra.mxu0 0.0
    %v3703 = vand.u32 %v39, 4294901760
    %3704 = vmatpush.msra.mxu0 %v3703
    %v3705 = vand.u32 %v37, 4294901760
    %3706 = vmatpush.msra.mxu0 %v3705
    %v3707 = vand.u32 %v35, 4294901760
    %3708 = vmatpush.msra.mxu0 %v3707
    %v3709 = vand.u32 %v33, 4294901760
    %3710 = vmatpush.msra.mxu0 %v3709
    %v3711 = vand.u32 %v31, 4294901760
    %3712 = vmatpush.msra.mxu0 %v3711
    %v3713 = vand.u32 %v29, 4294901760
    %3714 = vmatpush.msra.mxu0 %v3713
    %v3715 = vand.u32 %v27, 4294901760
    %3716 = vmatpush.msra.mxu0 %v3715
    %v3717 = vand.u32 %v25, 4294901760
    %3718 = vmatpush.msra.mxu0 %v3717
    %v3719 = vand.u32 %v3693, 4294901760
    %v3720 = vsub.f32 %v3693, %v3719
    %v3721 = vand.u32 %v3720, 4294901760
    %v3722 = vsub.f32 %v3720, %v3721
    %v3723 = vand.u32 %v3722, 4294901760
    %3724 = vmatmul.f32.gmra.mxu0 %v3723
    %v3725 = vpop.f32.mrf.mxu0
    %v3726 = vadd.f32 0.0, %v3725
    %3727 = vdwg.mxu0
    %3728 = vmatpush.msra.mxu0 0.0
    %3729 = vmatpush.msra.mxu0 0.0
    %3730 = vmatpush.msra.mxu0 0.0
    %3731 = vmatpush.msra.mxu0 0.0
    %3732 = vmatpush.msra.mxu0 0.0
    %3733 = vmatpush.msra.mxu0 0.0
    %3734 = vmatpush.msra.mxu0 0.0
    %3735 = vmatpush.msra.mxu0 0.0
    %v3736 = vand.u32 %v39, 4294901760
    %v3737 = vsub.f32 %v39, %v3736
    %v3738 = vand.u32 %v3737, 4294901760
    %v3739 = vsub.f32 %v3737, %v3738
    %v3740 = vand.u32 %v3739, 4294901760
    %3741 = vmatpush.msra.mxu0 %v3740
    %v3742 = vand.u32 %v37, 4294901760
    %v3743 = vsub.f32 %v37, %v3742
    %v3744 = vand.u32 %v3743, 4294901760
    %v3745 = vsub.f32 %v3743, %v3744
    %v3746 = vand.u32 %v3745, 4294901760
    %3747 = vmatpush.msra.mxu0 %v3746
    %v3748 = vand.u32 %v35, 4294901760
    %v3749 = vsub.f32 %v35, %v3748
    %v3750 = vand.u32 %v3749, 4294901760
    %v3751 = vsub.f32 %v3749, %v3750
    %v3752 = vand.u32 %v3751, 4294901760
    %3753 = vmatpush.msra.mxu0 %v3752
    %v3754 = vand.u32 %v33, 4294901760
    %v3755 = vsub.f32 %v33, %v3754
    %v3756 = vand.u32 %v3755, 4294901760
    %v3757 = vsub.f32 %v3755, %v3756
    %v3758 = vand.u32 %v3757, 4294901760
    %3759 = vmatpush.msra.mxu0 %v3758
    %v3760 = vand.u32 %v31, 4294901760
    %v3761 = vsub.f32 %v31, %v3760
    %v3762 = vand.u32 %v3761, 4294901760
    %v3763 = vsub.f32 %v3761, %v3762
    %v3764 = vand.u32 %v3763, 4294901760
    %3765 = vmatpush.msra.mxu0 %v3764
    %v3766 = vand.u32 %v29, 4294901760
    %v3767 = vsub.f32 %v29, %v3766
    %v3768 = vand.u32 %v3767, 4294901760
    %v3769 = vsub.f32 %v3767, %v3768
    %v3770 = vand.u32 %v3769, 4294901760
    %3771 = vmatpush.msra.mxu0 %v3770
    %v3772 = vand.u32 %v27, 4294901760
    %v3773 = vsub.f32 %v27, %v3772
    %v3774 = vand.u32 %v3773, 4294901760
    %v3775 = vsub.f32 %v3773, %v3774
    %v3776 = vand.u32 %v3775, 4294901760
    %3777 = vmatpush.msra.mxu0 %v3776
    %v3778 = vand.u32 %v25, 4294901760
    %v3779 = vsub.f32 %v25, %v3778
    %v3780 = vand.u32 %v3779, 4294901760
    %v3781 = vsub.f32 %v3779, %v3780
    %v3782 = vand.u32 %v3781, 4294901760
    %3783 = vmatpush.msra.mxu0 %v3782
    %v3784 = vand.u32 %v3693, 4294901760
    %3785 = vmatmul.f32.gmra.mxu0 %v3784
    %v3786 = vpop.f32.mrf.mxu0
    %v3787 = vadd.f32 %v3726, %v3786
    %3788 = vdwg.mxu0
    %3789 = vmatpush.msra.mxu0 0.0
    %3790 = vmatpush.msra.mxu0 0.0
    %3791 = vmatpush.msra.mxu0 0.0
    %3792 = vmatpush.msra.mxu0 0.0
    %3793 = vmatpush.msra.mxu0 0.0
    %3794 = vmatpush.msra.mxu0 0.0
    %3795 = vmatpush.msra.mxu0 0.0
    %3796 = vmatpush.msra.mxu0 0.0
    %v3797 = vand.u32 %v39, 4294901760
    %v3798 = vsub.f32 %v39, %v3797
    %3799 = vmatpush.msra.mxu0 %v3798
    %v3800 = vand.u32 %v37, 4294901760
    %v3801 = vsub.f32 %v37, %v3800
    %3802 = vmatpush.msra.mxu0 %v3801
    %v3803 = vand.u32 %v35, 4294901760
    %v3804 = vsub.f32 %v35, %v3803
    %3805 = vmatpush.msra.mxu0 %v3804
    %v3806 = vand.u32 %v33, 4294901760
    %v3807 = vsub.f32 %v33, %v3806
    %3808 = vmatpush.msra.mxu0 %v3807
    %v3809 = vand.u32 %v31, 4294901760
    %v3810 = vsub.f32 %v31, %v3809
    %3811 = vmatpush.msra.mxu0 %v3810
    %v3812 = vand.u32 %v29, 4294901760
    %v3813 = vsub.f32 %v29, %v3812
    %3814 = vmatpush.msra.mxu0 %v3813
    %v3815 = vand.u32 %v27, 4294901760
    %v3816 = vsub.f32 %v27, %v3815
    %3817 = vmatpush.msra.mxu0 %v3816
    %v3818 = vand.u32 %v25, 4294901760
    %v3819 = vsub.f32 %v25, %v3818
    %3820 = vmatpush.msra.mxu0 %v3819
    %v3821 = vand.u32 %v3693, 4294901760
    %v3822 = vsub.f32 %v3693, %v3821
    %3823 = vmatmul.f32.gmra.mxu0 %v3822
    %v3824 = vpop.f32.mrf.mxu0
    %v3825 = vadd.f32 %v3787, %v3824
    %3826 = vdwg.mxu0
    %3827 = vmatpush.msra.mxu0 0.0
    %3828 = vmatpush.msra.mxu0 0.0
    %3829 = vmatpush.msra.mxu0 0.0
    %3830 = vmatpush.msra.mxu0 0.0
    %3831 = vmatpush.msra.mxu0 0.0
    %3832 = vmatpush.msra.mxu0 0.0
    %3833 = vmatpush.msra.mxu0 0.0
    %3834 = vmatpush.msra.mxu0 0.0
    %v3835 = vand.u32 %v39, 4294901760
    %3836 = vmatpush.msra.mxu0 %v3835
    %v3837 = vand.u32 %v37, 4294901760
    %3838 = vmatpush.msra.mxu0 %v3837
    %v3839 = vand.u32 %v35, 4294901760
    %3840 = vmatpush.msra.mxu0 %v3839
    %v3841 = vand.u32 %v33, 4294901760
    %3842 = vmatpush.msra.mxu0 %v3841
    %v3843 = vand.u32 %v31, 4294901760
    %3844 = vmatpush.msra.mxu0 %v3843
    %v3845 = vand.u32 %v29, 4294901760
    %3846 = vmatpush.msra.mxu0 %v3845
    %v3847 = vand.u32 %v27, 4294901760
    %3848 = vmatpush.msra.mxu0 %v3847
    %v3849 = vand.u32 %v25, 4294901760
    %3850 = vmatpush.msra.mxu0 %v3849
    %v3851 = vand.u32 %v3693, 4294901760
    %v3852 = vsub.f32 %v3693, %v3851
    %v3853 = vand.u32 %v3852, 4294901760
    %3854 = vmatmul.f32.gmra.mxu0 %v3853
    %v3855 = vpop.f32.mrf.mxu0
    %v3856 = vadd.f32 %v3825, %v3855
    %3857 = vdwg.mxu0
    %3858 = vmatpush.msra.mxu0 0.0
    %3859 = vmatpush.msra.mxu0 0.0
    %3860 = vmatpush.msra.mxu0 0.0
    %3861 = vmatpush.msra.mxu0 0.0
    %3862 = vmatpush.msra.mxu0 0.0
    %3863 = vmatpush.msra.mxu0 0.0
    %3864 = vmatpush.msra.mxu0 0.0
    %3865 = vmatpush.msra.mxu0 0.0
    %v3866 = vand.u32 %v39, 4294901760
    %v3867 = vsub.f32 %v39, %v3866
    %v3868 = vand.u32 %v3867, 4294901760
    %3869 = vmatpush.msra.mxu0 %v3868
    %v3870 = vand.u32 %v37, 4294901760
    %v3871 = vsub.f32 %v37, %v3870
    %v3872 = vand.u32 %v3871, 4294901760
    %3873 = vmatpush.msra.mxu0 %v3872
    %v3874 = vand.u32 %v35, 4294901760
    %v3875 = vsub.f32 %v35, %v3874
    %v3876 = vand.u32 %v3875, 4294901760
    %3877 = vmatpush.msra.mxu0 %v3876
    %v3878 = vand.u32 %v33, 4294901760
    %v3879 = vsub.f32 %v33, %v3878
    %v3880 = vand.u32 %v3879, 4294901760
    %3881 = vmatpush.msra.mxu0 %v3880
    %v3882 = vand.u32 %v31, 4294901760
    %v3883 = vsub.f32 %v31, %v3882
    %v3884 = vand.u32 %v3883, 4294901760
    %3885 = vmatpush.msra.mxu0 %v3884
    %v3886 = vand.u32 %v29, 4294901760
    %v3887 = vsub.f32 %v29, %v3886
    %v3888 = vand.u32 %v3887, 4294901760
    %3889 = vmatpush.msra.mxu0 %v3888
    %v3890 = vand.u32 %v27, 4294901760
    %v3891 = vsub.f32 %v27, %v3890
    %v3892 = vand.u32 %v3891, 4294901760
    %3893 = vmatpush.msra.mxu0 %v3892
    %v3894 = vand.u32 %v25, 4294901760
    %v3895 = vsub.f32 %v25, %v3894
    %v3896 = vand.u32 %v3895, 4294901760
    %3897 = vmatpush.msra.mxu0 %v3896
    %v3898 = vand.u32 %v3693, 4294901760
    %3899 = vmatmul.f32.gmra.mxu0 %v3898
    %v3900 = vpop.f32.mrf.mxu0
    %v3901 = vadd.f32 %v3856, %v3900
    %3902 = vdwg.mxu0
    %3903 = vmatpush.msra.mxu0 0.0
    %3904 = vmatpush.msra.mxu0 0.0
    %3905 = vmatpush.msra.mxu0 0.0
    %3906 = vmatpush.msra.mxu0 0.0
    %3907 = vmatpush.msra.mxu0 0.0
    %3908 = vmatpush.msra.mxu0 0.0
    %3909 = vmatpush.msra.mxu0 0.0
    %3910 = vmatpush.msra.mxu0 0.0
    %v3911 = vand.u32 %v39, 4294901760
    %3912 = vmatpush.msra.mxu0 %v3911
    %v3913 = vand.u32 %v37, 4294901760
    %3914 = vmatpush.msra.mxu0 %v3913
    %v3915 = vand.u32 %v35, 4294901760
    %3916 = vmatpush.msra.mxu0 %v3915
    %v3917 = vand.u32 %v33, 4294901760
    %3918 = vmatpush.msra.mxu0 %v3917
    %v3919 = vand.u32 %v31, 4294901760
    %3920 = vmatpush.msra.mxu0 %v3919
    %v3921 = vand.u32 %v29, 4294901760
    %3922 = vmatpush.msra.mxu0 %v3921
    %v3923 = vand.u32 %v27, 4294901760
    %3924 = vmatpush.msra.mxu0 %v3923
    %v3925 = vand.u32 %v25, 4294901760
    %3926 = vmatpush.msra.mxu0 %v3925
    %v3927 = vand.u32 %v3693, 4294901760
    %3928 = vmatmul.f32.gmra.mxu0 %v3927
    %v3929 = vpop.f32.mrf.mxu0
    %v3930 = vadd.f32 %v3901, %v3929
    %3931 = vdwg.mxu0
    %3932 = vmatpush.msra.mxu0 0.0
    %3933 = vmatpush.msra.mxu0 0.0
    %3934 = vmatpush.msra.mxu0 0.0
    %3935 = vmatpush.msra.mxu0 0.0
    %3936 = vmatpush.msra.mxu0 0.0
    %3937 = vmatpush.msra.mxu0 0.0
    %3938 = vmatpush.msra.mxu0 0.0
    %3939 = vmatpush.msra.mxu0 0.0
    %v3940 = vand.u32 %v40, 4294901760
    %3941 = vmatpush.msra.mxu0 %v3940
    %v3942 = vand.u32 %v38, 4294901760
    %3943 = vmatpush.msra.mxu0 %v3942
    %v3944 = vand.u32 %v36, 4294901760
    %3945 = vmatpush.msra.mxu0 %v3944
    %v3946 = vand.u32 %v34, 4294901760
    %3947 = vmatpush.msra.mxu0 %v3946
    %v3948 = vand.u32 %v32, 4294901760
    %3949 = vmatpush.msra.mxu0 %v3948
    %v3950 = vand.u32 %v30, 4294901760
    %3951 = vmatpush.msra.mxu0 %v3950
    %v3952 = vand.u32 %v28, 4294901760
    %3953 = vmatpush.msra.mxu0 %v3952
    %v3954 = vand.u32 %v26, 4294901760
    %3955 = vmatpush.msra.mxu0 %v3954
    %v3956 = vand.u32 %v3693, 4294901760
    %v3957 = vsub.f32 %v3693, %v3956
    %v3958 = vand.u32 %v3957, 4294901760
    %v3959 = vsub.f32 %v3957, %v3958
    %v3960 = vand.u32 %v3959, 4294901760
    %3961 = vmatmul.f32.gmra.mxu0 %v3960
    %v3962 = vpop.f32.mrf.mxu0
    %v3963 = vadd.f32 0.0, %v3962
    %3964 = vdwg.mxu0
    %3965 = vmatpush.msra.mxu0 0.0
    %3966 = vmatpush.msra.mxu0 0.0
    %3967 = vmatpush.msra.mxu0 0.0
    %3968 = vmatpush.msra.mxu0 0.0
    %3969 = vmatpush.msra.mxu0 0.0
    %3970 = vmatpush.msra.mxu0 0.0
    %3971 = vmatpush.msra.mxu0 0.0
    %3972 = vmatpush.msra.mxu0 0.0
    %v3973 = vand.u32 %v40, 4294901760
    %v3974 = vsub.f32 %v40, %v3973
    %v3975 = vand.u32 %v3974, 4294901760
    %v3976 = vsub.f32 %v3974, %v3975
    %v3977 = vand.u32 %v3976, 4294901760
    %3978 = vmatpush.msra.mxu0 %v3977
    %v3979 = vand.u32 %v38, 4294901760
    %v3980 = vsub.f32 %v38, %v3979
    %v3981 = vand.u32 %v3980, 4294901760
    %v3982 = vsub.f32 %v3980, %v3981
    %v3983 = vand.u32 %v3982, 4294901760
    %3984 = vmatpush.msra.mxu0 %v3983
    %v3985 = vand.u32 %v36, 4294901760
    %v3986 = vsub.f32 %v36, %v3985
    %v3987 = vand.u32 %v3986, 4294901760
    %v3988 = vsub.f32 %v3986, %v3987
    %v3989 = vand.u32 %v3988, 4294901760
    %3990 = vmatpush.msra.mxu0 %v3989
    %v3991 = vand.u32 %v34, 4294901760
    %v3992 = vsub.f32 %v34, %v3991
    %v3993 = vand.u32 %v3992, 4294901760
    %v3994 = vsub.f32 %v3992, %v3993
    %v3995 = vand.u32 %v3994, 4294901760
    %3996 = vmatpush.msra.mxu0 %v3995
    %v3997 = vand.u32 %v32, 4294901760
    %v3998 = vsub.f32 %v32, %v3997
    %v3999 = vand.u32 %v3998, 4294901760
    %v4000 = vsub.f32 %v3998, %v3999
    %v4001 = vand.u32 %v4000, 4294901760
    %4002 = vmatpush.msra.mxu0 %v4001
    %v4003 = vand.u32 %v30, 4294901760
    %v4004 = vsub.f32 %v30, %v4003
    %v4005 = vand.u32 %v4004, 4294901760
    %v4006 = vsub.f32 %v4004, %v4005
    %v4007 = vand.u32 %v4006, 4294901760
    %4008 = vmatpush.msra.mxu0 %v4007
    %v4009 = vand.u32 %v28, 4294901760
    %v4010 = vsub.f32 %v28, %v4009
    %v4011 = vand.u32 %v4010, 4294901760
    %v4012 = vsub.f32 %v4010, %v4011
    %v4013 = vand.u32 %v4012, 4294901760
    %4014 = vmatpush.msra.mxu0 %v4013
    %v4015 = vand.u32 %v26, 4294901760
    %v4016 = vsub.f32 %v26, %v4015
    %v4017 = vand.u32 %v4016, 4294901760
    %v4018 = vsub.f32 %v4016, %v4017
    %v4019 = vand.u32 %v4018, 4294901760
    %4020 = vmatpush.msra.mxu0 %v4019
    %v4021 = vand.u32 %v3693, 4294901760
    %4022 = vmatmul.f32.gmra.mxu0 %v4021
    %v4023 = vpop.f32.mrf.mxu0
    %v4024 = vadd.f32 %v3963, %v4023
    %4025 = vdwg.mxu0
    %4026 = vmatpush.msra.mxu0 0.0
    %4027 = vmatpush.msra.mxu0 0.0
    %4028 = vmatpush.msra.mxu0 0.0
    %4029 = vmatpush.msra.mxu0 0.0
    %4030 = vmatpush.msra.mxu0 0.0
    %4031 = vmatpush.msra.mxu0 0.0
    %4032 = vmatpush.msra.mxu0 0.0
    %4033 = vmatpush.msra.mxu0 0.0
    %v4034 = vand.u32 %v40, 4294901760
    %v4035 = vsub.f32 %v40, %v4034
    %4036 = vmatpush.msra.mxu0 %v4035
    %v4037 = vand.u32 %v38, 4294901760
    %v4038 = vsub.f32 %v38, %v4037
    %4039 = vmatpush.msra.mxu0 %v4038
    %v4040 = vand.u32 %v36, 4294901760
    %v4041 = vsub.f32 %v36, %v4040
    %4042 = vmatpush.msra.mxu0 %v4041
    %v4043 = vand.u32 %v34, 4294901760
    %v4044 = vsub.f32 %v34, %v4043
    %4045 = vmatpush.msra.mxu0 %v4044
    %v4046 = vand.u32 %v32, 4294901760
    %v4047 = vsub.f32 %v32, %v4046
    %4048 = vmatpush.msra.mxu0 %v4047
    %v4049 = vand.u32 %v30, 4294901760
    %v4050 = vsub.f32 %v30, %v4049
    %4051 = vmatpush.msra.mxu0 %v4050
    %v4052 = vand.u32 %v28, 4294901760
    %v4053 = vsub.f32 %v28, %v4052
    %4054 = vmatpush.msra.mxu0 %v4053
    %v4055 = vand.u32 %v26, 4294901760
    %v4056 = vsub.f32 %v26, %v4055
    %4057 = vmatpush.msra.mxu0 %v4056
    %v4058 = vand.u32 %v3693, 4294901760
    %v4059 = vsub.f32 %v3693, %v4058
    %4060 = vmatmul.f32.gmra.mxu0 %v4059
    %v4061 = vpop.f32.mrf.mxu0
    %v4062 = vadd.f32 %v4024, %v4061
    %4063 = vdwg.mxu0
    %4064 = vmatpush.msra.mxu0 0.0
    %4065 = vmatpush.msra.mxu0 0.0
    %4066 = vmatpush.msra.mxu0 0.0
    %4067 = vmatpush.msra.mxu0 0.0
    %4068 = vmatpush.msra.mxu0 0.0
    %4069 = vmatpush.msra.mxu0 0.0
    %4070 = vmatpush.msra.mxu0 0.0
    %4071 = vmatpush.msra.mxu0 0.0
    %v4072 = vand.u32 %v40, 4294901760
    %4073 = vmatpush.msra.mxu0 %v4072
    %v4074 = vand.u32 %v38, 4294901760
    %4075 = vmatpush.msra.mxu0 %v4074
    %v4076 = vand.u32 %v36, 4294901760
    %4077 = vmatpush.msra.mxu0 %v4076
    %v4078 = vand.u32 %v34, 4294901760
    %4079 = vmatpush.msra.mxu0 %v4078
    %v4080 = vand.u32 %v32, 4294901760
    %4081 = vmatpush.msra.mxu0 %v4080
    %v4082 = vand.u32 %v30, 4294901760
    %4083 = vmatpush.msra.mxu0 %v4082
    %v4084 = vand.u32 %v28, 4294901760
    %4085 = vmatpush.msra.mxu0 %v4084
    %v4086 = vand.u32 %v26, 4294901760
    %4087 = vmatpush.msra.mxu0 %v4086
    %v4088 = vand.u32 %v3693, 4294901760
    %v4089 = vsub.f32 %v3693, %v4088
    %v4090 = vand.u32 %v4089, 4294901760
    %4091 = vmatmul.f32.gmra.mxu0 %v4090
    %v4092 = vpop.f32.mrf.mxu0
    %v4093 = vadd.f32 %v4062, %v4092
    %4094 = vdwg.mxu0
    %4095 = vmatpush.msra.mxu0 0.0
    %4096 = vmatpush.msra.mxu0 0.0
    %4097 = vmatpush.msra.mxu0 0.0
    %4098 = vmatpush.msra.mxu0 0.0
    %4099 = vmatpush.msra.mxu0 0.0
    %4100 = vmatpush.msra.mxu0 0.0
    %4101 = vmatpush.msra.mxu0 0.0
    %4102 = vmatpush.msra.mxu0 0.0
    %v4103 = vand.u32 %v40, 4294901760
    %v4104 = vsub.f32 %v40, %v4103
    %v4105 = vand.u32 %v4104, 4294901760
    %4106 = vmatpush.msra.mxu0 %v4105
    %v4107 = vand.u32 %v38, 4294901760
    %v4108 = vsub.f32 %v38, %v4107
    %v4109 = vand.u32 %v4108, 4294901760
    %4110 = vmatpush.msra.mxu0 %v4109
    %v4111 = vand.u32 %v36, 4294901760
    %v4112 = vsub.f32 %v36, %v4111
    %v4113 = vand.u32 %v4112, 4294901760
    %4114 = vmatpush.msra.mxu0 %v4113
    %v4115 = vand.u32 %v34, 4294901760
    %v4116 = vsub.f32 %v34, %v4115
    %v4117 = vand.u32 %v4116, 4294901760
    %4118 = vmatpush.msra.mxu0 %v4117
    %v4119 = vand.u32 %v32, 4294901760
    %v4120 = vsub.f32 %v32, %v4119
    %v4121 = vand.u32 %v4120, 4294901760
    %4122 = vmatpush.msra.mxu0 %v4121
    %v4123 = vand.u32 %v30, 4294901760
    %v4124 = vsub.f32 %v30, %v4123
    %v4125 = vand.u32 %v4124, 4294901760
    %4126 = vmatpush.msra.mxu0 %v4125
    %v4127 = vand.u32 %v28, 4294901760
    %v4128 = vsub.f32 %v28, %v4127
    %v4129 = vand.u32 %v4128, 4294901760
    %4130 = vmatpush.msra.mxu0 %v4129
    %v4131 = vand.u32 %v26, 4294901760
    %v4132 = vsub.f32 %v26, %v4131
    %v4133 = vand.u32 %v4132, 4294901760
    %4134 = vmatpush.msra.mxu0 %v4133
    %v4135 = vand.u32 %v3693, 4294901760
    %4136 = vmatmul.f32.gmra.mxu0 %v4135
    %v4137 = vpop.f32.mrf.mxu0
    %v4138 = vadd.f32 %v4093, %v4137
    %4139 = vdwg.mxu0
    %4140 = vmatpush.msra.mxu0 0.0
    %4141 = vmatpush.msra.mxu0 0.0
    %4142 = vmatpush.msra.mxu0 0.0
    %4143 = vmatpush.msra.mxu0 0.0
    %4144 = vmatpush.msra.mxu0 0.0
    %4145 = vmatpush.msra.mxu0 0.0
    %4146 = vmatpush.msra.mxu0 0.0
    %4147 = vmatpush.msra.mxu0 0.0
    %v4148 = vand.u32 %v40, 4294901760
    %4149 = vmatpush.msra.mxu0 %v4148
    %v4150 = vand.u32 %v38, 4294901760
    %4151 = vmatpush.msra.mxu0 %v4150
    %v4152 = vand.u32 %v36, 4294901760
    %4153 = vmatpush.msra.mxu0 %v4152
    %v4154 = vand.u32 %v34, 4294901760
    %4155 = vmatpush.msra.mxu0 %v4154
    %v4156 = vand.u32 %v32, 4294901760
    %4157 = vmatpush.msra.mxu0 %v4156
    %v4158 = vand.u32 %v30, 4294901760
    %4159 = vmatpush.msra.mxu0 %v4158
    %v4160 = vand.u32 %v28, 4294901760
    %4161 = vmatpush.msra.mxu0 %v4160
    %v4162 = vand.u32 %v26, 4294901760
    %4163 = vmatpush.msra.mxu0 %v4162
    %v4164 = vand.u32 %v3693, 4294901760
    %4165 = vmatmul.f32.gmra.mxu0 %v4164
    %v4166 = vpop.f32.mrf.mxu0
    %v4167 = vadd.f32 %v4138, %v4166
    %4168 = vdwg.mxu0
    %v4171 = vrot.slane %v4167, 6
    %v4172 = vsel %vm534, %v3930, %v4171
    %v4174 = vadd.f32 %v3689, %v4172
    %v4175 = vmul.f32 %v4174, 0.5
    %4177 = vst [vmem:[#allocation1] ss:$4 sm:$0xff] %v4174
    %v4178 = vld.sshfl [vmem:[#allocation1] sm:$0xff pattern:$0x73625140]
    %v4179 = vld.sshfl [vmem:[#allocation1 + $0x8] sm:$0xff pattern:$0x73625140]
    %4183 = vst [vmem:[#allocation1] ss:$4 sm:$0xff] %v4175
    %v4184 = vld.sshfl [vmem:[#allocation1] sm:$0xff pattern:$0x73625140]
    %v4185 = vld.sshfl [vmem:[#allocation1 + $0x8] sm:$0xff pattern:$0x73625140]
    %v4188 = vsel %vm48, %v4178, %v4184
    %v4189 = vsel %vm49, %v4179, %v4185
    %v4190 = vtanh.pop %v4188
    %v4191 = vtanh.pop %v4189
    %v4192 = vmul.f32 %v4190, 0.5
    %v4193 = vmul.f32 %v4191, 0.5
    %v4194 = vadd.f32 %v4192, 0.5
    %v4195 = vadd.f32 %v4193, 0.5
    %v4196 = vsel %vm48, %v4190, %v4194
    %v4197 = vsel %vm49, %v4191, %v4195
    %v4198 = vmul.f32 %v4196, %v3685
    %v4199 = vmul.f32 %v4196, %v4197
    %4201 = vrot.lane.b32.xlu0 %v4199, 64
    %v4202 = vpop.permute.xlu0 %4201
    %v4204 = vadd.f32 %v4198, %v4202
    %v4205 = vtanh.pop %v4204
    %v4206 = vmul.f32 %v4197, %v4205
    %4208 = vrot.lane.b32.xlu0 %v4206, 64
    %v4209 = vpop.permute.xlu0 %4208
    %vm4211 = vcmask 517120
    %4212 = vst.msk [vmem:[#allocation2] sm:$0x3] %vm4211, %v4209
    %4214 = vrot.lane.b32.xlu0 %v4204, 64
    %v4215 = vpop.permute.xlu0 %4214
    %4217 = vst.msk [vmem:[#allocation3] sm:$0x3] %vm4211, %v4215
    // Predicated region
    $region22: #{rlstm_forward.1} parent=1 // pred_check
      %p4218 = pneg %p18
    $region23: #{rlstm_forward.1} parent=1 // pred_check_branch
      %4220 = sbr.rel (%p4218) target = $region25
    $region24: #{rlstm_forward.1} parent=1 // pred_region
      %v4221 = vld [vmem:[%s2] sm:$0xff]
      %v4222 = vld [vmem:[%s2 + $0x8] sm:$0xff]
      %v4223 = vld [vmem:[%s2 + $0x10] sm:$0xff]
      %v4224 = vld [vmem:[%s2 + $0x18] sm:$0xff]
      %v4225 = vld [vmem:[%s2 + $0x20] sm:$0xff]
      %v4226 = vld [vmem:[%s2 + $0x28] sm:$0xff]
      %v4227 = vld [vmem:[%s2 + $0x30] sm:$0xff]
      %v4228 = vld [vmem:[%s2 + $0x38] sm:$0xff]
      %v4229 = vld [vmem:[%s3] sm:$0x1]
      %v4231 = vperm.slane %v4229, 0
      %v4233 = vsel %vm53, %v4209, 0
      %4235 = vmatpush.msra.mxu0 0.0
      %4236 = vmatpush.msra.mxu0 0.0
      %4237 = vmatpush.msra.mxu0 0.0
      %4238 = vmatpush.msra.mxu0 0.0
      %4239 = vmatpush.msra.mxu0 0.0
      %4240 = vmatpush.msra.mxu0 0.0
      %4241 = vmatpush.msra.mxu0 0.0
      %4242 = vmatpush.msra.mxu0 0.0
      %v4243 = vand.u32 %v4228, 4294901760
      %4244 = vmatpush.msra.mxu0 %v4243
      %v4245 = vand.u32 %v4227, 4294901760
      %4246 = vmatpush.msra.mxu0 %v4245
      %v4247 = vand.u32 %v4226, 4294901760
      %4248 = vmatpush.msra.mxu0 %v4247
      %v4249 = vand.u32 %v4225, 4294901760
      %4250 = vmatpush.msra.mxu0 %v4249
      %v4251 = vand.u32 %v4224, 4294901760
      %4252 = vmatpush.msra.mxu0 %v4251
      %v4253 = vand.u32 %v4223, 4294901760
      %4254 = vmatpush.msra.mxu0 %v4253
      %v4255 = vand.u32 %v4222, 4294901760
      %4256 = vmatpush.msra.mxu0 %v4255
      %v4257 = vand.u32 %v4221, 4294901760
      %4258 = vmatpush.msra.mxu0 %v4257
      %v4259 = vand.u32 %v4233, 4294901760
      %v4260 = vsub.f32 %v4233, %v4259
      %v4261 = vand.u32 %v4260, 4294901760
      %v4262 = vsub.f32 %v4260, %v4261
      %v4263 = vand.u32 %v4262, 4294901760
      %4264 = vmatmul.f32.gmra.mxu0 %v4263
      %v4265 = vpop.f32.mrf.mxu0
      %v4266 = vadd.f32 %v4231, %v4265
      %4267 = vdwg.mxu0
      %4268 = vmatpush.msra.mxu0 0.0
      %4269 = vmatpush.msra.mxu0 0.0
      %4270 = vmatpush.msra.mxu0 0.0
      %4271 = vmatpush.msra.mxu0 0.0
      %4272 = vmatpush.msra.mxu0 0.0
      %4273 = vmatpush.msra.mxu0 0.0
      %4274 = vmatpush.msra.mxu0 0.0
      %4275 = vmatpush.msra.mxu0 0.0
      %v4276 = vand.u32 %v4228, 4294901760
      %v4277 = vsub.f32 %v4228, %v4276
      %v4278 = vand.u32 %v4277, 4294901760
      %v4279 = vsub.f32 %v4277, %v4278
      %v4280 = vand.u32 %v4279, 4294901760
      %4281 = vmatpush.msra.mxu0 %v4280
      %v4282 = vand.u32 %v4227, 4294901760
      %v4283 = vsub.f32 %v4227, %v4282
      %v4284 = vand.u32 %v4283, 4294901760
      %v4285 = vsub.f32 %v4283, %v4284
      %v4286 = vand.u32 %v4285, 4294901760
      %4287 = vmatpush.msra.mxu0 %v4286
      %v4288 = vand.u32 %v4226, 4294901760
      %v4289 = vsub.f32 %v4226, %v4288
      %v4290 = vand.u32 %v4289, 4294901760
      %v4291 = vsub.f32 %v4289, %v4290
      %v4292 = vand.u32 %v4291, 4294901760
      %4293 = vmatpush.msra.mxu0 %v4292
      %v4294 = vand.u32 %v4225, 4294901760
      %v4295 = vsub.f32 %v4225, %v4294
      %v4296 = vand.u32 %v4295, 4294901760
      %v4297 = vsub.f32 %v4295, %v4296
      %v4298 = vand.u32 %v4297, 4294901760
      %4299 = vmatpush.msra.mxu0 %v4298
      %v4300 = vand.u32 %v4224, 4294901760
      %v4301 = vsub.f32 %v4224, %v4300
      %v4302 = vand.u32 %v4301, 4294901760
      %v4303 = vsub.f32 %v4301, %v4302
      %v4304 = vand.u32 %v4303, 4294901760
      %4305 = vmatpush.msra.mxu0 %v4304
      %v4306 = vand.u32 %v4223, 4294901760
      %v4307 = vsub.f32 %v4223, %v4306
      %v4308 = vand.u32 %v4307, 4294901760
      %v4309 = vsub.f32 %v4307, %v4308
      %v4310 = vand.u32 %v4309, 4294901760
      %4311 = vmatpush.msra.mxu0 %v4310
      %v4312 = vand.u32 %v4222, 4294901760
      %v4313 = vsub.f32 %v4222, %v4312
      %v4314 = vand.u32 %v4313, 4294901760
      %v4315 = vsub.f32 %v4313, %v4314
      %v4316 = vand.u32 %v4315, 4294901760
      %4317 = vmatpush.msra.mxu0 %v4316
      %v4318 = vand.u32 %v4221, 4294901760
      %v4319 = vsub.f32 %v4221, %v4318
      %v4320 = vand.u32 %v4319, 4294901760
      %v4321 = vsub.f32 %v4319, %v4320
      %v4322 = vand.u32 %v4321, 4294901760
      %4323 = vmatpush.msra.mxu0 %v4322
      %v4324 = vand.u32 %v4233, 4294901760
      %4325 = vmatmul.f32.gmra.mxu0 %v4324
      %v4326 = vpop.f32.mrf.mxu0
      %v4327 = vadd.f32 %v4266, %v4326
      %4328 = vdwg.mxu0
      %4329 = vmatpush.msra.mxu0 0.0
      %4330 = vmatpush.msra.mxu0 0.0
      %4331 = vmatpush.msra.mxu0 0.0
      %4332 = vmatpush.msra.mxu0 0.0
      %4333 = vmatpush.msra.mxu0 0.0
      %4334 = vmatpush.msra.mxu0 0.0
      %4335 = vmatpush.msra.mxu0 0.0
      %4336 = vmatpush.msra.mxu0 0.0
      %v4337 = vand.u32 %v4228, 4294901760
      %v4338 = vsub.f32 %v4228, %v4337
      %4339 = vmatpush.msra.mxu0 %v4338
      %v4340 = vand.u32 %v4227, 4294901760
      %v4341 = vsub.f32 %v4227, %v4340
      %4342 = vmatpush.msra.mxu0 %v4341
      %v4343 = vand.u32 %v4226, 4294901760
      %v4344 = vsub.f32 %v4226, %v4343
      %4345 = vmatpush.msra.mxu0 %v4344
      %v4346 = vand.u32 %v4225, 4294901760
      %v4347 = vsub.f32 %v4225, %v4346
      %4348 = vmatpush.msra.mxu0 %v4347
      %v4349 = vand.u32 %v4224, 4294901760
      %v4350 = vsub.f32 %v4224, %v4349
      %4351 = vmatpush.msra.mxu0 %v4350
      %v4352 = vand.u32 %v4223, 4294901760
      %v4353 = vsub.f32 %v4223, %v4352
      %4354 = vmatpush.msra.mxu0 %v4353
      %v4355 = vand.u32 %v4222, 4294901760
      %v4356 = vsub.f32 %v4222, %v4355
      %4357 = vmatpush.msra.mxu0 %v4356
      %v4358 = vand.u32 %v4221, 4294901760
      %v4359 = vsub.f32 %v4221, %v4358
      %4360 = vmatpush.msra.mxu0 %v4359
      %v4361 = vand.u32 %v4233, 4294901760
      %v4362 = vsub.f32 %v4233, %v4361
      %4363 = vmatmul.f32.gmra.mxu0 %v4362
      %v4364 = vpop.f32.mrf.mxu0
      %v4365 = vadd.f32 %v4327, %v4364
      %4366 = vdwg.mxu0
      %4367 = vmatpush.msra.mxu0 0.0
      %4368 = vmatpush.msra.mxu0 0.0
      %4369 = vmatpush.msra.mxu0 0.0
      %4370 = vmatpush.msra.mxu0 0.0
      %4371 = vmatpush.msra.mxu0 0.0
      %4372 = vmatpush.msra.mxu0 0.0
      %4373 = vmatpush.msra.mxu0 0.0
      %4374 = vmatpush.msra.mxu0 0.0
      %v4375 = vand.u32 %v4228, 4294901760
      %4376 = vmatpush.msra.mxu0 %v4375
      %v4377 = vand.u32 %v4227, 4294901760
      %4378 = vmatpush.msra.mxu0 %v4377
      %v4379 = vand.u32 %v4226, 4294901760
      %4380 = vmatpush.msra.mxu0 %v4379
      %v4381 = vand.u32 %v4225, 4294901760
      %4382 = vmatpush.msra.mxu0 %v4381
      %v4383 = vand.u32 %v4224, 4294901760
      %4384 = vmatpush.msra.mxu0 %v4383
      %v4385 = vand.u32 %v4223, 4294901760
      %4386 = vmatpush.msra.mxu0 %v4385
      %v4387 = vand.u32 %v4222, 4294901760
      %4388 = vmatpush.msra.mxu0 %v4387
      %v4389 = vand.u32 %v4221, 4294901760
      %4390 = vmatpush.msra.mxu0 %v4389
      %v4391 = vand.u32 %v4233, 4294901760
      %v4392 = vsub.f32 %v4233, %v4391
      %v4393 = vand.u32 %v4392, 4294901760
      %4394 = vmatmul.f32.gmra.mxu0 %v4393
      %v4395 = vpop.f32.mrf.mxu0
      %v4396 = vadd.f32 %v4365, %v4395
      %4397 = vdwg.mxu0
      %4398 = vmatpush.msra.mxu0 0.0
      %4399 = vmatpush.msra.mxu0 0.0
      %4400 = vmatpush.msra.mxu0 0.0
      %4401 = vmatpush.msra.mxu0 0.0
      %4402 = vmatpush.msra.mxu0 0.0
      %4403 = vmatpush.msra.mxu0 0.0
      %4404 = vmatpush.msra.mxu0 0.0
      %4405 = vmatpush.msra.mxu0 0.0
      %v4406 = vand.u32 %v4228, 4294901760
      %v4407 = vsub.f32 %v4228, %v4406
      %v4408 = vand.u32 %v4407, 4294901760
      %4409 = vmatpush.msra.mxu0 %v4408
      %v4410 = vand.u32 %v4227, 4294901760
      %v4411 = vsub.f32 %v4227, %v4410
      %v4412 = vand.u32 %v4411, 4294901760
      %4413 = vmatpush.msra.mxu0 %v4412
      %v4414 = vand.u32 %v4226, 4294901760
      %v4415 = vsub.f32 %v4226, %v4414
      %v4416 = vand.u32 %v4415, 4294901760
      %4417 = vmatpush.msra.mxu0 %v4416
      %v4418 = vand.u32 %v4225, 4294901760
      %v4419 = vsub.f32 %v4225, %v4418
      %v4420 = vand.u32 %v4419, 4294901760
      %4421 = vmatpush.msra.mxu0 %v4420
      %v4422 = vand.u32 %v4224, 4294901760
      %v4423 = vsub.f32 %v4224, %v4422
      %v4424 = vand.u32 %v4423, 4294901760
      %4425 = vmatpush.msra.mxu0 %v4424
      %v4426 = vand.u32 %v4223, 4294901760
      %v4427 = vsub.f32 %v4223, %v4426
      %v4428 = vand.u32 %v4427, 4294901760
      %4429 = vmatpush.msra.mxu0 %v4428
      %v4430 = vand.u32 %v4222, 4294901760
      %v4431 = vsub.f32 %v4222, %v4430
      %v4432 = vand.u32 %v4431, 4294901760
      %4433 = vmatpush.msra.mxu0 %v4432
      %v4434 = vand.u32 %v4221, 4294901760
      %v4435 = vsub.f32 %v4221, %v4434
      %v4436 = vand.u32 %v4435, 4294901760
      %4437 = vmatpush.msra.mxu0 %v4436
      %v4438 = vand.u32 %v4233, 4294901760
      %4439 = vmatmul.f32.gmra.mxu0 %v4438
      %v4440 = vpop.f32.mrf.mxu0
      %v4441 = vadd.f32 %v4396, %v4440
      %4442 = vdwg.mxu0
      %4443 = vmatpush.msra.mxu0 0.0
      %4444 = vmatpush.msra.mxu0 0.0
      %4445 = vmatpush.msra.mxu0 0.0
      %4446 = vmatpush.msra.mxu0 0.0
      %4447 = vmatpush.msra.mxu0 0.0
      %4448 = vmatpush.msra.mxu0 0.0
      %4449 = vmatpush.msra.mxu0 0.0
      %4450 = vmatpush.msra.mxu0 0.0
      %v4451 = vand.u32 %v4228, 4294901760
      %4452 = vmatpush.msra.mxu0 %v4451
      %v4453 = vand.u32 %v4227, 4294901760
      %4454 = vmatpush.msra.mxu0 %v4453
      %v4455 = vand.u32 %v4226, 4294901760
      %4456 = vmatpush.msra.mxu0 %v4455
      %v4457 = vand.u32 %v4225, 4294901760
      %4458 = vmatpush.msra.mxu0 %v4457
      %v4459 = vand.u32 %v4224, 4294901760
      %4460 = vmatpush.msra.mxu0 %v4459
      %v4461 = vand.u32 %v4223, 4294901760
      %4462 = vmatpush.msra.mxu0 %v4461
      %v4463 = vand.u32 %v4222, 4294901760
      %4464 = vmatpush.msra.mxu0 %v4463
      %v4465 = vand.u32 %v4221, 4294901760
      %4466 = vmatpush.msra.mxu0 %v4465
      %v4467 = vand.u32 %v4233, 4294901760
      %4468 = vmatmul.f32.gmra.mxu0 %v4467
      %v4469 = vpop.f32.mrf.mxu0
      %v4470 = vadd.f32 %v4441, %v4469
      %4471 = vdwg.mxu0
      %v4472 = vmul.f32 %v4470, %v4209
      %4474 = vrot.lane.b32.xlu0 %v4472, 96
      %v4475 = vpop.permute.xlu0 %4474
      %v4477 = vadd.f32 %v4206, %v4475
      %4479 = vrot.lane.b32.xlu0 %v4477, 32
      %v4480 = vpop.permute.xlu0 %4479
      %vm4482 = vcmask 254976
      %4483 = vst.msk [vmem:[#allocation4] sm:$0x3] %vm4482, %v4480
    $region25: #{rlstm_forward.1} parent=1 // pred_fallthru
      _
    // Predicated region
    $region26: #{rlstm_forward.1} parent=1 // pred_check
      _
    $region27: #{rlstm_forward.1} parent=1 // pred_check_branch
      %4485 = sbr.rel (0) target = $region29
    $region28: #{rlstm_forward.1} parent=1 // pred_region
      %4487 = vsyncadd [#allocation5], 0
      %s4489 = sshll.u32 [#allocation4], 4
      %s4490 = int_to_ptr.vmem [resolvable:$true] %s4489
      %s4491 = sshll.u32 %s4, 4
      %s4492 = int_to_ptr.hbm [resolvable:$true] %s4491
      %4494 = dma.vmem_to_hbm [thread:$0]  %s4490, 32, %s4492, [#allocation5]
    $region29: #{rlstm_forward.1} parent=1 // pred_fallthru
      _
    // Predicated region
    $region30: #{rlstm_forward.1} parent=1 // pred_check
      _
    $region31: #{rlstm_forward.1} parent=1 // pred_check_branch
      %4496 = sbr.rel (0) target = $region33
    $region32: #{rlstm_forward.1} parent=1 // pred_region
      %4498 = dma.done [#allocation5], 32
    $region33: #{rlstm_forward.1} parent=1 // pred_fallthru
      _
    %4499 = vsyncpa [#allocation5], 1

</llo_original>
